<compile_context>
chip_gen: v6e
topology: v6e:2x2x1
jax: 0.10.0
libtpu: 0.0.40
codegen_flags: <defaults>
</compile_context>

<pallas_src>
import functools

import jax
import jax.numpy as jnp
from jax import lax
from jax.experimental import pallas as pl
from jax.experimental.pallas import tpu as pltpu

OUT_PAD = 128   # last layer padded from 9 -> 128 lanes for an unmasked store
L3_CHUNK = 256  # layer-3 output-channel chunk, pooled immediately


def tnet1_kernel(x_ref,
                 w1_ref, c1_ref,
                 w2_ref, c2_ref,
                 w3_ref, a3_ref, c3_ref,
                 w4_ref, c4_ref,
                 w5_ref, c5_ref,
                 w6_ref, b6_ref,
                 o_ref,
                 g_acc,
                 *, n_valid):
    n_idx = pl.program_id(1)

    @pl.when(n_idx == 0)
    def _():
        g_acc[...] = jnp.full(g_acc.shape, -jnp.inf, dtype=g_acc.dtype)

    bt, tn, kk = x_ref.shape
    x = x_ref[...].reshape(bt * tn, kk)                        # (R, k) f32

    # Layer 1: contraction dim is only k=3 -> VPU broadcast MACs.  BN1 scale is
    # pre-folded into w1; only the shift + ReLU remains here.
    h = x[:, 0:1] * w1_ref[0:1, :]
    for c in range(1, kk):
        h = h + x[:, c:c + 1] * w1_ref[c:c + 1, :]
    h = jnp.maximum(h + c1_ref[...], 0.0)                      # (R, 64)

    # Layer 2 (MXU): bf16 operands, f32 accumulation; BN2 scale pre-folded.
    h = jnp.dot(h.astype(jnp.bfloat16), w2_ref[...],
                preferred_element_type=jnp.float32)
    h = jnp.maximum(h + c2_ref[...], 0.0)                      # (R, 128)
    h2 = h.astype(jnp.bfloat16)

    # Layer 3, chunked over output channels.  The raw dot output is pooled
    # directly (BN3 affine + ReLU are commuted past the max-pool; sign(s3) was
    # folded into w3's columns in the wrapper so the commute is valid).
    if n_valid is not None:  # N was padded: mask padded points with -inf
        point = n_idx * tn + lax.broadcasted_iota(jnp.int32, (1, tn, 1), 1)
        valid = point < n_valid
    n_out = w3_ref.shape[1]
    for j in range(0, n_out, L3_CHUNK):
        d = jnp.dot(h2, w3_ref[:, j:j + L3_CHUNK],
                    preferred_element_type=jnp.float32)        # (R, CHUNK)
        d = d.reshape(bt, tn, L3_CHUNK)
        if n_valid is not None:
            d = jnp.where(valid, d, -jnp.inf)
        g_acc[:, j:j + L3_CHUNK] = jnp.maximum(g_acc[:, j:j + L3_CHUNK],
                                               jnp.max(d, axis=1))

    @pl.when(n_idx == pl.num_programs(1) - 1)
    def _():
        # BN3 affine + ReLU applied once on the pooled (bt, 1024) tensor.
        g = jnp.maximum(a3_ref[...] * g_acc[...] + c3_ref[...], 0.0)
        f = jnp.dot(g.astype(jnp.bfloat16), w4_ref[...],
                    preferred_element_type=jnp.float32)
        f = jnp.maximum(f + c4_ref[...], 0.0)                  # (bt, 512)
        f = jnp.dot(f.astype(jnp.bfloat16), w5_ref[...],
                    preferred_element_type=jnp.float32)
        f = jnp.maximum(f + c5_ref[...], 0.0)                  # (bt, 256)
        out = jnp.dot(f.astype(jnp.bfloat16), w6_ref[...],
                      preferred_element_type=jnp.float32)      # (bt, 128)
        o_ref[0] = out + b6_ref[...]                           # identity in bias


def _bn_fold(bias, gamma, beta, mean, var, eps=1e-5):
    """Eval-mode BN + conv/linear bias folded into (scale, shift) after x@W."""
    s = gamma / jnp.sqrt(var + eps)
    shift = beta + (bias - mean) * s
    return s.astype(jnp.float32), shift.astype(jnp.float32)


def _fold_params(params, k):
    """Fold BN scales into weight columns; return kernel-ready arrays."""
    bf16 = lambda a: a.astype(jnp.bfloat16)
    s, c = {}, {}
    for li in range(1, 6):
        s[li], c[li] = _bn_fold(params[f"b{li}"], params[f"bn{li}_gamma"],
                                params[f"bn{li}_beta"], params[f"bn{li}_mean"],
                                params[f"bn{li}_var"])
    w1f = params["w1"] * s[1][None, :]                      # f32 (VPU layer)
    w2f = bf16(params["w2"] * s[2][None, :])
    sgn3 = jnp.sign(s[3])                                   # commute BN3 past max
    w3f = bf16(params["w3"] * sgn3[None, :])
    a3 = jnp.abs(s[3])[None, :]
    w4f = bf16(params["w4"] * s[4][None, :])
    w5f = bf16(params["w5"] * s[5][None, :])
    # Last layer: identity folded into the bias; pad to 128 lanes.
    kk = k * k
    b6_eff = params["b6"] + jnp.eye(k, dtype=jnp.float32).reshape(kk)
    w6p = jnp.zeros((params["w6"].shape[0], OUT_PAD), jnp.float32)
    w6p = w6p.at[:, :kk].set(params["w6"])
    b6p = jnp.zeros((1, OUT_PAD), jnp.float32).at[:, :kk].set(b6_eff[None, :])
    return dict(w1=w1f, c1=c[1][None, :],
                w2=w2f, c2=c[2][None, :],
                w3=w3f, a3=a3, c3=c[3][None, :],
                w4=w4f, c4=c[4][None, :],
                w5=w5f, c5=c[5][None, :],
                w6=bf16(w6p), b6=b6p)


def _choose_tiles(B, N):
    # Batch tile: avoid 4x padding of tiny batches and keep >=2 'parallel'
    # batch steps so both v7x TensorCores get work.
    bt = min(8, max(1, -(-B // 2)))
    b_pad = -(-B // bt) * bt
    # Point tile: <=512 keeps the per-step working set v7x-friendly; prefer an
    # exact divisor, else pad N and mask the tail before the max-pool.
    if N <= 512:
        tn = N
    else:
        tn = 512
        for t in range(512, 255, -8):
            if N % t == 0:
                tn = t
                break
    n_pad = -(-N // tn) * tn
    return bt, b_pad, tn, n_pad


def tnet1_forward(x_ncw, params, k=3):
    """x_ncw: (B, k, N) float32 — PyTorch Conv1d layout.  Returns (B, k, k)."""
    B, C, N = x_ncw.shape
    assert C == k
    x = jnp.transpose(x_ncw, (0, 2, 1)).astype(jnp.float32)   # (B, N, k)

    bt, b_pad, tn, n_pad = _choose_tiles(B, N)
    if b_pad != B or n_pad != N:
        x = jnp.pad(x, ((0, b_pad - B), (0, n_pad - N), (0, 0)))
    nb, nn = b_pad // bt, n_pad // tn

    p = _fold_params(params, k)
    inputs = [x,
              p["w1"], p["c1"], p["w2"], p["c2"],
              p["w3"], p["a3"], p["c3"],
              p["w4"], p["c4"], p["w5"], p["c5"],
              p["w6"], p["b6"]]

    # Weights/shifts have constant index maps, so Pallas never re-fetches them
    # after the first step.  (pl.Buffered(1) could also drop their second VMEM
    # buffer for extra v7x headroom; omitted for lowering robustness.)
    full = lambda a: pl.BlockSpec(a.shape, lambda b, n: (0,) * a.ndim)
    in_specs = ([pl.BlockSpec((bt, tn, k), lambda b, n: (b, n, 0))]
                + [full(a) for a in inputs[1:]])

    kernel = functools.partial(tnet1_kernel,
                               n_valid=(N if n_pad != N else None))
    out = pl.pallas_call(
        kernel,
        out_shape=jax.ShapeDtypeStruct((nb, bt, OUT_PAD), jnp.float32),
        grid_spec=pltpu.PrefetchScalarGridSpec(
            num_scalar_prefetch=0,
            grid=(nb, nn),
            in_specs=in_specs,
            out_specs=pl.BlockSpec((1, bt, OUT_PAD), lambda b, n: (b, 0, 0)),
            scratch_shapes=[pltpu.VMEM((bt, 1024), jnp.float32)]),
        compiler_params=pltpu.CompilerParams(
            dimension_semantics=("parallel", "arbitrary"),
            vmem_limit_bytes=40 * 1024 * 1024),
    )(*inputs)

    return out.reshape(nb * bt, OUT_PAD)[:B, :k * k].reshape(B, k, k)


def tnet1_reference(x_ncw, params, k=3):
    """Pure-JAX reference: same eval-mode BN fold, same bf16 operand casts,
    but the straightforward per-point BN3+ReLU -> max-pool ordering."""
    p = _fold_params(params, k)
    x = jnp.transpose(x_ncw, (0, 2, 1)).astype(jnp.float32)   # (B, N, k)
    bd = lambda a, w: jnp.dot(a.astype(jnp.bfloat16), w,
                              preferred_element_type=jnp.float32)
    h = jnp.maximum(jnp.dot(x, p["w1"],
                            precision=lax.Precision.HIGHEST) + p["c1"], 0.0)
    h = jnp.maximum(bd(h, p["w2"]) + p["c2"], 0.0)
    h = jnp.maximum(p["a3"] * bd(h, p["w3"]) + p["c3"], 0.0)  # per-point BN3+ReLU
    g = jnp.max(h, axis=1)                                    # max over points
    f = jnp.maximum(bd(g, p["w4"]) + p["c4"], 0.0)
    f = jnp.maximum(bd(f, p["w5"]) + p["c5"], 0.0)
    out = bd(f, p["w6"]) + p["b6"]                            # identity in bias
    return out[:, :k * k].reshape(-1, k, k)


def make_params(key, k=3):
    sizes = [(k, 64), (64, 128), (128, 1024), (1024, 512), (512, 256), (256, k * k)]
    params = {}
    keys = jax.random.split(key, 32)
    ki = 0
    for li, (cin, cout) in enumerate(sizes, start=1):
        w = jax.random.normal(keys[ki], (cin, cout), jnp.float32) / jnp.sqrt(cin); ki += 1
        b = 0.05 * jax.random.normal(keys[ki], (cout,), jnp.float32); ki += 1
        params[f"w{li}"] = w
        params[f"b{li}"] = b
    for li, c in enumerate([64, 128, 1024, 512, 256], start=1):
        params[f"bn{li}_gamma"] = 1.0 + 0.1 * jax.random.normal(keys[ki], (c,), jnp.float32); ki += 1
        params[f"bn{li}_beta"] = 0.05 * jax.random.normal(keys[ki], (c,), jnp.float32); ki += 1
        params[f"bn{li}_mean"] = 0.1 * jax.random.normal(keys[ki], (c,), jnp.float32); ki += 1
        params[f"bn{li}_var"] = jnp.abs(1.0 + 0.1 * jax.random.normal(keys[ki], (c,), jnp.float32)); ki += 1
    return params


if __name__ == "__main__":
    key = jax.random.PRNGKey(0)
    k_params, k_x = jax.random.split(key)

    B, K, N = 2, 3, 16                      # small: batch=2, k=3 channels, 16 points
    params = make_params(k_params, k=K)
    x = jax.random.normal(k_x, (B, K, N), jnp.float32)   # PyTorch NCW layout

    out = jax.block_until_ready(tnet1_forward(x, params, k=K))
    ref = tnet1_reference(x, params, k=K)

    assert out.shape == (B, 3, 3)
    assert jnp.allclose(out, ref, atol=2e-2, rtol=2e-2), "mismatch vs reference"

    print("KERNEL_OK")
</pallas_src>

<mosaic_0001>
module attributes {stable_mosaic.version = 11 : i64} {
  func.func @tnet1_kernel(%arg0: i32, %arg1: i32, %arg2: memref<1x16x3xf32, #tpu.memory_space<vmem>>, %arg3: memref<3x64xf32, #tpu.memory_space<vmem>>, %arg4: memref<1x64xf32, #tpu.memory_space<vmem>>, %arg5: memref<64x128xbf16, #tpu.memory_space<vmem>>, %arg6: memref<1x128xf32, #tpu.memory_space<vmem>>, %arg7: memref<128x1024xbf16, #tpu.memory_space<vmem>>, %arg8: memref<1x1024xf32, #tpu.memory_space<vmem>>, %arg9: memref<1x1024xf32, #tpu.memory_space<vmem>>, %arg10: memref<1024x512xbf16, #tpu.memory_space<vmem>>, %arg11: memref<1x512xf32, #tpu.memory_space<vmem>>, %arg12: memref<512x256xbf16, #tpu.memory_space<vmem>>, %arg13: memref<1x256xf32, #tpu.memory_space<vmem>>, %arg14: memref<256x128xbf16, #tpu.memory_space<vmem>>, %arg15: memref<1x128xf32, #tpu.memory_space<vmem>>, %arg16: memref<1x1x128xf32, #tpu.memory_space<vmem>>, %arg17: memref<1x1024xf32, #tpu.memory_space<vmem>>) attributes {dimension_semantics = [#tpu.dimension_semantics<parallel>, #tpu.dimension_semantics<arbitrary>], iteration_bounds = array<i64: 2, 1>, scalar_prefetch = 0 : i64, scratch_operands = 1 : i64, tpu.core_type = #tpu.core_type<tc>, window_params = [{transform_indices = @transform_0, window_bounds = array<i64: 1, 16, 3>}, {pipeline_mode = #tpu.pipeline_mode<synchronous>, transform_indices = @transform_1, window_bounds = array<i64: 3, 64>}, {pipeline_mode = #tpu.pipeline_mode<synchronous>, transform_indices = @transform_2, window_bounds = array<i64: 1, 64>}, {pipeline_mode = #tpu.pipeline_mode<synchronous>, transform_indices = @transform_3, window_bounds = array<i64: 64, 128>}, {pipeline_mode = #tpu.pipeline_mode<synchronous>, transform_indices = @transform_4, window_bounds = array<i64: 1, 128>}, {pipeline_mode = #tpu.pipeline_mode<synchronous>, transform_indices = @transform_5, window_bounds = array<i64: 128, 1024>}, {pipeline_mode = #tpu.pipeline_mode<synchronous>, transform_indices = @transform_6, window_bounds = array<i64: 1, 1024>}, {pipeline_mode = #tpu.pipeline_mode<synchronous>, transform_indices = @transform_7, window_bounds = array<i64: 1, 1024>}, {pipeline_mode = #tpu.pipeline_mode<synchronous>, transform_indices = @transform_8, window_bounds = array<i64: 1024, 512>}, {pipeline_mode = #tpu.pipeline_mode<synchronous>, transform_indices = @transform_9, window_bounds = array<i64: 1, 512>}, {pipeline_mode = #tpu.pipeline_mode<synchronous>, transform_indices = @transform_10, window_bounds = array<i64: 512, 256>}, {pipeline_mode = #tpu.pipeline_mode<synchronous>, transform_indices = @transform_11, window_bounds = array<i64: 1, 256>}, {pipeline_mode = #tpu.pipeline_mode<synchronous>, transform_indices = @transform_12, window_bounds = array<i64: 256, 128>}, {pipeline_mode = #tpu.pipeline_mode<synchronous>, transform_indices = @transform_13, window_bounds = array<i64: 1, 128>}, {transform_indices = @transform_14, window_bounds = array<i64: 1, 1, 128>}]} {
    %c0_i32 = arith.constant 0 : i32
    %0 = arith.cmpi eq, %arg1, %c0_i32 : i32
    %1 = arith.extui %0 : i1 to i32
    %c0_i32_0 = arith.constant 0 : i32
    %2 = arith.cmpi ne, %1, %c0_i32_0 : i32
    scf.if %2 {
      %cst_46 = arith.constant 0xFF800000 : f32
      %67 = vector.broadcast %cst_46 : f32 to vector<1x1024xf32>
      %c0_47 = arith.constant 0 : index
      %c0_48 = arith.constant 0 : index
      %68 = vector.load %arg17[%c0_47, %c0_48] : memref<1x1024xf32, #tpu.memory_space<vmem>>, vector<1x1024xf32>
      tpu.vector_store %arg17[%c0_47, %c0_48], %67 {strides = array<i32>} : memref<1x1024xf32, #tpu.memory_space<vmem>>, vector<1x1024xf32>,
    } else {
    }
    %c0 = arith.constant 0 : index
    %c0_1 = arith.constant 0 : index
    %c0_2 = arith.constant 0 : index
    %3 = vector.load %arg2[%c0, %c0_1, %c0_2] : memref<1x16x3xf32, #tpu.memory_space<vmem>>, vector<1x16x3xf32>
    %4 = vector.shape_cast %3 : vector<1x16x3xf32> to vector<16x3xf32>
    %5 = vector.extract_strided_slice %4 {offsets = [0, 0], sizes = [16, 1], strides = [1, 1]} : vector<16x3xf32> to vector<16x1xf32>
    %c0_3 = arith.constant 0 : index
    %c0_4 = arith.constant 0 : index
    %6 = vector.load %arg3[%c0_3, %c0_4] : memref<3x64xf32, #tpu.memory_space<vmem>>, vector<1x64xf32>
    %7 = vector.broadcast %5 : vector<16x1xf32> to vector<16x64xf32>
    %8 = vector.broadcast %6 : vector<1x64xf32> to vector<16x64xf32>
    %9 = arith.mulf %7, %8 : vector<16x64xf32>
    %10 = vector.extract_strided_slice %4 {offsets = [0, 1], sizes = [16, 1], strides = [1, 1]} : vector<16x3xf32> to vector<16x1xf32>
    %c1 = arith.constant 1 : index
    %c0_5 = arith.constant 0 : index
    %11 = vector.load %arg3[%c1, %c0_5] : memref<3x64xf32, #tpu.memory_space<vmem>>, vector<1x64xf32>
    %12 = vector.broadcast %10 : vector<16x1xf32> to vector<16x64xf32>
    %13 = vector.broadcast %11 : vector<1x64xf32> to vector<16x64xf32>
    %14 = arith.mulf %12, %13 : vector<16x64xf32>
    %15 = arith.addf %9, %14 : vector<16x64xf32>
    %16 = vector.extract_strided_slice %4 {offsets = [0, 2], sizes = [16, 1], strides = [1, 1]} : vector<16x3xf32> to vector<16x1xf32>
    %c2 = arith.constant 2 : index
    %c0_6 = arith.constant 0 : index
    %17 = vector.load %arg3[%c2, %c0_6] : memref<3x64xf32, #tpu.memory_space<vmem>>, vector<1x64xf32>
    %18 = vector.broadcast %16 : vector<16x1xf32> to vector<16x64xf32>
    %19 = vector.broadcast %17 : vector<1x64xf32> to vector<16x64xf32>
    %20 = arith.mulf %18, %19 : vector<16x64xf32>
    %21 = arith.addf %15, %20 : vector<16x64xf32>
    %c0_7 = arith.constant 0 : index
    %c0_8 = arith.constant 0 : index
    %22 = vector.load %arg4[%c0_7, %c0_8] : memref<1x64xf32, #tpu.memory_space<vmem>>, vector<1x64xf32>
    %23 = vector.broadcast %22 : vector<1x64xf32> to vector<16x64xf32>
    %24 = arith.addf %21, %23 : vector<16x64xf32>
    %cst = arith.constant 0.000000e+00 : f32
    %25 = vector.broadcast %cst : f32 to vector<16x64xf32>
    %26 = arith.maximumf %24, %25 : vector<16x64xf32>
    %27 = arith.truncf %26 : vector<16x64xf32> to vector<16x64xbf16>
    %c0_9 = arith.constant 0 : index
    %c0_10 = arith.constant 0 : index
    %28 = vector.load %arg5[%c0_9, %c0_10] : memref<64x128xbf16, #tpu.memory_space<vmem>>, vector<64x128xbf16>
    %cst_11 = arith.constant dense<0.000000e+00> : vector<16x128xf32>
    %29 = tpu.matmul %27, %28, %cst_11 {dimension_numbers = #tpu.dot_dimension_numbers<[1], [0], [0], [1], [0, 0, 1, 1], [], []>} : vector<16x64xbf16>, vector<64x128xbf16>, vector<16x128xf32> -> vector<16x128xf32>
    %c0_12 = arith.constant 0 : index
    %c0_13 = arith.constant 0 : index
    %30 = vector.load %arg6[%c0_12, %c0_13] : memref<1x128xf32, #tpu.memory_space<vmem>>, vector<1x128xf32>
    %31 = vector.broadcast %30 : vector<1x128xf32> to vector<16x128xf32>
    %32 = arith.addf %29, %31 : vector<16x128xf32>
    %cst_14 = arith.constant 0.000000e+00 : f32
    %33 = vector.broadcast %cst_14 : f32 to vector<16x128xf32>
    %34 = arith.maximumf %32, %33 : vector<16x128xf32>
    %35 = arith.truncf %34 : vector<16x128xf32> to vector<16x128xbf16>
    %c0_15 = arith.constant 0 : index
    %c0_16 = arith.constant 0 : index
    %36 = vector.load %arg7[%c0_15, %c0_16] : memref<128x1024xbf16, #tpu.memory_space<vmem>>, vector<128x256xbf16>
    %cst_17 = arith.constant dense<0.000000e+00> : vector<16x256xf32>
    %37 = tpu.matmul %35, %36, %cst_17 {dimension_numbers = #tpu.dot_dimension_numbers<[1], [0], [0], [1], [0, 0, 1, 1], [], []>} : vector<16x128xbf16>, vector<128x256xbf16>, vector<16x256xf32> -> vector<16x256xf32>
    %38 = vector.shape_cast %37 : vector<16x256xf32> to vector<1x16x256xf32>
    %c0_18 = arith.constant 0 : index
    %c0_19 = arith.constant 0 : index
    %39 = vector.load %arg17[%c0_18, %c0_19] : memref<1x1024xf32, #tpu.memory_space<vmem>>, vector<1x256xf32>
    %cst_20 = arith.constant dense<0xFF800000> : vector<1x256xf32>
    %40 = vector.multi_reduction <maximumf>, %38, %cst_20 [1] : vector<1x16x256xf32> to vector<1x256xf32>
    %41 = arith.maximumf %39, %40 : vector<1x256xf32>
    %c0_21 = arith.constant 0 : index
    %c0_22 = arith.constant 0 : index
    %42 = vector.load %arg17[%c0_21, %c0_22] : memref<1x1024xf32, #tpu.memory_space<vmem>>, vector<1x256xf32>
    tpu.vector_store %arg17[%c0_21, %c0_22], %41 {strides = array<i32>} : memref<1x1024xf32, #tpu.memory_space<vmem>>, vector<1x256xf32>,
    %c0_23 = arith.constant 0 : index
    %c256 = arith.constant 256 : index
    %43 = vector.load %arg7[%c0_23, %c256] : memref<128x1024xbf16, #tpu.memory_space<vmem>>, vector<128x256xbf16>
    %cst_24 = arith.constant dense<0.000000e+00> : vector<16x256xf32>
    %44 = tpu.matmul %35, %43, %cst_24 {dimension_numbers = #tpu.dot_dimension_numbers<[1], [0], [0], [1], [0, 0, 1, 1], [], []>} : vector<16x128xbf16>, vector<128x256xbf16>, vector<16x256xf32> -> vector<16x256xf32>
    %45 = vector.shape_cast %44 : vector<16x256xf32> to vector<1x16x256xf32>
    %c0_25 = arith.constant 0 : index
    %c256_26 = arith.constant 256 : index
    %46 = vector.load %arg17[%c0_25, %c256_26] : memref<1x1024xf32, #tpu.memory_space<vmem>>, vector<1x256xf32>
    %cst_27 = arith.constant dense<0xFF800000> : vector<1x256xf32>
    %47 = vector.multi_reduction <maximumf>, %45, %cst_27 [1] : vector<1x16x256xf32> to vector<1x256xf32>
    %48 = arith.maximumf %46, %47 : vector<1x256xf32>
    %c0_28 = arith.constant 0 : index
    %c256_29 = arith.constant 256 : index
    %49 = vector.load %arg17[%c0_28, %c256_29] : memref<1x1024xf32, #tpu.memory_space<vmem>>, vector<1x256xf32>
    tpu.vector_store %arg17[%c0_28, %c256_29], %48 {strides = array<i32>} : memref<1x1024xf32, #tpu.memory_space<vmem>>, vector<1x256xf32>,
    %c0_30 = arith.constant 0 : index
    %c512 = arith.constant 512 : index
    %50 = vector.load %arg7[%c0_30, %c512] : memref<128x1024xbf16, #tpu.memory_space<vmem>>, vector<128x256xbf16>
    %cst_31 = arith.constant dense<0.000000e+00> : vector<16x256xf32>
    %51 = tpu.matmul %35, %50, %cst_31 {dimension_numbers = #tpu.dot_dimension_numbers<[1], [0], [0], [1], [0, 0, 1, 1], [], []>} : vector<16x128xbf16>, vector<128x256xbf16>, vector<16x256xf32> -> vector<16x256xf32>
    %52 = vector.shape_cast %51 : vector<16x256xf32> to vector<1x16x256xf32>
    %c0_32 = arith.constant 0 : index
    %c512_33 = arith.constant 512 : index
    %53 = vector.load %arg17[%c0_32, %c512_33] : memref<1x1024xf32, #tpu.memory_space<vmem>>, vector<1x256xf32>
    %cst_34 = arith.constant dense<0xFF800000> : vector<1x256xf32>
    %54 = vector.multi_reduction <maximumf>, %52, %cst_34 [1] : vector<1x16x256xf32> to vector<1x256xf32>
    %55 = arith.maximumf %53, %54 : vector<1x256xf32>
    %c0_35 = arith.constant 0 : index
    %c512_36 = arith.constant 512 : index
    %56 = vector.load %arg17[%c0_35, %c512_36] : memref<1x1024xf32, #tpu.memory_space<vmem>>, vector<1x256xf32>
    tpu.vector_store %arg17[%c0_35, %c512_36], %55 {strides = array<i32>} : memref<1x1024xf32, #tpu.memory_space<vmem>>, vector<1x256xf32>,
    %c0_37 = arith.constant 0 : index
    %c768 = arith.constant 768 : index
    %57 = vector.load %arg7[%c0_37, %c768] : memref<128x1024xbf16, #tpu.memory_space<vmem>>, vector<128x256xbf16>
    %cst_38 = arith.constant dense<0.000000e+00> : vector<16x256xf32>
    %58 = tpu.matmul %35, %57, %cst_38 {dimension_numbers = #tpu.dot_dimension_numbers<[1], [0], [0], [1], [0, 0, 1, 1], [], []>} : vector<16x128xbf16>, vector<128x256xbf16>, vector<16x256xf32> -> vector<16x256xf32>
    %59 = vector.shape_cast %58 : vector<16x256xf32> to vector<1x16x256xf32>
    %c0_39 = arith.constant 0 : index
    %c768_40 = arith.constant 768 : index
    %60 = vector.load %arg17[%c0_39, %c768_40] : memref<1x1024xf32, #tpu.memory_space<vmem>>, vector<1x256xf32>
    %cst_41 = arith.constant dense<0xFF800000> : vector<1x256xf32>
    %61 = vector.multi_reduction <maximumf>, %59, %cst_41 [1] : vector<1x16x256xf32> to vector<1x256xf32>
    %62 = arith.maximumf %60, %61 : vector<1x256xf32>
    %c0_42 = arith.constant 0 : index
    %c768_43 = arith.constant 768 : index
    %63 = vector.load %arg17[%c0_42, %c768_43] : memref<1x1024xf32, #tpu.memory_space<vmem>>, vector<1x256xf32>
    tpu.vector_store %arg17[%c0_42, %c768_43], %62 {strides = array<i32>} : memref<1x1024xf32, #tpu.memory_space<vmem>>, vector<1x256xf32>,
    %c0_i32_44 = arith.constant 0 : i32
    %64 = arith.cmpi eq, %arg1, %c0_i32_44 : i32
    %65 = arith.extui %64 : i1 to i32
    %c0_i32_45 = arith.constant 0 : i32
    %66 = arith.cmpi ne, %65, %c0_i32_45 : i32
    scf.if %66 {
      %c0_46 = arith.constant 0 : index
      %c0_47 = arith.constant 0 : index
      %67 = vector.load %arg8[%c0_46, %c0_47] : memref<1x1024xf32, #tpu.memory_space<vmem>>, vector<1x1024xf32>
      %c0_48 = arith.constant 0 : index
      %c0_49 = arith.constant 0 : index
      %68 = vector.load %arg17[%c0_48, %c0_49] : memref<1x1024xf32, #tpu.memory_space<vmem>>, vector<1x1024xf32>
      %69 = arith.mulf %67, %68 : vector<1x1024xf32>
      %c0_50 = arith.constant 0 : index
      %c0_51 = arith.constant 0 : index
      %70 = vector.load %arg9[%c0_50, %c0_51] : memref<1x1024xf32, #tpu.memory_space<vmem>>, vector<1x1024xf32>
      %71 = arith.addf %69, %70 : vector<1x1024xf32>
      %cst_52 = arith.constant 0.000000e+00 : f32
      %72 = vector.broadcast %cst_52 : f32 to vector<1x1024xf32>
      %73 = arith.maximumf %71, %72 : vector<1x1024xf32>
      %74 = arith.truncf %73 : vector<1x1024xf32> to vector<1x1024xbf16>
      %c0_53 = arith.constant 0 : index
      %c0_54 = arith.constant 0 : index
      %75 = vector.load %arg10[%c0_53, %c0_54] : memref<1024x512xbf16, #tpu.memory_space<vmem>>, vector<1024x512xbf16>
      %cst_55 = arith.constant dense<0.000000e+00> : vector<1x512xf32>
      %76 = tpu.matmul %74, %75, %cst_55 {dimension_numbers = #tpu.dot_dimension_numbers<[1], [0], [0], [1], [0, 0, 1, 1], [], []>} : vector<1x1024xbf16>, vector<1024x512xbf16>, vector<1x512xf32> -> vector<1x512xf32>
      %c0_56 = arith.constant 0 : index
      %c0_57 = arith.constant 0 : index
      %77 = vector.load %arg11[%c0_56, %c0_57] : memref<1x512xf32, #tpu.memory_space<vmem>>, vector<1x512xf32>
      %78 = arith.addf %76, %77 : vector<1x512xf32>
      %cst_58 = arith.constant 0.000000e+00 : f32
      %79 = vector.broadcast %cst_58 : f32 to vector<1x512xf32>
      %80 = arith.maximumf %78, %79 : vector<1x512xf32>
      %81 = arith.truncf %80 : vector<1x512xf32> to vector<1x512xbf16>
      %c0_59 = arith.constant 0 : index
      %c0_60 = arith.constant 0 : index
      %82 = vector.load %arg12[%c0_59, %c0_60] : memref<512x256xbf16, #tpu.memory_space<vmem>>, vector<512x256xbf16>
      %cst_61 = arith.constant dense<0.000000e+00> : vector<1x256xf32>
      %83 = tpu.matmul %81, %82, %cst_61 {dimension_numbers = #tpu.dot_dimension_numbers<[1], [0], [0], [1], [0, 0, 1, 1], [], []>} : vector<1x512xbf16>, vector<512x256xbf16>, vector<1x256xf32> -> vector<1x256xf32>
      %c0_62 = arith.constant 0 : index
      %c0_63 = arith.constant 0 : index
      %84 = vector.load %arg13[%c0_62, %c0_63] : memref<1x256xf32, #tpu.memory_space<vmem>>, vector<1x256xf32>
      %85 = arith.addf %83, %84 : vector<1x256xf32>
      %cst_64 = arith.constant 0.000000e+00 : f32
      %86 = vector.broadcast %cst_64 : f32 to vector<1x256xf32>
      %87 = arith.maximumf %85, %86 : vector<1x256xf32>
      %88 = arith.truncf %87 : vector<1x256xf32> to vector<1x256xbf16>
      %c0_65 = arith.constant 0 : index
      %c0_66 = arith.constant 0 : index
      %89 = vector.load %arg14[%c0_65, %c0_66] : memref<256x128xbf16, #tpu.memory_space<vmem>>, vector<256x128xbf16>
      %cst_67 = arith.constant dense<0.000000e+00> : vector<1x128xf32>
      %90 = tpu.matmul %88, %89, %cst_67 {dimension_numbers = #tpu.dot_dimension_numbers<[1], [0], [0], [1], [0, 0, 1, 1], [], []>} : vector<1x256xbf16>, vector<256x128xbf16>, vector<1x128xf32> -> vector<1x128xf32>
      %c0_68 = arith.constant 0 : index
      %c0_69 = arith.constant 0 : index
      %91 = vector.load %arg15[%c0_68, %c0_69] : memref<1x128xf32, #tpu.memory_space<vmem>>, vector<1x128xf32>
      %92 = arith.addf %90, %91 : vector<1x128xf32>
      %c0_70 = arith.constant 0 : index
      %c0_71 = arith.constant 0 : index
      %c0_72 = arith.constant 0 : index
      %93 = vector.load %arg16[%c0_70, %c0_71, %c0_72] : memref<1x1x128xf32, #tpu.memory_space<vmem>>, vector<1x1x128xf32>
      %94 = vector.shape_cast %93 : vector<1x1x128xf32> to vector<1x128xf32>
      %95 = vector.shape_cast %92 : vector<1x128xf32> to vector<1x1x128xf32>
      tpu.vector_store %arg16[%c0_70, %c0_71, %c0_72], %95 {strides = array<i32>} : memref<1x1x128xf32, #tpu.memory_space<vmem>>, vector<1x1x128xf32>,
    } else {
    }
    return
  }
  func.func @transform_0(%arg0: i32, %arg1: i32) -> (i32, i32, i32) {
    %c0_i32 = arith.constant 0 : i32
    %c0_i32_0 = arith.constant 0 : i32
    return %arg0, %arg1, %c0_i32 : i32, i32, i32
  }
  func.func @transform_1(%arg0: i32, %arg1: i32) -> (i32, i32) {
    %c0_i32 = arith.constant 0 : i32
    %c0_i32_0 = arith.constant 0 : i32
    %c0_i32_1 = arith.constant 0 : i32
    return %c0_i32, %c0_i32_0 : i32, i32
  }
  func.func @transform_2(%arg0: i32, %arg1: i32) -> (i32, i32) {
    %c0_i32 = arith.constant 0 : i32
    %c0_i32_0 = arith.constant 0 : i32
    %c0_i32_1 = arith.constant 0 : i32
    return %c0_i32, %c0_i32_0 : i32, i32
  }
  func.func @transform_3(%arg0: i32, %arg1: i32) -> (i32, i32) {
    %c0_i32 = arith.constant 0 : i32
    %c0_i32_0 = arith.constant 0 : i32
    %c0_i32_1 = arith.constant 0 : i32
    return %c0_i32, %c0_i32_0 : i32, i32
  }
  func.func @transform_4(%arg0: i32, %arg1: i32) -> (i32, i32) {
    %c0_i32 = arith.constant 0 : i32
    %c0_i32_0 = arith.constant 0 : i32
    %c0_i32_1 = arith.constant 0 : i32
    return %c0_i32, %c0_i32_0 : i32, i32
  }
  func.func @transform_5(%arg0: i32, %arg1: i32) -> (i32, i32) {
    %c0_i32 = arith.constant 0 : i32
    %c0_i32_0 = arith.constant 0 : i32
    %c0_i32_1 = arith.constant 0 : i32
    return %c0_i32, %c0_i32_0 : i32, i32
  }
  func.func @transform_6(%arg0: i32, %arg1: i32) -> (i32, i32) {
    %c0_i32 = arith.constant 0 : i32
    %c0_i32_0 = arith.constant 0 : i32
    %c0_i32_1 = arith.constant 0 : i32
    return %c0_i32, %c0_i32_0 : i32, i32
  }
  func.func @transform_7(%arg0: i32, %arg1: i32) -> (i32, i32) {
    %c0_i32 = arith.constant 0 : i32
    %c0_i32_0 = arith.constant 0 : i32
    %c0_i32_1 = arith.constant 0 : i32
    return %c0_i32, %c0_i32_0 : i32, i32
  }
  func.func @transform_8(%arg0: i32, %arg1: i32) -> (i32, i32) {
    %c0_i32 = arith.constant 0 : i32
    %c0_i32_0 = arith.constant 0 : i32
    %c0_i32_1 = arith.constant 0 : i32
    return %c0_i32, %c0_i32_0 : i32, i32
  }
  func.func @transform_9(%arg0: i32, %arg1: i32) -> (i32, i32) {
    %c0_i32 = arith.constant 0 : i32
    %c0_i32_0 = arith.constant 0 : i32
    %c0_i32_1 = arith.constant 0 : i32
    return %c0_i32, %c0_i32_0 : i32, i32
  }
  func.func @transform_10(%arg0: i32, %arg1: i32) -> (i32, i32) {
    %c0_i32 = arith.constant 0 : i32
    %c0_i32_0 = arith.constant 0 : i32
    %c0_i32_1 = arith.constant 0 : i32
    return %c0_i32, %c0_i32_0 : i32, i32
  }
  func.func @transform_11(%arg0: i32, %arg1: i32) -> (i32, i32) {
    %c0_i32 = arith.constant 0 : i32
    %c0_i32_0 = arith.constant 0 : i32
    %c0_i32_1 = arith.constant 0 : i32
    return %c0_i32, %c0_i32_0 : i32, i32
  }
  func.func @transform_12(%arg0: i32, %arg1: i32) -> (i32, i32) {
    %c0_i32 = arith.constant 0 : i32
    %c0_i32_0 = arith.constant 0 : i32
    %c0_i32_1 = arith.constant 0 : i32
    return %c0_i32, %c0_i32_0 : i32, i32
  }
  func.func @transform_13(%arg0: i32, %arg1: i32) -> (i32, i32) {
    %c0_i32 = arith.constant 0 : i32
    %c0_i32_0 = arith.constant 0 : i32
    %c0_i32_1 = arith.constant 0 : i32
    return %c0_i32, %c0_i32_0 : i32, i32
  }
  func.func @transform_14(%arg0: i32, %arg1: i32) -> (i32, i32, i32) {
    %c0_i32 = arith.constant 0 : i32
    %c0_i32_0 = arith.constant 0 : i32
    %c0_i32_1 = arith.constant 0 : i32
    return %arg0, %c0_i32, %c0_i32_0 : i32, i32, i32
  }
}

</mosaic_0001>

<llo_original>
// kernel: tpu_custom_call.1
$region0: #{tpu_custom_call.1}
  #allocation0 [shape = 'u32[]', space=smem, size = 0x4, offset = 0x4, fixed_abs, tag = 'smem constant byte address 0x4 - core index']
  #allocation1 [shape = 'u32[144,128]{1,0:T(1,128)}', space=vmem, size = 0x12000, scoped, tag = 'internal scratch']
  #allocation2 [shape = 'f32[1,1024]{1,0:T(1,128)}', space=vmem, size = 0x1000, scoped, tag = 'scratch operand']
  %s0 = inlined_call_operand.vmem [shape: f32[2,16,3], index: 0, kind: input, shape index: {}]
  %s1 = inlined_call_operand.hbm [shape: f32[3,64], index: 1, kind: input, shape index: {}]
  %s2 = inlined_call_operand.hbm [shape: f32[1,64], index: 2, kind: input, shape index: {}]
  %s3 = inlined_call_operand.vmem [shape: bf16[64,128], index: 3, kind: input, shape index: {}]
  %s4 = inlined_call_operand.hbm [shape: f32[1,128], index: 4, kind: input, shape index: {}]
  %s5 = inlined_call_operand.hbm [shape: bf16[128,1024], index: 5, kind: input, shape index: {}]
  %s6 = inlined_call_operand.vmem [shape: f32[1,1024], index: 6, kind: input, shape index: {}]
  %s7 = inlined_call_operand.vmem [shape: f32[1,1024], index: 7, kind: input, shape index: {}]
  %s8 = inlined_call_operand.hbm [shape: bf16[1024,512], index: 8, kind: input, shape index: {}]
  %s9 = inlined_call_operand.vmem [shape: f32[1,512], index: 9, kind: input, shape index: {}]
  %s10 = inlined_call_operand.hbm [shape: bf16[512,256], index: 10, kind: input, shape index: {}]
  %s11 = inlined_call_operand.vmem [shape: f32[1,256], index: 11, kind: input, shape index: {}]
  %s12 = inlined_call_operand.hbm [shape: bf16[256,128], index: 12, kind: input, shape index: {}]
  %s13 = inlined_call_operand.vmem [shape: f32[1,128], index: 13, kind: input, shape index: {}]
  %s14 = inlined_call_operand.hbm [shape: f32[2,1,128], index: 14, kind: output, shape index: {}]
  %s15 = sld [smem:[#allocation0]]
  $region125: #{tpu_custom_call.1} parent=0
    _
  %s17 = ssub.s32 1, %s15
  %s18 = scalar_select 0, %s17, %s15
  $region1: #{tpu_custom_call.1} parent=0
    #allocation3 [shape = 'u8[2048]{0}', space=vmem, size = 0x800, scoped, tag = 'input window, operand 1, single buffered']
    #allocation4 [shape = 's32[2]{0}', space=sflag, size = 0x8, scoped, tag = 'scoped memory for tpu_custom_call.1']
    #allocation5 [shape = 's32[2]{0}', space=sflag, size = 0x8, scoped, tag = 'scoped memory for tpu_custom_call.1']
    #allocation6 [shape = 'u8[512]{0}', space=vmem, size = 0x400, scoped, tag = 'input window, operand 2, single buffered']
    #allocation7 [shape = 's32[1]{0}', space=sflag, size = 0x4, scoped, tag = 'scoped memory for tpu_custom_call.1']
    #allocation8 [shape = 'u8[512]{0}', space=vmem, size = 0x400, scoped, tag = 'input window, operand 4, single buffered']
    #allocation9 [shape = 'u8[262144]{0}', space=vmem, size = 0x40000, scoped, tag = 'input window, operand 5, single buffered']
    #allocation10 [shape = 's32[1]{0}', space=sflag, size = 0x4, scoped, tag = 'scoped memory for tpu_custom_call.1']
    #allocation11 [shape = 'u8[1048576]{0}', space=vmem, size = 0x100000, scoped, tag = 'input window, operand 8, single buffered']
    #allocation12 [shape = 'u8[262144]{0}', space=vmem, size = 0x40000, scoped, tag = 'input window, operand 10, single buffered']
    #allocation13 [shape = 's32[1]{0}', space=sflag, size = 0x4, scoped, tag = 'scoped memory for tpu_custom_call.1']
    #allocation14 [shape = 'u8[65536]{0}', space=vmem, size = 0x10000, scoped, tag = 'input window, operand 12, single buffered']
    #allocation15 [shape = 'u8[1024]{0}', space=vmem, size = 0x400, scoped, tag = 'output window, operand 0']
    %19 = vsyncpa [#allocation4], 0
    %20 = vsyncpa [#allocation7], 0
    %21 = vsyncpa [#allocation10], 0
    %22 = vsyncpa [#allocation13], 0
    %23 = vsyncpa [#allocation5], 0
    %s24 = scalar_lea.sflag [#allocation5], 1
    %25 = vsyncpa %s24, 0
    loop: start=0, step=1, limit=4
    $region2: #{tpu_custom_call.1} parent=1 // loop_pre_header
      _
    $region3: #{tpu_custom_call.1} parent=1 // loop_header
      %s27 = sphi 0, %s31
      %p28 = scmp.ge.s32.totalorder %s27, 4
      %s34 = sphi 0, %s46
      %s35 = sphi 0, %s42
      %s36 = sphi 0, %s34
      %s37 = sphi 0, %s35
      %s38 = sphi 0, %s36
      %s39 = sphi 0, %s37
      %s51 = sphi 0, %s53
      %s54 = sphi 0, %s51
      %s55 = sphi 0, %s54
      %s71 = sphi 0, %s55
      %s75 = sphi 0, %s75
      %s77 = sphi 0, %s75
      %s78 = sphi 0, %s77
      %s92 = sphi 0, %s78
      %s96 = sphi 0, %s96
      %s98 = sphi 0, %s96
      %s99 = sphi 0, %s98
      %s113 = sphi 0, %s99
      %s117 = sphi 0, %s117
      %s119 = sphi 0, %s117
      %s120 = sphi 0, %s119
      %s134 = sphi 0, %s120
      %s138 = sphi 0, %s138
      %s140 = sphi 0, %s138
      %s141 = sphi 0, %s140
      %s155 = sphi 0, %s141
      %s159 = sphi 0, %s159
      %s161 = sphi 0, %s159
      %s162 = sphi 0, %s161
      %s176 = sphi 0, %s162
      %s180 = sphi 0, %s180
      %s182 = sphi 0, %s180
      %s183 = sphi 0, %s182
      %s197 = sphi 0, %s183
      %s201 = sphi 0, %s201
      %s203 = sphi 0, %s201
      %s204 = sphi 0, %s203
      %s218 = sphi 0, %s204
      %s222 = sphi 0, %s222
      %s224 = sphi 0, %s222
      %s225 = sphi 0, %s224
      %s239 = sphi 0, %s225
      %s243 = sphi 0, %s243
      %s245 = sphi 0, %s243
      %s246 = sphi 0, %s245
      %s260 = sphi 0, %s246
      %s264 = sphi 0, %s264
      %s266 = sphi 0, %s264
      %s267 = sphi 0, %s266
      %s281 = sphi 0, %s267
      %s285 = sphi 0, %s285
      %s287 = sphi 0, %s285
      %s288 = sphi 0, %s287
      %s302 = sphi 0, %s288
      %s306 = sphi 0, %s306
      %s308 = sphi 0, %s306
      %s309 = sphi 0, %s308
      %s323 = sphi 0, %s309
      %s327 = sphi 0, %s327
      %s329 = sphi 0, %s327
      %s330 = sphi 0, %s329
      %s344 = sphi 0, %s330
      %s350 = sphi 0, %s352
      %s353 = sphi 0, %s350
      %s354 = sphi 0, %s353
      %s370 = sphi 0, %s354
    $region4: #{tpu_custom_call.1} parent=1 // loop_header_branch
      %30 = sbr.rel (%p28) target = $region8
    $region5: #{tpu_custom_call.1} parent=1 // loop_body
      %s32 = ssub.s32 %s27, 1
      %s33 = ssub.s32 %s27, 2
      %s40 = sadd.s32 1, %s35
      %p41 = scmp.ge.s32.totalorder %s40, 1
      %s42 = scalar_select %p41, 0, %s40
      %s43 = sadd.s32 1, %s34
      %s44 = scalar_select %p41, %s43, %s34
      %p45 = scmp.ge.s32.totalorder %s44, 2
      %s46 = scalar_select %p45, 0, %s44
      %s47 = ssub.s32 %s34, %s46
      %s48 = ssub.s32 %s35, %s42
      %s49 = sor.u32 %s47, %s48
      %p50 = scmp.eq.s32.totalorder %s49, 0
      %s52 = sadd.s32 %s51, 1
      %s53 = scalar_select %p50, %s51, %s52
      %p56 = pneg %p50
      %p57 = scmp.eq.s32.totalorder %s27, 1
      %p58 = por %p56, %p57
      %p59 = scmp.ne.s32.totalorder %s51, %s54
      %p60 = scmp.eq.s32.totalorder %s27, 0
      %p61 = por %p59, %p60
      %p62 = scmp.ne.s32.totalorder %s51, %s54
      %p63 = scmp.eq.s32.totalorder %s32, 1
      %p64 = por %p62, %p63
      %p65 = scmp.ne.s32.totalorder %s54, %s55
      %p66 = scmp.eq.s32.totalorder %s32, 0
      %p67 = por %p65, %p66
      %p68 = scmp.ne.s32.totalorder %s54, %s55
      %p69 = scmp.eq.s32.totalorder %s33, 1
      %p70 = por %p68, %p69
      %p72 = scmp.ne.s32.totalorder %s55, %s71
      %p73 = scmp.eq.s32.totalorder %s33, 0
      %p74 = por %p72, %p73
      %s76 = sadd.s32 %s75, 1
      %p79 = scmp.eq.s32.totalorder %s27, 1
      %p80 = scmp.ne.s32.totalorder %s75, %s77
      %p81 = scmp.eq.s32.totalorder %s27, 0
      %p82 = por %p80, %p81
      %p83 = scmp.ne.s32.totalorder %s75, %s77
      %p84 = scmp.eq.s32.totalorder %s32, 1
      %p85 = por %p83, %p84
      %p86 = scmp.ne.s32.totalorder %s77, %s78
      %p87 = scmp.eq.s32.totalorder %s32, 0
      %p88 = por %p86, %p87
      %p89 = scmp.ne.s32.totalorder %s77, %s78
      %p90 = scmp.eq.s32.totalorder %s33, 1
      %p91 = por %p89, %p90
      %p93 = scmp.ne.s32.totalorder %s78, %s92
      %p94 = scmp.eq.s32.totalorder %s33, 0
      %p95 = por %p93, %p94
      %s97 = sadd.s32 %s96, 1
      %p100 = scmp.eq.s32.totalorder %s27, 1
      %p101 = scmp.ne.s32.totalorder %s96, %s98
      %p102 = scmp.eq.s32.totalorder %s27, 0
      %p103 = por %p101, %p102
      %p104 = scmp.ne.s32.totalorder %s96, %s98
      %p105 = scmp.eq.s32.totalorder %s32, 1
      %p106 = por %p104, %p105
      %p107 = scmp.ne.s32.totalorder %s98, %s99
      %p108 = scmp.eq.s32.totalorder %s32, 0
      %p109 = por %p107, %p108
      %p110 = scmp.ne.s32.totalorder %s98, %s99
      %p111 = scmp.eq.s32.totalorder %s33, 1
      %p112 = por %p110, %p111
      %p114 = scmp.ne.s32.totalorder %s99, %s113
      %p115 = scmp.eq.s32.totalorder %s33, 0
      %p116 = por %p114, %p115
      %s118 = sadd.s32 %s117, 1
      %p121 = scmp.eq.s32.totalorder %s27, 1
      %p122 = scmp.ne.s32.totalorder %s117, %s119
      %p123 = scmp.eq.s32.totalorder %s27, 0
      %p124 = por %p122, %p123
      %p125 = scmp.ne.s32.totalorder %s117, %s119
      %p126 = scmp.eq.s32.totalorder %s32, 1
      %p127 = por %p125, %p126
      %p128 = scmp.ne.s32.totalorder %s119, %s120
      %p129 = scmp.eq.s32.totalorder %s32, 0
      %p130 = por %p128, %p129
      %p131 = scmp.ne.s32.totalorder %s119, %s120
      %p132 = scmp.eq.s32.totalorder %s33, 1
      %p133 = por %p131, %p132
      %p135 = scmp.ne.s32.totalorder %s120, %s134
      %p136 = scmp.eq.s32.totalorder %s33, 0
      %p137 = por %p135, %p136
      %s139 = sadd.s32 %s138, 1
      %p142 = scmp.eq.s32.totalorder %s27, 1
      %p143 = scmp.ne.s32.totalorder %s138, %s140
      %p144 = scmp.eq.s32.totalorder %s27, 0
      %p145 = por %p143, %p144
      %p146 = scmp.ne.s32.totalorder %s138, %s140
      %p147 = scmp.eq.s32.totalorder %s32, 1
      %p148 = por %p146, %p147
      %p149 = scmp.ne.s32.totalorder %s140, %s141
      %p150 = scmp.eq.s32.totalorder %s32, 0
      %p151 = por %p149, %p150
      %p152 = scmp.ne.s32.totalorder %s140, %s141
      %p153 = scmp.eq.s32.totalorder %s33, 1
      %p154 = por %p152, %p153
      %p156 = scmp.ne.s32.totalorder %s141, %s155
      %p157 = scmp.eq.s32.totalorder %s33, 0
      %p158 = por %p156, %p157
      %s160 = sadd.s32 %s159, 1
      %p163 = scmp.eq.s32.totalorder %s27, 1
      %p164 = scmp.ne.s32.totalorder %s159, %s161
      %p165 = scmp.eq.s32.totalorder %s27, 0
      %p166 = por %p164, %p165
      %p167 = scmp.ne.s32.totalorder %s159, %s161
      %p168 = scmp.eq.s32.totalorder %s32, 1
      %p169 = por %p167, %p168
      %p170 = scmp.ne.s32.totalorder %s161, %s162
      %p171 = scmp.eq.s32.totalorder %s32, 0
      %p172 = por %p170, %p171
      %p173 = scmp.ne.s32.totalorder %s161, %s162
      %p174 = scmp.eq.s32.totalorder %s33, 1
      %p175 = por %p173, %p174
      %p177 = scmp.ne.s32.totalorder %s162, %s176
      %p178 = scmp.eq.s32.totalorder %s33, 0
      %p179 = por %p177, %p178
      %s181 = sadd.s32 %s180, 1
      %p184 = scmp.eq.s32.totalorder %s27, 1
      %p185 = scmp.ne.s32.totalorder %s180, %s182
      %p186 = scmp.eq.s32.totalorder %s27, 0
      %p187 = por %p185, %p186
      %p188 = scmp.ne.s32.totalorder %s180, %s182
      %p189 = scmp.eq.s32.totalorder %s32, 1
      %p190 = por %p188, %p189
      %p191 = scmp.ne.s32.totalorder %s182, %s183
      %p192 = scmp.eq.s32.totalorder %s32, 0
      %p193 = por %p191, %p192
      %p194 = scmp.ne.s32.totalorder %s182, %s183
      %p195 = scmp.eq.s32.totalorder %s33, 1
      %p196 = por %p194, %p195
      %p198 = scmp.ne.s32.totalorder %s183, %s197
      %p199 = scmp.eq.s32.totalorder %s33, 0
      %p200 = por %p198, %p199
      %s202 = sadd.s32 %s201, 1
      %p205 = scmp.eq.s32.totalorder %s27, 1
      %p206 = scmp.ne.s32.totalorder %s201, %s203
      %p207 = scmp.eq.s32.totalorder %s27, 0
      %p208 = por %p206, %p207
      %p209 = scmp.ne.s32.totalorder %s201, %s203
      %p210 = scmp.eq.s32.totalorder %s32, 1
      %p211 = por %p209, %p210
      %p212 = scmp.ne.s32.totalorder %s203, %s204
      %p213 = scmp.eq.s32.totalorder %s32, 0
      %p214 = por %p212, %p213
      %p215 = scmp.ne.s32.totalorder %s203, %s204
      %p216 = scmp.eq.s32.totalorder %s33, 1
      %p217 = por %p215, %p216
      %p219 = scmp.ne.s32.totalorder %s204, %s218
      %p220 = scmp.eq.s32.totalorder %s33, 0
      %p221 = por %p219, %p220
      %s223 = sadd.s32 %s222, 1
      %p226 = scmp.eq.s32.totalorder %s27, 1
      %p227 = scmp.ne.s32.totalorder %s222, %s224
      %p228 = scmp.eq.s32.totalorder %s27, 0
      %p229 = por %p227, %p228
      %p230 = scmp.ne.s32.totalorder %s222, %s224
      %p231 = scmp.eq.s32.totalorder %s32, 1
      %p232 = por %p230, %p231
      %p233 = scmp.ne.s32.totalorder %s224, %s225
      %p234 = scmp.eq.s32.totalorder %s32, 0
      %p235 = por %p233, %p234
      %p236 = scmp.ne.s32.totalorder %s224, %s225
      %p237 = scmp.eq.s32.totalorder %s33, 1
      %p238 = por %p236, %p237
      %p240 = scmp.ne.s32.totalorder %s225, %s239
      %p241 = scmp.eq.s32.totalorder %s33, 0
      %p242 = por %p240, %p241
      %s244 = sadd.s32 %s243, 1
      %p247 = scmp.eq.s32.totalorder %s27, 1
      %p248 = scmp.ne.s32.totalorder %s243, %s245
      %p249 = scmp.eq.s32.totalorder %s27, 0
      %p250 = por %p248, %p249
      %p251 = scmp.ne.s32.totalorder %s243, %s245
      %p252 = scmp.eq.s32.totalorder %s32, 1
      %p253 = por %p251, %p252
      %p254 = scmp.ne.s32.totalorder %s245, %s246
      %p255 = scmp.eq.s32.totalorder %s32, 0
      %p256 = por %p254, %p255
      %p257 = scmp.ne.s32.totalorder %s245, %s246
      %p258 = scmp.eq.s32.totalorder %s33, 1
      %p259 = por %p257, %p258
      %p261 = scmp.ne.s32.totalorder %s246, %s260
      %p262 = scmp.eq.s32.totalorder %s33, 0
      %p263 = por %p261, %p262
      %s265 = sadd.s32 %s264, 1
      %p268 = scmp.eq.s32.totalorder %s27, 1
      %p269 = scmp.ne.s32.totalorder %s264, %s266
      %p270 = scmp.eq.s32.totalorder %s27, 0
      %p271 = por %p269, %p270
      %p272 = scmp.ne.s32.totalorder %s264, %s266
      %p273 = scmp.eq.s32.totalorder %s32, 1
      %p274 = por %p272, %p273
      %p275 = scmp.ne.s32.totalorder %s266, %s267
      %p276 = scmp.eq.s32.totalorder %s32, 0
      %p277 = por %p275, %p276
      %p278 = scmp.ne.s32.totalorder %s266, %s267
      %p279 = scmp.eq.s32.totalorder %s33, 1
      %p280 = por %p278, %p279
      %p282 = scmp.ne.s32.totalorder %s267, %s281
      %p283 = scmp.eq.s32.totalorder %s33, 0
      %p284 = por %p282, %p283
      %s286 = sadd.s32 %s285, 1
      %p289 = scmp.eq.s32.totalorder %s27, 1
      %p290 = scmp.ne.s32.totalorder %s285, %s287
      %p291 = scmp.eq.s32.totalorder %s27, 0
      %p292 = por %p290, %p291
      %p293 = scmp.ne.s32.totalorder %s285, %s287
      %p294 = scmp.eq.s32.totalorder %s32, 1
      %p295 = por %p293, %p294
      %p296 = scmp.ne.s32.totalorder %s287, %s288
      %p297 = scmp.eq.s32.totalorder %s32, 0
      %p298 = por %p296, %p297
      %p299 = scmp.ne.s32.totalorder %s287, %s288
      %p300 = scmp.eq.s32.totalorder %s33, 1
      %p301 = por %p299, %p300
      %p303 = scmp.ne.s32.totalorder %s288, %s302
      %p304 = scmp.eq.s32.totalorder %s33, 0
      %p305 = por %p303, %p304
      %s307 = sadd.s32 %s306, 1
      %p310 = scmp.eq.s32.totalorder %s27, 1
      %p311 = scmp.ne.s32.totalorder %s306, %s308
      %p312 = scmp.eq.s32.totalorder %s27, 0
      %p313 = por %p311, %p312
      %p314 = scmp.ne.s32.totalorder %s306, %s308
      %p315 = scmp.eq.s32.totalorder %s32, 1
      %p316 = por %p314, %p315
      %p317 = scmp.ne.s32.totalorder %s308, %s309
      %p318 = scmp.eq.s32.totalorder %s32, 0
      %p319 = por %p317, %p318
      %p320 = scmp.ne.s32.totalorder %s308, %s309
      %p321 = scmp.eq.s32.totalorder %s33, 1
      %p322 = por %p320, %p321
      %p324 = scmp.ne.s32.totalorder %s309, %s323
      %p325 = scmp.eq.s32.totalorder %s33, 0
      %p326 = por %p324, %p325
      %s328 = sadd.s32 %s327, 1
      %p331 = scmp.eq.s32.totalorder %s27, 1
      %p332 = scmp.ne.s32.totalorder %s327, %s329
      %p333 = scmp.eq.s32.totalorder %s27, 0
      %p334 = por %p332, %p333
      %p335 = scmp.ne.s32.totalorder %s327, %s329
      %p336 = scmp.eq.s32.totalorder %s32, 1
      %p337 = por %p335, %p336
      %p338 = scmp.ne.s32.totalorder %s329, %s330
      %p339 = scmp.eq.s32.totalorder %s32, 0
      %p340 = por %p338, %p339
      %p341 = scmp.ne.s32.totalorder %s329, %s330
      %p342 = scmp.eq.s32.totalorder %s33, 1
      %p343 = por %p341, %p342
      %p345 = scmp.ne.s32.totalorder %s330, %s344
      %p346 = scmp.eq.s32.totalorder %s33, 0
      %p347 = por %p345, %p346
      %s348 = ssub.s32 %s34, %s46
      %p349 = scmp.eq.s32.totalorder %s348, 0
      %s351 = sadd.s32 %s350, 1
      %s352 = scalar_select %p349, %s350, %s351
      %p355 = pneg %p349
      %p356 = scmp.eq.s32.totalorder %s27, 1
      %p357 = por %p355, %p356
      %p358 = scmp.ne.s32.totalorder %s350, %s353
      %p359 = scmp.eq.s32.totalorder %s27, 0
      %p360 = por %p358, %p359
      %p361 = scmp.ne.s32.totalorder %s350, %s353
      %p362 = scmp.eq.s32.totalorder %s32, 1
      %p363 = por %p361, %p362
      %p364 = scmp.ne.s32.totalorder %s353, %s354
      %p365 = scmp.eq.s32.totalorder %s32, 0
      %p366 = por %p364, %p365
      %p367 = scmp.ne.s32.totalorder %s353, %s354
      %p368 = scmp.eq.s32.totalorder %s33, 1
      %p369 = por %p367, %p368
      %p371 = scmp.ne.s32.totalorder %s354, %s370
      %p372 = scmp.eq.s32.totalorder %s33, 0
      %p373 = por %p371, %p372
      %p374 = scmp.le.s32.totalorder 1, %s27
      %p375 = scmp.lt.s32.totalorder %s27, 3
      %p376 = pnand %p374, %p375
      %p377 = pneg %p376
      // Predicated region
      $region9: #{tpu_custom_call.1} parent=5 // pred_check
        _
      $region10: #{tpu_custom_call.1} parent=5 // pred_check_branch
        %379 = sbr.rel (%p376) target = $region12
      $region11: #{tpu_custom_call.1} parent=5 // pred_region
        %s380 = ssub.s32 %s27, 1
        // Predicated region
        $region13: #{tpu_custom_call.1} parent=11 // pred_check
          %p381 = pneg %p88
        $region14: #{tpu_custom_call.1} parent=11 // pred_check_branch
          %383 = sbr.rel (%p381) target = $region16
        $region15: #{tpu_custom_call.1} parent=11 // pred_region
          %s385 = ssub.s32 64, 64
          %386 = vsyncadd [#allocation4], %s385
          %s388 = sshll.u32 [#allocation3], 4
          %s389 = int_to_ptr.vmem [resolvable:$true] %s388
          %391 = dma.hbm_to_vmem [thread:$0]  %s1, 64, %s389, [#allocation4]
        $region16: #{tpu_custom_call.1} parent=11 // pred_fallthru
          _
        // Predicated region
        $region17: #{tpu_custom_call.1} parent=11 // pred_check
          %p392 = pneg %p109
        $region18: #{tpu_custom_call.1} parent=11 // pred_check_branch
          %394 = sbr.rel (%p392) target = $region20
        $region19: #{tpu_custom_call.1} parent=11 // pred_region
          %s396 = ssub.s32 16, 16
          %397 = vsyncadd [#allocation7], %s396
          %s399 = sshll.u32 [#allocation6], 4
          %s400 = int_to_ptr.vmem [resolvable:$true] %s399
          %402 = dma.hbm_to_vmem [thread:$0]  %s2, 16, %s400, [#allocation7]
        $region20: #{tpu_custom_call.1} parent=11 // pred_fallthru
          _
        // Predicated region
        $region21: #{tpu_custom_call.1} parent=11 // pred_check
          %p403 = pneg %p130
        $region22: #{tpu_custom_call.1} parent=11 // pred_check_branch
          %405 = sbr.rel (%p403) target = $region24
        $region23: #{tpu_custom_call.1} parent=11 // pred_region
          _
        $region24: #{tpu_custom_call.1} parent=11 // pred_fallthru
          _
        // Predicated region
        $region25: #{tpu_custom_call.1} parent=11 // pred_check
          %p406 = pneg %p151
        $region26: #{tpu_custom_call.1} parent=11 // pred_check_branch
          %408 = sbr.rel (%p406) target = $region28
        $region27: #{tpu_custom_call.1} parent=11 // pred_region
          %s410 = ssub.s32 16, 16
          %411 = vsyncadd [#allocation7], %s410
          %s413 = sshll.u32 [#allocation8], 4
          %s414 = int_to_ptr.vmem [resolvable:$true] %s413
          %416 = dma.hbm_to_vmem [thread:$0]  %s4, 16, %s414, [#allocation7]
        $region28: #{tpu_custom_call.1} parent=11 // pred_fallthru
          _
        // Predicated region
        $region29: #{tpu_custom_call.1} parent=11 // pred_check
          %p417 = pneg %p172
        $region30: #{tpu_custom_call.1} parent=11 // pred_check_branch
          %419 = sbr.rel (%p417) target = $region32
        $region31: #{tpu_custom_call.1} parent=11 // pred_region
          %s421 = ssub.s32 8192, 8192
          %422 = vsyncadd [#allocation10], %s421
          %s423 = sshll.u32 [#allocation9], 4
          %s424 = int_to_ptr.vmem [resolvable:$true] %s423
          %429 = dma.hbm_to_vmem [thread:$0]  %s5, 8192, %s424, [#allocation10], 512, 512, 32
        $region32: #{tpu_custom_call.1} parent=11 // pred_fallthru
          _
        // Predicated region
        $region33: #{tpu_custom_call.1} parent=11 // pred_check
          %p430 = pneg %p193
        $region34: #{tpu_custom_call.1} parent=11 // pred_check_branch
          %432 = sbr.rel (%p430) target = $region36
        $region35: #{tpu_custom_call.1} parent=11 // pred_region
          _
        $region36: #{tpu_custom_call.1} parent=11 // pred_fallthru
          _
        // Predicated region
        $region37: #{tpu_custom_call.1} parent=11 // pred_check
          %p433 = pneg %p214
        $region38: #{tpu_custom_call.1} parent=11 // pred_check_branch
          %435 = sbr.rel (%p433) target = $region40
        $region39: #{tpu_custom_call.1} parent=11 // pred_region
          _
        $region40: #{tpu_custom_call.1} parent=11 // pred_fallthru
          _
        // Predicated region
        $region41: #{tpu_custom_call.1} parent=11 // pred_check
          %p436 = pneg %p235
        $region42: #{tpu_custom_call.1} parent=11 // pred_check_branch
          %438 = sbr.rel (%p436) target = $region44
        $region43: #{tpu_custom_call.1} parent=11 // pred_region
          %s440 = ssub.s32 32768, 32768
          %441 = vsyncadd [#allocation10], %s440
          %s442 = sshll.u32 [#allocation11], 4
          %s443 = int_to_ptr.vmem [resolvable:$true] %s442
          %448 = dma.hbm_to_vmem [thread:$0]  %s8, 32768, %s443, [#allocation10], 256, 256, 16
        $region44: #{tpu_custom_call.1} parent=11 // pred_fallthru
          _
        // Predicated region
        $region45: #{tpu_custom_call.1} parent=11 // pred_check
          %p449 = pneg %p256
        $region46: #{tpu_custom_call.1} parent=11 // pred_check_branch
          %451 = sbr.rel (%p449) target = $region48
        $region47: #{tpu_custom_call.1} parent=11 // pred_region
          _
        $region48: #{tpu_custom_call.1} parent=11 // pred_fallthru
          _
        // Predicated region
        $region49: #{tpu_custom_call.1} parent=11 // pred_check
          %p452 = pneg %p277
        $region50: #{tpu_custom_call.1} parent=11 // pred_check_branch
          %454 = sbr.rel (%p452) target = $region52
        $region51: #{tpu_custom_call.1} parent=11 // pred_region
          %s456 = ssub.s32 8192, 8192
          %457 = vsyncadd [#allocation13], %s456
          %s458 = sshll.u32 [#allocation12], 4
          %s459 = int_to_ptr.vmem [resolvable:$true] %s458
          %464 = dma.hbm_to_vmem [thread:$0]  %s10, 8192, %s459, [#allocation13], 128, 128, 8
        $region52: #{tpu_custom_call.1} parent=11 // pred_fallthru
          _
        // Predicated region
        $region53: #{tpu_custom_call.1} parent=11 // pred_check
          %p465 = pneg %p298
        $region54: #{tpu_custom_call.1} parent=11 // pred_check_branch
          %467 = sbr.rel (%p465) target = $region56
        $region55: #{tpu_custom_call.1} parent=11 // pred_region
          _
        $region56: #{tpu_custom_call.1} parent=11 // pred_fallthru
          _
        // Predicated region
        $region57: #{tpu_custom_call.1} parent=11 // pred_check
          %p468 = pneg %p319
        $region58: #{tpu_custom_call.1} parent=11 // pred_check_branch
          %470 = sbr.rel (%p468) target = $region60
        $region59: #{tpu_custom_call.1} parent=11 // pred_region
          %s472 = ssub.s32 2048, 2048
          %473 = vsyncadd [#allocation13], %s472
          %s474 = sshll.u32 [#allocation14], 4
          %s475 = int_to_ptr.vmem [resolvable:$true] %s474
          %480 = dma.hbm_to_vmem [thread:$0]  %s12, 2048, %s475, [#allocation13], 64, 64, 4
        $region60: #{tpu_custom_call.1} parent=11 // pred_fallthru
          _
        // Predicated region
        $region61: #{tpu_custom_call.1} parent=11 // pred_check
          %p481 = pneg %p340
        $region62: #{tpu_custom_call.1} parent=11 // pred_check_branch
          %483 = sbr.rel (%p481) target = $region64
        $region63: #{tpu_custom_call.1} parent=11 // pred_region
          _
        $region64: #{tpu_custom_call.1} parent=11 // pred_fallthru
          _
      $region12: #{tpu_custom_call.1} parent=5 // pred_fallthru
        _
      %p484 = scmp.lt.s32.totalorder %s27, 2
      // Predicated region
      $region65: #{tpu_custom_call.1} parent=5 // pred_check
        %p485 = pneg %p484
      $region66: #{tpu_custom_call.1} parent=5 // pred_check_branch
        %487 = sbr.rel (%p485) target = $region68
      $region67: #{tpu_custom_call.1} parent=5 // pred_region
        // Predicated region
        $region69: #{tpu_custom_call.1} parent=67 // pred_check
          %p488 = pneg %p61
        $region70: #{tpu_custom_call.1} parent=67 // pred_check_branch
          %490 = sbr.rel (%p488) target = $region72
        $region71: #{tpu_custom_call.1} parent=67 // pred_region
          %s491 = smul.u32 2, %s35
          %p492 = scmp.lt.s32.totalorder %s34, 1
          %s493 = scalar_select %p492, %s34, 1
          %p494 = scmp.lt.s32.totalorder %s491, 1
          %s495 = scalar_select %p494, %s491, 1
          %s496 = smul.addr %s493, 2
          %s497 = sadd.s32 %s495, %s496
          %s498 = smul.addr %s497, 8
          %s499 = scalar_lea.vmem %s0, %s498
          %s500 = smul.u32 2, %s35
        $region72: #{tpu_custom_call.1} parent=67 // pred_fallthru
          _
      $region68: #{tpu_custom_call.1} parent=5 // pred_fallthru
        _
      %p501 = scmp.le.s32.totalorder 1, %s27
      %p502 = scmp.lt.s32.totalorder %s27, 3
      %p503 = pnand %p501, %p502
      %p504 = pneg %p503
      // Predicated region
      $region73: #{tpu_custom_call.1} parent=5 // pred_check
        _
      $region74: #{tpu_custom_call.1} parent=5 // pred_check_branch
        %506 = sbr.rel (%p503) target = $region76
      $region75: #{tpu_custom_call.1} parent=5 // pred_region
        %s507 = ssub.s32 %s27, 1
        // Predicated region
        $region77: #{tpu_custom_call.1} parent=75 // pred_check
          %p508 = pneg %p88
        $region78: #{tpu_custom_call.1} parent=75 // pred_check_branch
          %510 = sbr.rel (%p508) target = $region80
        $region79: #{tpu_custom_call.1} parent=75 // pred_region
          %511 = dma.done [#allocation4], 64
        $region80: #{tpu_custom_call.1} parent=75 // pred_fallthru
          _
        // Predicated region
        $region81: #{tpu_custom_call.1} parent=75 // pred_check
          %p512 = pneg %p109
        $region82: #{tpu_custom_call.1} parent=75 // pred_check_branch
          %514 = sbr.rel (%p512) target = $region84
        $region83: #{tpu_custom_call.1} parent=75 // pred_region
          %515 = dma.done [#allocation7], 16
        $region84: #{tpu_custom_call.1} parent=75 // pred_fallthru
          _
        // Predicated region
        $region85: #{tpu_custom_call.1} parent=75 // pred_check
          %p516 = pneg %p151
        $region86: #{tpu_custom_call.1} parent=75 // pred_check_branch
          %518 = sbr.rel (%p516) target = $region88
        $region87: #{tpu_custom_call.1} parent=75 // pred_region
          %519 = dma.done [#allocation7], 16
        $region88: #{tpu_custom_call.1} parent=75 // pred_fallthru
          _
        // Predicated region
        $region89: #{tpu_custom_call.1} parent=75 // pred_check
          %p520 = pneg %p172
        $region90: #{tpu_custom_call.1} parent=75 // pred_check_branch
          %522 = sbr.rel (%p520) target = $region92
        $region91: #{tpu_custom_call.1} parent=75 // pred_region
          %523 = dma.done [#allocation10], 8192
        $region92: #{tpu_custom_call.1} parent=75 // pred_fallthru
          _
        // Predicated region
        $region93: #{tpu_custom_call.1} parent=75 // pred_check
          %p524 = pneg %p235
        $region94: #{tpu_custom_call.1} parent=75 // pred_check_branch
          %526 = sbr.rel (%p524) target = $region96
        $region95: #{tpu_custom_call.1} parent=75 // pred_region
          %527 = dma.done [#allocation10], 32768
        $region96: #{tpu_custom_call.1} parent=75 // pred_fallthru
          _
        // Predicated region
        $region97: #{tpu_custom_call.1} parent=75 // pred_check
          %p528 = pneg %p277
        $region98: #{tpu_custom_call.1} parent=75 // pred_check_branch
          %530 = sbr.rel (%p528) target = $region100
        $region99: #{tpu_custom_call.1} parent=75 // pred_region
          %531 = dma.done [#allocation13], 8192
        $region100: #{tpu_custom_call.1} parent=75 // pred_fallthru
          _
        // Predicated region
        $region101: #{tpu_custom_call.1} parent=75 // pred_check
          %p532 = pneg %p319
        $region102: #{tpu_custom_call.1} parent=75 // pred_check_branch
          %534 = sbr.rel (%p532) target = $region104
        $region103: #{tpu_custom_call.1} parent=75 // pred_region
          %535 = dma.done [#allocation13], 2048
        $region104: #{tpu_custom_call.1} parent=75 // pred_fallthru
          _
        %s536 = smul.u32 2, %s37
        %p537 = scmp.lt.s32.totalorder %s36, 1
        %s538 = scalar_select %p537, %s36, 1
        %p539 = scmp.lt.s32.totalorder %s536, 1
        %s540 = scalar_select %p539, %s536, 1
        %s541 = smul.addr %s538, 2
        %s542 = sadd.s32 %s540, %s541
        %s543 = smul.addr %s542, 8
        %s544 = scalar_lea.vmem %s0, %s543
        %p545 = pneg %p67
        %p546 = pneg %p64
        %p547 = pneg %p88
        %p548 = pneg %p85
        %p549 = pneg %p109
        %p550 = pneg %p106
        %p551 = pneg %p130
        %p552 = pneg %p127
        %p553 = pneg %p151
        %p554 = pneg %p148
        %p555 = pneg %p172
        %p556 = pneg %p169
        %p557 = pneg %p193
        %p558 = pneg %p190
        %p559 = pneg %p214
        %p560 = pneg %p211
        %p561 = pneg %p235
        %p562 = pneg %p232
        %p563 = pneg %p256
        %p564 = pneg %p253
        %p565 = pneg %p277
        %p566 = pneg %p274
        %p567 = pneg %p298
        %p568 = pneg %p295
        %p569 = pneg %p319
        %p570 = pneg %p316
        %p571 = pneg %p340
        %p572 = pneg %p337
        %p573 = pneg %p366
        %p574 = pneg %p363
        %s575 = sand.u32 %s353, 1
        %s576 = scalar_lea.sflag [#allocation5], %s575
        %s577 = sand.u32 %s353, 1
        %s578 = scalar_lea.vmem [#allocation15], %s577
        %s579 = smul.u32 2, %s37
        %p580 = scmp.lt.s32.totalorder %s36, 1
        %s581 = scalar_select %p580, %s36, 1
        %p582 = scmp.lt.s32.totalorder %s579, 1
        %s583 = scalar_select %p582, %s579, 1
        %s584 = smul.addr %s581, 2
        %s585 = sadd.s32 %s583, %s584
        %s586 = smul.addr %s585, 8
        %s587 = scalar_lea.vmem %s0, %s586
        %s588 = smul.u32 2, %s37
        %p590 = scmp.eq.s32.totalorder %s37, 0
        // Predicated region
        $region105: #{tpu_custom_call.1} parent=75 // pred_check
          %p591 = pneg %p590
        $region106: #{tpu_custom_call.1} parent=75 // pred_check_branch
          %593 = sbr.rel (%p591) target = $region108
        $region107: #{tpu_custom_call.1} parent=75 // pred_region
          %594 = vst [vmem:[#allocation2] sm:$0xff] -inf
        $region108: #{tpu_custom_call.1} parent=75 // pred_fallthru
          _
        %v595 = vld [vmem:[%s587] sm:$0xff]
        %v596 = vld [vmem:[%s587 + $0x8] sm:$0xff]
        %v597 = vld [vmem:[#allocation3] sm:$0x1]
        %599 = vset.pattern.permute.xlu0 0
        %600 = vperm.xlu0 %599, %v595
        %v601 = vpop.permute.xlu0 %600
        %604 = vset.pattern.permute.xlu0 0
        %605 = vperm.xlu0 %604, %v596
        %v606 = vpop.permute.xlu0 %605
        %v608 = vlaneseq
        %v609 = vshrl.u32 %v608, 7
        %v610 = vsub.s32 0, %v609
        %v611 = vrot.slane %v597, %v610
        %v612 = vmul.f32 %v601, %v611
        %v613 = vmul.f32 %v606, %v611
        %v614 = vld [vmem:[#allocation3 + $0x1] sm:$0x1]
        %615 = vset.pattern.permute.xlu0 1
        %616 = vperm.xlu0 %615, %v595
        %v617 = vpop.permute.xlu0 %616
        %619 = vset.pattern.permute.xlu0 1
        %620 = vperm.xlu0 %619, %v596
        %v621 = vpop.permute.xlu0 %620
        %v623 = vlaneseq
        %v624 = vshrl.u32 %v623, 7
        %v625 = vsub.s32 0, %v624
        %v626 = vrot.slane %v614, %v625
        %v627 = vmul.f32 %v617, %v626
        %v628 = vmul.f32 %v621, %v626
        %v629 = vadd.f32 %v612, %v627
        %v630 = vadd.f32 %v613, %v628
        %v631 = vld [vmem:[#allocation3 + $0x2] sm:$0x1]
        %632 = vset.pattern.permute.xlu0 2
        %633 = vperm.xlu0 %632, %v595
        %v634 = vpop.permute.xlu0 %633
        %636 = vset.pattern.permute.xlu0 2
        %637 = vperm.xlu0 %636, %v596
        %v638 = vpop.permute.xlu0 %637
        %v640 = vlaneseq
        %v641 = vshrl.u32 %v640, 7
        %v642 = vsub.s32 0, %v641
        %v643 = vrot.slane %v631, %v642
        %v644 = vmul.f32 %v634, %v643
        %v645 = vmul.f32 %v638, %v643
        %v646 = vadd.f32 %v629, %v644
        %v647 = vadd.f32 %v630, %v645
        %v648 = vld [vmem:[#allocation6] sm:$0x1]
        %v650 = vlaneseq
        %v651 = vshrl.u32 %v650, 7
        %v652 = vsub.s32 0, %v651
        %v653 = vrot.slane %v648, %v652
        %v655 = vadd.f32 %v646, %v653
        %v656 = vadd.f32 %v647, %v653
        %v657 = vmax.f32 %v655, 0.0
        %v658 = vmax.f32 %v656, 0.0
        %v659 = vpack.c.bf16 %v658, %v657
        %v660 = vld [vmem:[%s3] sm:$0xf]
        %v661 = vld [vmem:[%s3 + $0x4] sm:$0xf]
        %v662 = vld [vmem:[%s3 + $0x8] sm:$0xf]
        %v663 = vld [vmem:[%s3 + $0xc] sm:$0xf]
        %v664 = vld [vmem:[%s3 + $0x10] sm:$0xf]
        %v665 = vld [vmem:[%s3 + $0x14] sm:$0xf]
        %v666 = vld [vmem:[%s3 + $0x18] sm:$0xf]
        %v667 = vld [vmem:[%s3 + $0x1c] sm:$0xf]
        %v668 = vld [vmem:[#allocation8] sm:$0x1]
        %v670 = vlaneseq
        %v671 = vshrl.u32 %v670, 7
        %v672 = vsub.s32 0, %v671
        %v673 = vrot.slane %v668, %v672
        %v683 = vunpack.c.l.b16 %v660
        %v684 = vunpack.c.l.b16 %v661
        %v685 = vunpack.c.l.b16 %v662
        %v686 = vunpack.c.l.b16 %v663
        %v687 = vunpack.c.l.b16 %v664
        %v688 = vunpack.c.l.b16 %v665
        %v689 = vunpack.c.l.b16 %v666
        %v690 = vunpack.c.l.b16 %v667
        %v691 = vpack.c.b16 %v684, %v683
        %v692 = vpack.c.b16 %v686, %v685
        %v693 = vpack.c.b16 %v688, %v687
        %v694 = vpack.c.b16 %v690, %v689
        %vm699 = vcmask 523264
        %v701 = vsel %vm699, %v659, 0
        %703 = vmatprep.subr.bf16.mxu0 0
        %704 = vmatpush1.bf16.msra.mxu0 0
        %705 = vmatprep.subr.bf16.mxu0 0
        %706 = vmatpush1.bf16.msra.mxu0 0
        %707 = vmatprep.subr.bf16.mxu0 0
        %708 = vmatpush1.bf16.msra.mxu0 0
        %709 = vmatprep.subr.bf16.mxu0 0
        %710 = vmatpush1.bf16.msra.mxu0 0
        %711 = vmatprep.subr.bf16.mxu0 0
        %712 = vmatpush1.bf16.msra.mxu0 %v694
        %713 = vmatprep.subr.bf16.mxu0 0
        %714 = vmatpush1.bf16.msra.mxu0 %v693
        %715 = vmatprep.subr.bf16.mxu0 0
        %716 = vmatpush1.bf16.msra.mxu0 %v692
        %717 = vmatprep.subr.bf16.mxu0 0
        %718 = vmatpush1.bf16.msra.mxu0 %v691
        %719 = vmatprep.subr.bf16.mxu0 0
        %720 = vmatpush2.bf16.msra.mxu0 0
        %721 = vmatprep.subr.bf16.mxu0 0
        %722 = vmatpush2.bf16.msra.mxu0 0
        %723 = vmatprep.subr.bf16.mxu0 0
        %724 = vmatpush2.bf16.msra.mxu0 0
        %725 = vmatprep.subr.bf16.mxu0 0
        %726 = vmatpush2.bf16.msra.mxu0 0
        %727 = vmatprep.subr.bf16.mxu0 0
        %728 = vmatpush2.bf16.msra.mxu0 0
        %729 = vmatprep.subr.bf16.mxu0 0
        %730 = vmatpush2.bf16.msra.mxu0 0
        %731 = vmatprep.subr.bf16.mxu0 0
        %732 = vmatpush2.bf16.msra.mxu0 0
        %733 = vmatprep.subr.bf16.mxu0 0
        %734 = vmatpush2.bf16.msra.mxu0 0
        %735 = vmatprep.mubr.bf16.mxu0 0
        %736 = vmatmul.mubr.bf16.gmra.mxu0 %v701
        %v737 = vpop.f32.mrf.mxu0
        %v738 = vadd.f32 %v673, %v737
        %v739 = vpop.f32.mrf.mxu0
        %v740 = vpop.f32.mrf.mxu0
        %v741 = vadd.f32 %v673, %v740
        %v742 = vpop.f32.mrf.mxu0
        %743 = vdwg.mxu0
        %v744 = vmax.f32 %v738, 0.0
        %v745 = vmax.f32 %v741, 0.0
        %v746 = vpack.c.bf16 %v745, %v744
        %v747 = vld [vmem:[#allocation9] sm:$0xff]
        %v748 = vld [vmem:[#allocation9 + $0x20] sm:$0xff]
        %v749 = vld [vmem:[#allocation9 + $0x40] sm:$0xff]
        %v750 = vld [vmem:[#allocation9 + $0x60] sm:$0xff]
        %v751 = vld [vmem:[#allocation9 + $0x80] sm:$0xff]
        %v752 = vld [vmem:[#allocation9 + $0xa0] sm:$0xff]
        %v753 = vld [vmem:[#allocation9 + $0xc0] sm:$0xff]
        %v754 = vld [vmem:[#allocation9 + $0xe0] sm:$0xff]
        %v755 = vld [vmem:[#allocation9 + $0x100] sm:$0xff]
        %v756 = vld [vmem:[#allocation9 + $0x120] sm:$0xff]
        %v757 = vld [vmem:[#allocation9 + $0x140] sm:$0xff]
        %v758 = vld [vmem:[#allocation9 + $0x160] sm:$0xff]
        %v759 = vld [vmem:[#allocation9 + $0x180] sm:$0xff]
        %v760 = vld [vmem:[#allocation9 + $0x1a0] sm:$0xff]
        %v761 = vld [vmem:[#allocation9 + $0x1c0] sm:$0xff]
        %v762 = vld [vmem:[#allocation9 + $0x1e0] sm:$0xff]
        %v779 = vunpack.c.l.b16 %v747
        %v780 = vunpack.c.h.b16 %v747
        %v781 = vunpack.c.l.b16 %v748
        %v782 = vunpack.c.h.b16 %v748
        %v783 = vunpack.c.l.b16 %v749
        %v784 = vunpack.c.h.b16 %v749
        %v785 = vunpack.c.l.b16 %v750
        %v786 = vunpack.c.h.b16 %v750
        %v787 = vunpack.c.l.b16 %v751
        %v788 = vunpack.c.h.b16 %v751
        %v789 = vunpack.c.l.b16 %v752
        %v790 = vunpack.c.h.b16 %v752
        %v791 = vunpack.c.l.b16 %v753
        %v792 = vunpack.c.h.b16 %v753
        %v793 = vunpack.c.l.b16 %v754
        %v794 = vunpack.c.h.b16 %v754
        %v795 = vunpack.c.l.b16 %v755
        %v796 = vunpack.c.h.b16 %v755
        %v797 = vunpack.c.l.b16 %v756
        %v798 = vunpack.c.h.b16 %v756
        %v799 = vunpack.c.l.b16 %v757
        %v800 = vunpack.c.h.b16 %v757
        %v801 = vunpack.c.l.b16 %v758
        %v802 = vunpack.c.h.b16 %v758
        %v803 = vunpack.c.l.b16 %v759
        %v804 = vunpack.c.h.b16 %v759
        %v805 = vunpack.c.l.b16 %v760
        %v806 = vunpack.c.h.b16 %v760
        %v807 = vunpack.c.l.b16 %v761
        %v808 = vunpack.c.h.b16 %v761
        %v809 = vunpack.c.l.b16 %v762
        %v810 = vunpack.c.h.b16 %v762
        %v811 = vpack.c.b16 %v781, %v779
        %v812 = vpack.c.b16 %v782, %v780
        %v813 = vpack.c.b16 %v785, %v783
        %v814 = vpack.c.b16 %v786, %v784
        %v815 = vpack.c.b16 %v789, %v787
        %v816 = vpack.c.b16 %v790, %v788
        %v817 = vpack.c.b16 %v793, %v791
        %v818 = vpack.c.b16 %v794, %v792
        %v819 = vpack.c.b16 %v797, %v795
        %v820 = vpack.c.b16 %v798, %v796
        %v821 = vpack.c.b16 %v801, %v799
        %v822 = vpack.c.b16 %v802, %v800
        %v823 = vpack.c.b16 %v805, %v803
        %v824 = vpack.c.b16 %v806, %v804
        %v825 = vpack.c.b16 %v809, %v807
        %v826 = vpack.c.b16 %v810, %v808
        %843 = vmatprep.subr.bf16.mxu0 %v826
        %844 = vmatpush1.bf16.msra.mxu0 %v825
        %845 = vmatprep.subr.bf16.mxu0 %v824
        %846 = vmatpush1.bf16.msra.mxu0 %v823
        %847 = vmatprep.subr.bf16.mxu0 %v822
        %848 = vmatpush1.bf16.msra.mxu0 %v821
        %849 = vmatprep.subr.bf16.mxu0 %v820
        %850 = vmatpush1.bf16.msra.mxu0 %v819
        %851 = vmatprep.subr.bf16.mxu0 %v818
        %852 = vmatpush1.bf16.msra.mxu0 %v817
        %853 = vmatprep.subr.bf16.mxu0 %v816
        %854 = vmatpush1.bf16.msra.mxu0 %v815
        %855 = vmatprep.subr.bf16.mxu0 %v814
        %856 = vmatpush1.bf16.msra.mxu0 %v813
        %857 = vmatprep.subr.bf16.mxu0 %v812
        %858 = vmatpush1.bf16.msra.mxu0 %v811
        %859 = vmatprep.subr.bf16.mxu0 0
        %860 = vmatpush2.bf16.msra.mxu0 0
        %861 = vmatprep.subr.bf16.mxu0 0
        %862 = vmatpush2.bf16.msra.mxu0 0
        %863 = vmatprep.subr.bf16.mxu0 0
        %864 = vmatpush2.bf16.msra.mxu0 0
        %865 = vmatprep.subr.bf16.mxu0 0
        %866 = vmatpush2.bf16.msra.mxu0 0
        %867 = vmatprep.subr.bf16.mxu0 0
        %868 = vmatpush2.bf16.msra.mxu0 0
        %869 = vmatprep.subr.bf16.mxu0 0
        %870 = vmatpush2.bf16.msra.mxu0 0
        %871 = vmatprep.subr.bf16.mxu0 0
        %872 = vmatpush2.bf16.msra.mxu0 0
        %873 = vmatprep.subr.bf16.mxu0 0
        %874 = vmatpush2.bf16.msra.mxu0 0
        %875 = vmatprep.mubr.bf16.mxu0 0
        %876 = vmatmul.mubr.bf16.gmra.mxu0 %v746
        %v877 = vpop.f32.mrf.mxu0
        %v878 = vadd.f32 0.0, %v877
        %v879 = vpop.f32.mrf.mxu0
        %v880 = vadd.f32 0.0, %v879
        %v881 = vpop.f32.mrf.mxu0
        %v882 = vadd.f32 0.0, %v881
        %v883 = vpop.f32.mrf.mxu0
        %v884 = vadd.f32 0.0, %v883
        %885 = vdwg.mxu0
        %v886 = vld [vmem:[#allocation2] sm:$0x3]
        %v887 = vmax.f32 %v878, %v882
        %v888 = vrot.slane %v887, 4
        %v889 = vmax.f32 %v887, %v888
        %v890 = vrot.slane %v889, 2
        %v891 = vmax.f32 %v889, %v890
        %v892 = vrot.slane %v891, 1
        %v893 = vmax.f32 %v891, %v892
        %v894 = vmax.f32 %v880, %v884
        %v895 = vrot.slane %v894, 4
        %v896 = vmax.f32 %v894, %v895
        %v897 = vrot.slane %v896, 2
        %v898 = vmax.f32 %v896, %v897
        %v899 = vrot.slane %v898, 1
        %v900 = vmax.f32 %v898, %v899
        %v903 = vcombine.low %v893, %v900
        %v905 = vunpack.c.l.s4 1966171168
        %v906 = vunpack.c.0.s8 %v905
        %v907 = vlaneseq
        %v908 = vshrl.u32 %v907, 7
        %v909 = vsub.s32 %v906, %v908
        %v910 = vrot.slane %v903, %v909
        %v912 = vunpack.c.l.s4 1966171168
        %v913 = vunpack.c.0.s8 %v912
        %v914 = vlaneseq
        %v915 = vshrl.u32 %v914, 7
        %v916 = vsub.s32 %v913, %v915
        %v917 = vrot.slane %v910, %v916
        %v919 = vmax.f32 %v886, %v917
        %v920 = vlaneseq
        %vm921 = vcmp.ge.s32.totalorder %v920, 0
        %vm922 = vcmp.lt.s32.totalorder %v920, 256
        %vm923 = vmand %vm921, %vm922
        %924 = vst.msk [vmem:[#allocation2] sm:$0x3] %vm923, %v919
        %v925 = vld [vmem:[#allocation9 + $0x8] sm:$0xff]
        %v926 = vld [vmem:[#allocation9 + $0x28] sm:$0xff]
        %v927 = vld [vmem:[#allocation9 + $0x48] sm:$0xff]
        %v928 = vld [vmem:[#allocation9 + $0x68] sm:$0xff]
        %v929 = vld [vmem:[#allocation9 + $0x88] sm:$0xff]
        %v930 = vld [vmem:[#allocation9 + $0xa8] sm:$0xff]
        %v931 = vld [vmem:[#allocation9 + $0xc8] sm:$0xff]
        %v932 = vld [vmem:[#allocation9 + $0xe8] sm:$0xff]
        %v933 = vld [vmem:[#allocation9 + $0x108] sm:$0xff]
        %v934 = vld [vmem:[#allocation9 + $0x128] sm:$0xff]
        %v935 = vld [vmem:[#allocation9 + $0x148] sm:$0xff]
        %v936 = vld [vmem:[#allocation9 + $0x168] sm:$0xff]
        %v937 = vld [vmem:[#allocation9 + $0x188] sm:$0xff]
        %v938 = vld [vmem:[#allocation9 + $0x1a8] sm:$0xff]
        %v939 = vld [vmem:[#allocation9 + $0x1c8] sm:$0xff]
        %v940 = vld [vmem:[#allocation9 + $0x1e8] sm:$0xff]
        %v957 = vunpack.c.l.b16 %v925
        %v958 = vunpack.c.h.b16 %v925
        %v959 = vunpack.c.l.b16 %v926
        %v960 = vunpack.c.h.b16 %v926
        %v961 = vunpack.c.l.b16 %v927
        %v962 = vunpack.c.h.b16 %v927
        %v963 = vunpack.c.l.b16 %v928
        %v964 = vunpack.c.h.b16 %v928
        %v965 = vunpack.c.l.b16 %v929
        %v966 = vunpack.c.h.b16 %v929
        %v967 = vunpack.c.l.b16 %v930
        %v968 = vunpack.c.h.b16 %v930
        %v969 = vunpack.c.l.b16 %v931
        %v970 = vunpack.c.h.b16 %v931
        %v971 = vunpack.c.l.b16 %v932
        %v972 = vunpack.c.h.b16 %v932
        %v973 = vunpack.c.l.b16 %v933
        %v974 = vunpack.c.h.b16 %v933
        %v975 = vunpack.c.l.b16 %v934
        %v976 = vunpack.c.h.b16 %v934
        %v977 = vunpack.c.l.b16 %v935
        %v978 = vunpack.c.h.b16 %v935
        %v979 = vunpack.c.l.b16 %v936
        %v980 = vunpack.c.h.b16 %v936
        %v981 = vunpack.c.l.b16 %v937
        %v982 = vunpack.c.h.b16 %v937
        %v983 = vunpack.c.l.b16 %v938
        %v984 = vunpack.c.h.b16 %v938
        %v985 = vunpack.c.l.b16 %v939
        %v986 = vunpack.c.h.b16 %v939
        %v987 = vunpack.c.l.b16 %v940
        %v988 = vunpack.c.h.b16 %v940
        %v989 = vpack.c.b16 %v959, %v957
        %v990 = vpack.c.b16 %v960, %v958
        %v991 = vpack.c.b16 %v963, %v961
        %v992 = vpack.c.b16 %v964, %v962
        %v993 = vpack.c.b16 %v967, %v965
        %v994 = vpack.c.b16 %v968, %v966
        %v995 = vpack.c.b16 %v971, %v969
        %v996 = vpack.c.b16 %v972, %v970
        %v997 = vpack.c.b16 %v975, %v973
        %v998 = vpack.c.b16 %v976, %v974
        %v999 = vpack.c.b16 %v979, %v977
        %v1000 = vpack.c.b16 %v980, %v978
        %v1001 = vpack.c.b16 %v983, %v981
        %v1002 = vpack.c.b16 %v984, %v982
        %v1003 = vpack.c.b16 %v987, %v985
        %v1004 = vpack.c.b16 %v988, %v986
        %1021 = vmatprep.subr.bf16.mxu0 %v1004
        %1022 = vmatpush1.bf16.msra.mxu0 %v1003
        %1023 = vmatprep.subr.bf16.mxu0 %v1002
        %1024 = vmatpush1.bf16.msra.mxu0 %v1001
        %1025 = vmatprep.subr.bf16.mxu0 %v1000
        %1026 = vmatpush1.bf16.msra.mxu0 %v999
        %1027 = vmatprep.subr.bf16.mxu0 %v998
        %1028 = vmatpush1.bf16.msra.mxu0 %v997
        %1029 = vmatprep.subr.bf16.mxu0 %v996
        %1030 = vmatpush1.bf16.msra.mxu0 %v995
        %1031 = vmatprep.subr.bf16.mxu0 %v994
        %1032 = vmatpush1.bf16.msra.mxu0 %v993
        %1033 = vmatprep.subr.bf16.mxu0 %v992
        %1034 = vmatpush1.bf16.msra.mxu0 %v991
        %1035 = vmatprep.subr.bf16.mxu0 %v990
        %1036 = vmatpush1.bf16.msra.mxu0 %v989
        %1037 = vmatprep.subr.bf16.mxu0 0
        %1038 = vmatpush2.bf16.msra.mxu0 0
        %1039 = vmatprep.subr.bf16.mxu0 0
        %1040 = vmatpush2.bf16.msra.mxu0 0
        %1041 = vmatprep.subr.bf16.mxu0 0
        %1042 = vmatpush2.bf16.msra.mxu0 0
        %1043 = vmatprep.subr.bf16.mxu0 0
        %1044 = vmatpush2.bf16.msra.mxu0 0
        %1045 = vmatprep.subr.bf16.mxu0 0
        %1046 = vmatpush2.bf16.msra.mxu0 0
        %1047 = vmatprep.subr.bf16.mxu0 0
        %1048 = vmatpush2.bf16.msra.mxu0 0
        %1049 = vmatprep.subr.bf16.mxu0 0
        %1050 = vmatpush2.bf16.msra.mxu0 0
        %1051 = vmatprep.subr.bf16.mxu0 0
        %1052 = vmatpush2.bf16.msra.mxu0 0
        %1053 = vmatprep.mubr.bf16.mxu0 0
        %1054 = vmatmul.mubr.bf16.gmra.mxu0 %v746
        %v1055 = vpop.f32.mrf.mxu0
        %v1056 = vadd.f32 0.0, %v1055
        %v1057 = vpop.f32.mrf.mxu0
        %v1058 = vadd.f32 0.0, %v1057
        %v1059 = vpop.f32.mrf.mxu0
        %v1060 = vadd.f32 0.0, %v1059
        %v1061 = vpop.f32.mrf.mxu0
        %v1062 = vadd.f32 0.0, %v1061
        %1063 = vdwg.mxu0
        %v1064 = vld [vmem:[#allocation2 + $0x2] sm:$0x3]
        %v1065 = vmax.f32 %v1056, %v1060
        %v1066 = vrot.slane %v1065, 4
        %v1067 = vmax.f32 %v1065, %v1066
        %v1068 = vrot.slane %v1067, 2
        %v1069 = vmax.f32 %v1067, %v1068
        %v1070 = vrot.slane %v1069, 1
        %v1071 = vmax.f32 %v1069, %v1070
        %v1072 = vmax.f32 %v1058, %v1062
        %v1073 = vrot.slane %v1072, 4
        %v1074 = vmax.f32 %v1072, %v1073
        %v1075 = vrot.slane %v1074, 2
        %v1076 = vmax.f32 %v1074, %v1075
        %v1077 = vrot.slane %v1076, 1
        %v1078 = vmax.f32 %v1076, %v1077
        %v1081 = vcombine.low %v1071, %v1078
        %v1083 = vunpack.c.l.s4 1966171168
        %v1084 = vunpack.c.0.s8 %v1083
        %v1085 = vlaneseq
        %v1086 = vshrl.u32 %v1085, 7
        %v1087 = vsub.s32 %v1084, %v1086
        %v1088 = vrot.slane %v1081, %v1087
        %v1090 = vunpack.c.l.s4 1966171168
        %v1091 = vunpack.c.0.s8 %v1090
        %v1092 = vlaneseq
        %v1093 = vshrl.u32 %v1092, 7
        %v1094 = vsub.s32 %v1091, %v1093
        %v1095 = vrot.slane %v1088, %v1094
        %v1097 = vmax.f32 %v1064, %v1095
        %1098 = vst.msk [vmem:[#allocation2 + $0x2] sm:$0x3] %vm923, %v1097
        %v1099 = vld [vmem:[#allocation9 + $0x10] sm:$0xff]
        %v1100 = vld [vmem:[#allocation9 + $0x30] sm:$0xff]
        %v1101 = vld [vmem:[#allocation9 + $0x50] sm:$0xff]
        %v1102 = vld [vmem:[#allocation9 + $0x70] sm:$0xff]
        %v1103 = vld [vmem:[#allocation9 + $0x90] sm:$0xff]
        %v1104 = vld [vmem:[#allocation9 + $0xb0] sm:$0xff]
        %v1105 = vld [vmem:[#allocation9 + $0xd0] sm:$0xff]
        %v1106 = vld [vmem:[#allocation9 + $0xf0] sm:$0xff]
        %v1107 = vld [vmem:[#allocation9 + $0x110] sm:$0xff]
        %v1108 = vld [vmem:[#allocation9 + $0x130] sm:$0xff]
        %v1109 = vld [vmem:[#allocation9 + $0x150] sm:$0xff]
        %v1110 = vld [vmem:[#allocation9 + $0x170] sm:$0xff]
        %v1111 = vld [vmem:[#allocation9 + $0x190] sm:$0xff]
        %v1112 = vld [vmem:[#allocation9 + $0x1b0] sm:$0xff]
        %v1113 = vld [vmem:[#allocation9 + $0x1d0] sm:$0xff]
        %v1114 = vld [vmem:[#allocation9 + $0x1f0] sm:$0xff]
        %v1131 = vunpack.c.l.b16 %v1099
        %v1132 = vunpack.c.h.b16 %v1099
        %v1133 = vunpack.c.l.b16 %v1100
        %v1134 = vunpack.c.h.b16 %v1100
        %v1135 = vunpack.c.l.b16 %v1101
        %v1136 = vunpack.c.h.b16 %v1101
        %v1137 = vunpack.c.l.b16 %v1102
        %v1138 = vunpack.c.h.b16 %v1102
        %v1139 = vunpack.c.l.b16 %v1103
        %v1140 = vunpack.c.h.b16 %v1103
        %v1141 = vunpack.c.l.b16 %v1104
        %v1142 = vunpack.c.h.b16 %v1104
        %v1143 = vunpack.c.l.b16 %v1105
        %v1144 = vunpack.c.h.b16 %v1105
        %v1145 = vunpack.c.l.b16 %v1106
        %v1146 = vunpack.c.h.b16 %v1106
        %v1147 = vunpack.c.l.b16 %v1107
        %v1148 = vunpack.c.h.b16 %v1107
        %v1149 = vunpack.c.l.b16 %v1108
        %v1150 = vunpack.c.h.b16 %v1108
        %v1151 = vunpack.c.l.b16 %v1109
        %v1152 = vunpack.c.h.b16 %v1109
        %v1153 = vunpack.c.l.b16 %v1110
        %v1154 = vunpack.c.h.b16 %v1110
        %v1155 = vunpack.c.l.b16 %v1111
        %v1156 = vunpack.c.h.b16 %v1111
        %v1157 = vunpack.c.l.b16 %v1112
        %v1158 = vunpack.c.h.b16 %v1112
        %v1159 = vunpack.c.l.b16 %v1113
        %v1160 = vunpack.c.h.b16 %v1113
        %v1161 = vunpack.c.l.b16 %v1114
        %v1162 = vunpack.c.h.b16 %v1114
        %v1163 = vpack.c.b16 %v1133, %v1131
        %v1164 = vpack.c.b16 %v1134, %v1132
        %v1165 = vpack.c.b16 %v1137, %v1135
        %v1166 = vpack.c.b16 %v1138, %v1136
        %v1167 = vpack.c.b16 %v1141, %v1139
        %v1168 = vpack.c.b16 %v1142, %v1140
        %v1169 = vpack.c.b16 %v1145, %v1143
        %v1170 = vpack.c.b16 %v1146, %v1144
        %v1171 = vpack.c.b16 %v1149, %v1147
        %v1172 = vpack.c.b16 %v1150, %v1148
        %v1173 = vpack.c.b16 %v1153, %v1151
        %v1174 = vpack.c.b16 %v1154, %v1152
        %v1175 = vpack.c.b16 %v1157, %v1155
        %v1176 = vpack.c.b16 %v1158, %v1156
        %v1177 = vpack.c.b16 %v1161, %v1159
        %v1178 = vpack.c.b16 %v1162, %v1160
        %1195 = vmatprep.subr.bf16.mxu0 %v1178
        %1196 = vmatpush1.bf16.msra.mxu0 %v1177
        %1197 = vmatprep.subr.bf16.mxu0 %v1176
        %1198 = vmatpush1.bf16.msra.mxu0 %v1175
        %1199 = vmatprep.subr.bf16.mxu0 %v1174
        %1200 = vmatpush1.bf16.msra.mxu0 %v1173
        %1201 = vmatprep.subr.bf16.mxu0 %v1172
        %1202 = vmatpush1.bf16.msra.mxu0 %v1171
        %1203 = vmatprep.subr.bf16.mxu0 %v1170
        %1204 = vmatpush1.bf16.msra.mxu0 %v1169
        %1205 = vmatprep.subr.bf16.mxu0 %v1168
        %1206 = vmatpush1.bf16.msra.mxu0 %v1167
        %1207 = vmatprep.subr.bf16.mxu0 %v1166
        %1208 = vmatpush1.bf16.msra.mxu0 %v1165
        %1209 = vmatprep.subr.bf16.mxu0 %v1164
        %1210 = vmatpush1.bf16.msra.mxu0 %v1163
        %1211 = vmatprep.subr.bf16.mxu0 0
        %1212 = vmatpush2.bf16.msra.mxu0 0
        %1213 = vmatprep.subr.bf16.mxu0 0
        %1214 = vmatpush2.bf16.msra.mxu0 0
        %1215 = vmatprep.subr.bf16.mxu0 0
        %1216 = vmatpush2.bf16.msra.mxu0 0
        %1217 = vmatprep.subr.bf16.mxu0 0
        %1218 = vmatpush2.bf16.msra.mxu0 0
        %1219 = vmatprep.subr.bf16.mxu0 0
        %1220 = vmatpush2.bf16.msra.mxu0 0
        %1221 = vmatprep.subr.bf16.mxu0 0
        %1222 = vmatpush2.bf16.msra.mxu0 0
        %1223 = vmatprep.subr.bf16.mxu0 0
        %1224 = vmatpush2.bf16.msra.mxu0 0
        %1225 = vmatprep.subr.bf16.mxu0 0
        %1226 = vmatpush2.bf16.msra.mxu0 0
        %1227 = vmatprep.mubr.bf16.mxu0 0
        %1228 = vmatmul.mubr.bf16.gmra.mxu0 %v746
        %v1229 = vpop.f32.mrf.mxu0
        %v1230 = vadd.f32 0.0, %v1229
        %v1231 = vpop.f32.mrf.mxu0
        %v1232 = vadd.f32 0.0, %v1231
        %v1233 = vpop.f32.mrf.mxu0
        %v1234 = vadd.f32 0.0, %v1233
        %v1235 = vpop.f32.mrf.mxu0
        %v1236 = vadd.f32 0.0, %v1235
        %1237 = vdwg.mxu0
        %v1238 = vld [vmem:[#allocation2 + $0x4] sm:$0x3]
        %v1239 = vmax.f32 %v1230, %v1234
        %v1240 = vrot.slane %v1239, 4
        %v1241 = vmax.f32 %v1239, %v1240
        %v1242 = vrot.slane %v1241, 2
        %v1243 = vmax.f32 %v1241, %v1242
        %v1244 = vrot.slane %v1243, 1
        %v1245 = vmax.f32 %v1243, %v1244
        %v1246 = vmax.f32 %v1232, %v1236
        %v1247 = vrot.slane %v1246, 4
        %v1248 = vmax.f32 %v1246, %v1247
        %v1249 = vrot.slane %v1248, 2
        %v1250 = vmax.f32 %v1248, %v1249
        %v1251 = vrot.slane %v1250, 1
        %v1252 = vmax.f32 %v1250, %v1251
        %v1255 = vcombine.low %v1245, %v1252
        %v1257 = vunpack.c.l.s4 1966171168
        %v1258 = vunpack.c.0.s8 %v1257
        %v1259 = vlaneseq
        %v1260 = vshrl.u32 %v1259, 7
        %v1261 = vsub.s32 %v1258, %v1260
        %v1262 = vrot.slane %v1255, %v1261
        %v1264 = vunpack.c.l.s4 1966171168
        %v1265 = vunpack.c.0.s8 %v1264
        %v1266 = vlaneseq
        %v1267 = vshrl.u32 %v1266, 7
        %v1268 = vsub.s32 %v1265, %v1267
        %v1269 = vrot.slane %v1262, %v1268
        %v1271 = vmax.f32 %v1238, %v1269
        %1272 = vst.msk [vmem:[#allocation2 + $0x4] sm:$0x3] %vm923, %v1271
        %v1273 = vld [vmem:[#allocation9 + $0x18] sm:$0xff]
        %v1274 = vld [vmem:[#allocation9 + $0x38] sm:$0xff]
        %v1275 = vld [vmem:[#allocation9 + $0x58] sm:$0xff]
        %v1276 = vld [vmem:[#allocation9 + $0x78] sm:$0xff]
        %v1277 = vld [vmem:[#allocation9 + $0x98] sm:$0xff]
        %v1278 = vld [vmem:[#allocation9 + $0xb8] sm:$0xff]
        %v1279 = vld [vmem:[#allocation9 + $0xd8] sm:$0xff]
        %v1280 = vld [vmem:[#allocation9 + $0xf8] sm:$0xff]
        %v1281 = vld [vmem:[#allocation9 + $0x118] sm:$0xff]
        %v1282 = vld [vmem:[#allocation9 + $0x138] sm:$0xff]
        %v1283 = vld [vmem:[#allocation9 + $0x158] sm:$0xff]
        %v1284 = vld [vmem:[#allocation9 + $0x178] sm:$0xff]
        %v1285 = vld [vmem:[#allocation9 + $0x198] sm:$0xff]
        %v1286 = vld [vmem:[#allocation9 + $0x1b8] sm:$0xff]
        %v1287 = vld [vmem:[#allocation9 + $0x1d8] sm:$0xff]
        %v1288 = vld [vmem:[#allocation9 + $0x1f8] sm:$0xff]
        %v1305 = vunpack.c.l.b16 %v1273
        %v1306 = vunpack.c.h.b16 %v1273
        %v1307 = vunpack.c.l.b16 %v1274
        %v1308 = vunpack.c.h.b16 %v1274
        %v1309 = vunpack.c.l.b16 %v1275
        %v1310 = vunpack.c.h.b16 %v1275
        %v1311 = vunpack.c.l.b16 %v1276
        %v1312 = vunpack.c.h.b16 %v1276
        %v1313 = vunpack.c.l.b16 %v1277
        %v1314 = vunpack.c.h.b16 %v1277
        %v1315 = vunpack.c.l.b16 %v1278
        %v1316 = vunpack.c.h.b16 %v1278
        %v1317 = vunpack.c.l.b16 %v1279
        %v1318 = vunpack.c.h.b16 %v1279
        %v1319 = vunpack.c.l.b16 %v1280
        %v1320 = vunpack.c.h.b16 %v1280
        %v1321 = vunpack.c.l.b16 %v1281
        %v1322 = vunpack.c.h.b16 %v1281
        %v1323 = vunpack.c.l.b16 %v1282
        %v1324 = vunpack.c.h.b16 %v1282
        %v1325 = vunpack.c.l.b16 %v1283
        %v1326 = vunpack.c.h.b16 %v1283
        %v1327 = vunpack.c.l.b16 %v1284
        %v1328 = vunpack.c.h.b16 %v1284
        %v1329 = vunpack.c.l.b16 %v1285
        %v1330 = vunpack.c.h.b16 %v1285
        %v1331 = vunpack.c.l.b16 %v1286
        %v1332 = vunpack.c.h.b16 %v1286
        %v1333 = vunpack.c.l.b16 %v1287
        %v1334 = vunpack.c.h.b16 %v1287
        %v1335 = vunpack.c.l.b16 %v1288
        %v1336 = vunpack.c.h.b16 %v1288
        %v1337 = vpack.c.b16 %v1307, %v1305
        %v1338 = vpack.c.b16 %v1308, %v1306
        %v1339 = vpack.c.b16 %v1311, %v1309
        %v1340 = vpack.c.b16 %v1312, %v1310
        %v1341 = vpack.c.b16 %v1315, %v1313
        %v1342 = vpack.c.b16 %v1316, %v1314
        %v1343 = vpack.c.b16 %v1319, %v1317
        %v1344 = vpack.c.b16 %v1320, %v1318
        %v1345 = vpack.c.b16 %v1323, %v1321
        %v1346 = vpack.c.b16 %v1324, %v1322
        %v1347 = vpack.c.b16 %v1327, %v1325
        %v1348 = vpack.c.b16 %v1328, %v1326
        %v1349 = vpack.c.b16 %v1331, %v1329
        %v1350 = vpack.c.b16 %v1332, %v1330
        %v1351 = vpack.c.b16 %v1335, %v1333
        %v1352 = vpack.c.b16 %v1336, %v1334
        %1369 = vmatprep.subr.bf16.mxu0 %v1352
        %1370 = vmatpush1.bf16.msra.mxu0 %v1351
        %1371 = vmatprep.subr.bf16.mxu0 %v1350
        %1372 = vmatpush1.bf16.msra.mxu0 %v1349
        %1373 = vmatprep.subr.bf16.mxu0 %v1348
        %1374 = vmatpush1.bf16.msra.mxu0 %v1347
        %1375 = vmatprep.subr.bf16.mxu0 %v1346
        %1376 = vmatpush1.bf16.msra.mxu0 %v1345
        %1377 = vmatprep.subr.bf16.mxu0 %v1344
        %1378 = vmatpush1.bf16.msra.mxu0 %v1343
        %1379 = vmatprep.subr.bf16.mxu0 %v1342
        %1380 = vmatpush1.bf16.msra.mxu0 %v1341
        %1381 = vmatprep.subr.bf16.mxu0 %v1340
        %1382 = vmatpush1.bf16.msra.mxu0 %v1339
        %1383 = vmatprep.subr.bf16.mxu0 %v1338
        %1384 = vmatpush1.bf16.msra.mxu0 %v1337
        %1385 = vmatprep.subr.bf16.mxu0 0
        %1386 = vmatpush2.bf16.msra.mxu0 0
        %1387 = vmatprep.subr.bf16.mxu0 0
        %1388 = vmatpush2.bf16.msra.mxu0 0
        %1389 = vmatprep.subr.bf16.mxu0 0
        %1390 = vmatpush2.bf16.msra.mxu0 0
        %1391 = vmatprep.subr.bf16.mxu0 0
        %1392 = vmatpush2.bf16.msra.mxu0 0
        %1393 = vmatprep.subr.bf16.mxu0 0
        %1394 = vmatpush2.bf16.msra.mxu0 0
        %1395 = vmatprep.subr.bf16.mxu0 0
        %1396 = vmatpush2.bf16.msra.mxu0 0
        %1397 = vmatprep.subr.bf16.mxu0 0
        %1398 = vmatpush2.bf16.msra.mxu0 0
        %1399 = vmatprep.subr.bf16.mxu0 0
        %1400 = vmatpush2.bf16.msra.mxu0 0
        %1401 = vmatprep.mubr.bf16.mxu0 0
        %1402 = vmatmul.mubr.bf16.gmra.mxu0 %v746
        %v1403 = vpop.f32.mrf.mxu0
        %v1404 = vadd.f32 0.0, %v1403
        %v1405 = vpop.f32.mrf.mxu0
        %v1406 = vadd.f32 0.0, %v1405
        %v1407 = vpop.f32.mrf.mxu0
        %v1408 = vadd.f32 0.0, %v1407
        %v1409 = vpop.f32.mrf.mxu0
        %v1410 = vadd.f32 0.0, %v1409
        %1411 = vdwg.mxu0
        %v1412 = vld [vmem:[#allocation2 + $0x6] sm:$0x3]
        %v1413 = vmax.f32 %v1404, %v1408
        %v1414 = vrot.slane %v1413, 4
        %v1415 = vmax.f32 %v1413, %v1414
        %v1416 = vrot.slane %v1415, 2
        %v1417 = vmax.f32 %v1415, %v1416
        %v1418 = vrot.slane %v1417, 1
        %v1419 = vmax.f32 %v1417, %v1418
        %v1420 = vmax.f32 %v1406, %v1410
        %v1421 = vrot.slane %v1420, 4
        %v1422 = vmax.f32 %v1420, %v1421
        %v1423 = vrot.slane %v1422, 2
        %v1424 = vmax.f32 %v1422, %v1423
        %v1425 = vrot.slane %v1424, 1
        %v1426 = vmax.f32 %v1424, %v1425
        %v1429 = vcombine.low %v1419, %v1426
        %v1431 = vunpack.c.l.s4 1966171168
        %v1432 = vunpack.c.0.s8 %v1431
        %v1433 = vlaneseq
        %v1434 = vshrl.u32 %v1433, 7
        %v1435 = vsub.s32 %v1432, %v1434
        %v1436 = vrot.slane %v1429, %v1435
        %v1438 = vunpack.c.l.s4 1966171168
        %v1439 = vunpack.c.0.s8 %v1438
        %v1440 = vlaneseq
        %v1441 = vshrl.u32 %v1440, 7
        %v1442 = vsub.s32 %v1439, %v1441
        %v1443 = vrot.slane %v1436, %v1442
        %v1445 = vmax.f32 %v1412, %v1443
        %1446 = vst.msk [vmem:[#allocation2 + $0x6] sm:$0x3] %vm923, %v1445
        // Predicated region
        $region109: #{tpu_custom_call.1} parent=75 // pred_check
          %p1447 = pneg %p590
        $region110: #{tpu_custom_call.1} parent=75 // pred_check_branch
          %1449 = sbr.rel (%p1447) target = $region112
        $region111: #{tpu_custom_call.1} parent=75 // pred_region
          %v1450 = vld [vmem:[%s6] sm:$0xff]
          %v1451 = vld [vmem:[#allocation2] sm:$0xff]
          %v1452 = vmul.f32 %v1450, %v1451
          %v1453 = vld [vmem:[%s7] sm:$0xff]
          %v1454 = vadd.f32 %v1452, %v1453
          %v1455 = vmax.f32 %v1454, 0.0
          %v1457 = vlaneseq
          %v1458 = vshrl.u32 %v1457, 7
          %v1459 = vsub.s32 0, %v1458
          %v1460 = vrot.slane %v1455, %v1459
          %v1461 = vlaneseq
          %v1462 = vshrl.u32 %v1461, 7
          %v1463 = vsub.s32 1, %v1462
          %v1464 = vrot.slane %v1455, %v1463
          %v1465 = vlaneseq
          %v1466 = vshrl.u32 %v1465, 7
          %v1467 = vsub.s32 2, %v1466
          %v1468 = vrot.slane %v1455, %v1467
          %v1469 = vlaneseq
          %v1470 = vshrl.u32 %v1469, 7
          %v1471 = vsub.s32 3, %v1470
          %v1472 = vrot.slane %v1455, %v1471
          %v1473 = vlaneseq
          %v1474 = vshrl.u32 %v1473, 7
          %v1475 = vsub.s32 4, %v1474
          %v1476 = vrot.slane %v1455, %v1475
          %v1477 = vlaneseq
          %v1478 = vshrl.u32 %v1477, 7
          %v1479 = vsub.s32 5, %v1478
          %v1480 = vrot.slane %v1455, %v1479
          %v1481 = vlaneseq
          %v1482 = vshrl.u32 %v1481, 7
          %v1483 = vsub.s32 6, %v1482
          %v1484 = vrot.slane %v1455, %v1483
          %v1485 = vlaneseq
          %v1486 = vshrl.u32 %v1485, 7
          %v1487 = vsub.s32 7, %v1486
          %v1488 = vrot.slane %v1455, %v1487
          %v1497 = vpack.c.bf16 %v1460, %v1460
          %v1498 = vpack.c.bf16 %v1464, %v1464
          %v1499 = vpack.c.bf16 %v1468, %v1468
          %v1500 = vpack.c.bf16 %v1472, %v1472
          %v1501 = vpack.c.bf16 %v1476, %v1476
          %v1502 = vpack.c.bf16 %v1480, %v1480
          %v1503 = vpack.c.bf16 %v1484, %v1484
          %v1504 = vpack.c.bf16 %v1488, %v1488
          %v1505 = vld [vmem:[#allocation11] sm:$0xff]
          %v1506 = vld [vmem:[#allocation11 + $0x8] sm:$0xff]
          %v1507 = vld [vmem:[#allocation11 + $0x10] sm:$0xff]
          %v1508 = vld [vmem:[#allocation11 + $0x18] sm:$0xff]
          %v1509 = vld [vmem:[#allocation11 + $0x20] sm:$0xff]
          %v1510 = vld [vmem:[#allocation11 + $0x28] sm:$0xff]
          %v1511 = vld [vmem:[#allocation11 + $0x30] sm:$0xff]
          %v1512 = vld [vmem:[#allocation11 + $0x38] sm:$0xff]
          %v1513 = vld [vmem:[#allocation11 + $0x40] sm:$0xff]
          %v1514 = vld [vmem:[#allocation11 + $0x48] sm:$0xff]
          %v1515 = vld [vmem:[#allocation11 + $0x50] sm:$0xff]
          %v1516 = vld [vmem:[#allocation11 + $0x58] sm:$0xff]
          %v1517 = vld [vmem:[#allocation11 + $0x60] sm:$0xff]
          %v1518 = vld [vmem:[#allocation11 + $0x68] sm:$0xff]
          %v1519 = vld [vmem:[#allocation11 + $0x70] sm:$0xff]
          %v1520 = vld [vmem:[#allocation11 + $0x78] sm:$0xff]
          %v1521 = vld [vmem:[#allocation11 + $0x80] sm:$0xff]
          %v1522 = vld [vmem:[#allocation11 + $0x88] sm:$0xff]
          %v1523 = vld [vmem:[#allocation11 + $0x90] sm:$0xff]
          %v1524 = vld [vmem:[#allocation11 + $0x98] sm:$0xff]
          %v1525 = vld [vmem:[#allocation11 + $0xa0] sm:$0xff]
          %v1526 = vld [vmem:[#allocation11 + $0xa8] sm:$0xff]
          %v1527 = vld [vmem:[#allocation11 + $0xb0] sm:$0xff]
          %v1528 = vld [vmem:[#allocation11 + $0xb8] sm:$0xff]
          %v1529 = vld [vmem:[#allocation11 + $0xc0] sm:$0xff]
          %v1530 = vld [vmem:[#allocation11 + $0xc8] sm:$0xff]
          %v1531 = vld [vmem:[#allocation11 + $0xd0] sm:$0xff]
          %v1532 = vld [vmem:[#allocation11 + $0xd8] sm:$0xff]
          %v1533 = vld [vmem:[#allocation11 + $0xe0] sm:$0xff]
          %v1534 = vld [vmem:[#allocation11 + $0xe8] sm:$0xff]
          %v1535 = vld [vmem:[#allocation11 + $0xf0] sm:$0xff]
          %v1536 = vld [vmem:[#allocation11 + $0xf8] sm:$0xff]
          %v1537 = vld [vmem:[#allocation11 + $0x100] sm:$0xff]
          %v1538 = vld [vmem:[#allocation11 + $0x108] sm:$0xff]
          %v1539 = vld [vmem:[#allocation11 + $0x110] sm:$0xff]
          %v1540 = vld [vmem:[#allocation11 + $0x118] sm:$0xff]
          %v1541 = vld [vmem:[#allocation11 + $0x120] sm:$0xff]
          %v1542 = vld [vmem:[#allocation11 + $0x128] sm:$0xff]
          %v1543 = vld [vmem:[#allocation11 + $0x130] sm:$0xff]
          %v1544 = vld [vmem:[#allocation11 + $0x138] sm:$0xff]
          %v1545 = vld [vmem:[#allocation11 + $0x140] sm:$0xff]
          %v1546 = vld [vmem:[#allocation11 + $0x148] sm:$0xff]
          %v1547 = vld [vmem:[#allocation11 + $0x150] sm:$0xff]
          %v1548 = vld [vmem:[#allocation11 + $0x158] sm:$0xff]
          %v1549 = vld [vmem:[#allocation11 + $0x160] sm:$0xff]
          %v1550 = vld [vmem:[#allocation11 + $0x168] sm:$0xff]
          %v1551 = vld [vmem:[#allocation11 + $0x170] sm:$0xff]
          %v1552 = vld [vmem:[#allocation11 + $0x178] sm:$0xff]
          %v1553 = vld [vmem:[#allocation11 + $0x180] sm:$0xff]
          %v1554 = vld [vmem:[#allocation11 + $0x188] sm:$0xff]
          %v1555 = vld [vmem:[#allocation11 + $0x190] sm:$0xff]
          %v1556 = vld [vmem:[#allocation11 + $0x198] sm:$0xff]
          %v1557 = vld [vmem:[#allocation11 + $0x1a0] sm:$0xff]
          %v1558 = vld [vmem:[#allocation11 + $0x1a8] sm:$0xff]
          %v1559 = vld [vmem:[#allocation11 + $0x1b0] sm:$0xff]
          %v1560 = vld [vmem:[#allocation11 + $0x1b8] sm:$0xff]
          %v1561 = vld [vmem:[#allocation11 + $0x1c0] sm:$0xff]
          %v1562 = vld [vmem:[#allocation11 + $0x1c8] sm:$0xff]
          %v1563 = vld [vmem:[#allocation11 + $0x1d0] sm:$0xff]
          %v1564 = vld [vmem:[#allocation11 + $0x1d8] sm:$0xff]
          %v1565 = vld [vmem:[#allocation11 + $0x1e0] sm:$0xff]
          %v1566 = vld [vmem:[#allocation11 + $0x1e8] sm:$0xff]
          %v1567 = vld [vmem:[#allocation11 + $0x1f0] sm:$0xff]
          %v1568 = vld [vmem:[#allocation11 + $0x1f8] sm:$0xff]
          %v1569 = vld [vmem:[#allocation11 + $0x200] sm:$0xff]
          %v1570 = vld [vmem:[#allocation11 + $0x208] sm:$0xff]
          %v1571 = vld [vmem:[#allocation11 + $0x210] sm:$0xff]
          %v1572 = vld [vmem:[#allocation11 + $0x218] sm:$0xff]
          %v1573 = vld [vmem:[#allocation11 + $0x220] sm:$0xff]
          %v1574 = vld [vmem:[#allocation11 + $0x228] sm:$0xff]
          %v1575 = vld [vmem:[#allocation11 + $0x230] sm:$0xff]
          %v1576 = vld [vmem:[#allocation11 + $0x238] sm:$0xff]
          %v1577 = vld [vmem:[#allocation11 + $0x240] sm:$0xff]
          %v1578 = vld [vmem:[#allocation11 + $0x248] sm:$0xff]
          %v1579 = vld [vmem:[#allocation11 + $0x250] sm:$0xff]
          %v1580 = vld [vmem:[#allocation11 + $0x258] sm:$0xff]
          %v1581 = vld [vmem:[#allocation11 + $0x260] sm:$0xff]
          %v1582 = vld [vmem:[#allocation11 + $0x268] sm:$0xff]
          %v1583 = vld [vmem:[#allocation11 + $0x270] sm:$0xff]
          %v1584 = vld [vmem:[#allocation11 + $0x278] sm:$0xff]
          %v1585 = vld [vmem:[#allocation11 + $0x280] sm:$0xff]
          %v1586 = vld [vmem:[#allocation11 + $0x288] sm:$0xff]
          %v1587 = vld [vmem:[#allocation11 + $0x290] sm:$0xff]
          %v1588 = vld [vmem:[#allocation11 + $0x298] sm:$0xff]
          %v1589 = vld [vmem:[#allocation11 + $0x2a0] sm:$0xff]
          %v1590 = vld [vmem:[#allocation11 + $0x2a8] sm:$0xff]
          %v1591 = vld [vmem:[#allocation11 + $0x2b0] sm:$0xff]
          %v1592 = vld [vmem:[#allocation11 + $0x2b8] sm:$0xff]
          %v1593 = vld [vmem:[#allocation11 + $0x2c0] sm:$0xff]
          %v1594 = vld [vmem:[#allocation11 + $0x2c8] sm:$0xff]
          %v1595 = vld [vmem:[#allocation11 + $0x2d0] sm:$0xff]
          %v1596 = vld [vmem:[#allocation11 + $0x2d8] sm:$0xff]
          %v1597 = vld [vmem:[#allocation11 + $0x2e0] sm:$0xff]
          %v1598 = vld [vmem:[#allocation11 + $0x2e8] sm:$0xff]
          %v1599 = vld [vmem:[#allocation11 + $0x2f0] sm:$0xff]
          %v1600 = vld [vmem:[#allocation11 + $0x2f8] sm:$0xff]
          %v1601 = vld [vmem:[#allocation11 + $0x300] sm:$0xff]
          %v1602 = vld [vmem:[#allocation11 + $0x308] sm:$0xff]
          %v1603 = vld [vmem:[#allocation11 + $0x310] sm:$0xff]
          %v1604 = vld [vmem:[#allocation11 + $0x318] sm:$0xff]
          %v1605 = vld [vmem:[#allocation11 + $0x320] sm:$0xff]
          %v1606 = vld [vmem:[#allocation11 + $0x328] sm:$0xff]
          %v1607 = vld [vmem:[#allocation11 + $0x330] sm:$0xff]
          %v1608 = vld [vmem:[#allocation11 + $0x338] sm:$0xff]
          %v1609 = vld [vmem:[#allocation11 + $0x340] sm:$0xff]
          %v1610 = vld [vmem:[#allocation11 + $0x348] sm:$0xff]
          %v1611 = vld [vmem:[#allocation11 + $0x350] sm:$0xff]
          %v1612 = vld [vmem:[#allocation11 + $0x358] sm:$0xff]
          %v1613 = vld [vmem:[#allocation11 + $0x360] sm:$0xff]
          %v1614 = vld [vmem:[#allocation11 + $0x368] sm:$0xff]
          %v1615 = vld [vmem:[#allocation11 + $0x370] sm:$0xff]
          %v1616 = vld [vmem:[#allocation11 + $0x378] sm:$0xff]
          %v1617 = vld [vmem:[#allocation11 + $0x380] sm:$0xff]
          %v1618 = vld [vmem:[#allocation11 + $0x388] sm:$0xff]
          %v1619 = vld [vmem:[#allocation11 + $0x390] sm:$0xff]
          %v1620 = vld [vmem:[#allocation11 + $0x398] sm:$0xff]
          %v1621 = vld [vmem:[#allocation11 + $0x3a0] sm:$0xff]
          %v1622 = vld [vmem:[#allocation11 + $0x3a8] sm:$0xff]
          %v1623 = vld [vmem:[#allocation11 + $0x3b0] sm:$0xff]
          %v1624 = vld [vmem:[#allocation11 + $0x3b8] sm:$0xff]
          %v1625 = vld [vmem:[#allocation11 + $0x3c0] sm:$0xff]
          %v1626 = vld [vmem:[#allocation11 + $0x3c8] sm:$0xff]
          %v1627 = vld [vmem:[#allocation11 + $0x3d0] sm:$0xff]
          %v1628 = vld [vmem:[#allocation11 + $0x3d8] sm:$0xff]
          %v1629 = vld [vmem:[#allocation11 + $0x3e0] sm:$0xff]
          %v1630 = vld [vmem:[#allocation11 + $0x3e8] sm:$0xff]
          %v1631 = vld [vmem:[#allocation11 + $0x3f0] sm:$0xff]
          %v1632 = vld [vmem:[#allocation11 + $0x3f8] sm:$0xff]
          %v1633 = vld [vmem:[#allocation11 + $0x400] sm:$0xff]
          %v1634 = vld [vmem:[#allocation11 + $0x408] sm:$0xff]
          %v1635 = vld [vmem:[#allocation11 + $0x410] sm:$0xff]
          %v1636 = vld [vmem:[#allocation11 + $0x418] sm:$0xff]
          %v1637 = vld [vmem:[#allocation11 + $0x420] sm:$0xff]
          %v1638 = vld [vmem:[#allocation11 + $0x428] sm:$0xff]
          %v1639 = vld [vmem:[#allocation11 + $0x430] sm:$0xff]
          %v1640 = vld [vmem:[#allocation11 + $0x438] sm:$0xff]
          %v1641 = vld [vmem:[#allocation11 + $0x440] sm:$0xff]
          %v1642 = vld [vmem:[#allocation11 + $0x448] sm:$0xff]
          %v1643 = vld [vmem:[#allocation11 + $0x450] sm:$0xff]
          %v1644 = vld [vmem:[#allocation11 + $0x458] sm:$0xff]
          %v1645 = vld [vmem:[#allocation11 + $0x460] sm:$0xff]
          %v1646 = vld [vmem:[#allocation11 + $0x468] sm:$0xff]
          %v1647 = vld [vmem:[#allocation11 + $0x470] sm:$0xff]
          %v1648 = vld [vmem:[#allocation11 + $0x478] sm:$0xff]
          %v1649 = vld [vmem:[#allocation11 + $0x480] sm:$0xff]
          %v1650 = vld [vmem:[#allocation11 + $0x488] sm:$0xff]
          %v1651 = vld [vmem:[#allocation11 + $0x490] sm:$0xff]
          %v1652 = vld [vmem:[#allocation11 + $0x498] sm:$0xff]
          %v1653 = vld [vmem:[#allocation11 + $0x4a0] sm:$0xff]
          %v1654 = vld [vmem:[#allocation11 + $0x4a8] sm:$0xff]
          %v1655 = vld [vmem:[#allocation11 + $0x4b0] sm:$0xff]
          %v1656 = vld [vmem:[#allocation11 + $0x4b8] sm:$0xff]
          %v1657 = vld [vmem:[#allocation11 + $0x4c0] sm:$0xff]
          %v1658 = vld [vmem:[#allocation11 + $0x4c8] sm:$0xff]
          %v1659 = vld [vmem:[#allocation11 + $0x4d0] sm:$0xff]
          %v1660 = vld [vmem:[#allocation11 + $0x4d8] sm:$0xff]
          %v1661 = vld [vmem:[#allocation11 + $0x4e0] sm:$0xff]
          %v1662 = vld [vmem:[#allocation11 + $0x4e8] sm:$0xff]
          %v1663 = vld [vmem:[#allocation11 + $0x4f0] sm:$0xff]
          %v1664 = vld [vmem:[#allocation11 + $0x4f8] sm:$0xff]
          %v1665 = vld [vmem:[#allocation11 + $0x500] sm:$0xff]
          %v1666 = vld [vmem:[#allocation11 + $0x508] sm:$0xff]
          %v1667 = vld [vmem:[#allocation11 + $0x510] sm:$0xff]
          %v1668 = vld [vmem:[#allocation11 + $0x518] sm:$0xff]
          %v1669 = vld [vmem:[#allocation11 + $0x520] sm:$0xff]
          %v1670 = vld [vmem:[#allocation11 + $0x528] sm:$0xff]
          %v1671 = vld [vmem:[#allocation11 + $0x530] sm:$0xff]
          %v1672 = vld [vmem:[#allocation11 + $0x538] sm:$0xff]
          %v1673 = vld [vmem:[#allocation11 + $0x540] sm:$0xff]
          %v1674 = vld [vmem:[#allocation11 + $0x548] sm:$0xff]
          %v1675 = vld [vmem:[#allocation11 + $0x550] sm:$0xff]
          %v1676 = vld [vmem:[#allocation11 + $0x558] sm:$0xff]
          %v1677 = vld [vmem:[#allocation11 + $0x560] sm:$0xff]
          %v1678 = vld [vmem:[#allocation11 + $0x568] sm:$0xff]
          %v1679 = vld [vmem:[#allocation11 + $0x570] sm:$0xff]
          %v1680 = vld [vmem:[#allocation11 + $0x578] sm:$0xff]
          %v1681 = vld [vmem:[#allocation11 + $0x580] sm:$0xff]
          %v1682 = vld [vmem:[#allocation11 + $0x588] sm:$0xff]
          %v1683 = vld [vmem:[#allocation11 + $0x590] sm:$0xff]
          %v1684 = vld [vmem:[#allocation11 + $0x598] sm:$0xff]
          %v1685 = vld [vmem:[#allocation11 + $0x5a0] sm:$0xff]
          %v1686 = vld [vmem:[#allocation11 + $0x5a8] sm:$0xff]
          %v1687 = vld [vmem:[#allocation11 + $0x5b0] sm:$0xff]
          %v1688 = vld [vmem:[#allocation11 + $0x5b8] sm:$0xff]
          %v1689 = vld [vmem:[#allocation11 + $0x5c0] sm:$0xff]
          %v1690 = vld [vmem:[#allocation11 + $0x5c8] sm:$0xff]
          %v1691 = vld [vmem:[#allocation11 + $0x5d0] sm:$0xff]
          %v1692 = vld [vmem:[#allocation11 + $0x5d8] sm:$0xff]
          %v1693 = vld [vmem:[#allocation11 + $0x5e0] sm:$0xff]
          %v1694 = vld [vmem:[#allocation11 + $0x5e8] sm:$0xff]
          %v1695 = vld [vmem:[#allocation11 + $0x5f0] sm:$0xff]
          %v1696 = vld [vmem:[#allocation11 + $0x5f8] sm:$0xff]
          %v1697 = vld [vmem:[#allocation11 + $0x600] sm:$0xff]
          %v1698 = vld [vmem:[#allocation11 + $0x608] sm:$0xff]
          %v1699 = vld [vmem:[#allocation11 + $0x610] sm:$0xff]
          %v1700 = vld [vmem:[#allocation11 + $0x618] sm:$0xff]
          %v1701 = vld [vmem:[#allocation11 + $0x620] sm:$0xff]
          %v1702 = vld [vmem:[#allocation11 + $0x628] sm:$0xff]
          %v1703 = vld [vmem:[#allocation11 + $0x630] sm:$0xff]
          %v1704 = vld [vmem:[#allocation11 + $0x638] sm:$0xff]
          %v1705 = vld [vmem:[#allocation11 + $0x640] sm:$0xff]
          %v1706 = vld [vmem:[#allocation11 + $0x648] sm:$0xff]
          %v1707 = vld [vmem:[#allocation11 + $0x650] sm:$0xff]
          %v1708 = vld [vmem:[#allocation11 + $0x658] sm:$0xff]
          %v1709 = vld [vmem:[#allocation11 + $0x660] sm:$0xff]
          %v1710 = vld [vmem:[#allocation11 + $0x668] sm:$0xff]
          %v1711 = vld [vmem:[#allocation11 + $0x670] sm:$0xff]
          %v1712 = vld [vmem:[#allocation11 + $0x678] sm:$0xff]
          %v1713 = vld [vmem:[#allocation11 + $0x680] sm:$0xff]
          %v1714 = vld [vmem:[#allocation11 + $0x688] sm:$0xff]
          %v1715 = vld [vmem:[#allocation11 + $0x690] sm:$0xff]
          %v1716 = vld [vmem:[#allocation11 + $0x698] sm:$0xff]
          %v1717 = vld [vmem:[#allocation11 + $0x6a0] sm:$0xff]
          %v1718 = vld [vmem:[#allocation11 + $0x6a8] sm:$0xff]
          %v1719 = vld [vmem:[#allocation11 + $0x6b0] sm:$0xff]
          %v1720 = vld [vmem:[#allocation11 + $0x6b8] sm:$0xff]
          %v1721 = vld [vmem:[#allocation11 + $0x6c0] sm:$0xff]
          %v1722 = vld [vmem:[#allocation11 + $0x6c8] sm:$0xff]
          %v1723 = vld [vmem:[#allocation11 + $0x6d0] sm:$0xff]
          %v1724 = vld [vmem:[#allocation11 + $0x6d8] sm:$0xff]
          %v1725 = vld [vmem:[#allocation11 + $0x6e0] sm:$0xff]
          %v1726 = vld [vmem:[#allocation11 + $0x6e8] sm:$0xff]
          %v1727 = vld [vmem:[#allocation11 + $0x6f0] sm:$0xff]
          %v1728 = vld [vmem:[#allocation11 + $0x6f8] sm:$0xff]
          %v1729 = vld [vmem:[#allocation11 + $0x700] sm:$0xff]
          %v1730 = vld [vmem:[#allocation11 + $0x708] sm:$0xff]
          %v1731 = vld [vmem:[#allocation11 + $0x710] sm:$0xff]
          %v1732 = vld [vmem:[#allocation11 + $0x718] sm:$0xff]
          %v1733 = vld [vmem:[#allocation11 + $0x720] sm:$0xff]
          %v1734 = vld [vmem:[#allocation11 + $0x728] sm:$0xff]
          %v1735 = vld [vmem:[#allocation11 + $0x730] sm:$0xff]
          %v1736 = vld [vmem:[#allocation11 + $0x738] sm:$0xff]
          %v1737 = vld [vmem:[#allocation11 + $0x740] sm:$0xff]
          %v1738 = vld [vmem:[#allocation11 + $0x748] sm:$0xff]
          %v1739 = vld [vmem:[#allocation11 + $0x750] sm:$0xff]
          %v1740 = vld [vmem:[#allocation11 + $0x758] sm:$0xff]
          %v1741 = vld [vmem:[#allocation11 + $0x760] sm:$0xff]
          %v1742 = vld [vmem:[#allocation11 + $0x768] sm:$0xff]
          %v1743 = vld [vmem:[#allocation11 + $0x770] sm:$0xff]
          %v1744 = vld [vmem:[#allocation11 + $0x778] sm:$0xff]
          %v1745 = vld [vmem:[#allocation11 + $0x780] sm:$0xff]
          %v1746 = vld [vmem:[#allocation11 + $0x788] sm:$0xff]
          %v1747 = vld [vmem:[#allocation11 + $0x790] sm:$0xff]
          %v1748 = vld [vmem:[#allocation11 + $0x798] sm:$0xff]
          %v1749 = vld [vmem:[#allocation11 + $0x7a0] sm:$0xff]
          %v1750 = vld [vmem:[#allocation11 + $0x7a8] sm:$0xff]
          %v1751 = vld [vmem:[#allocation11 + $0x7b0] sm:$0xff]
          %v1752 = vld [vmem:[#allocation11 + $0x7b8] sm:$0xff]
          %v1753 = vld [vmem:[#allocation11 + $0x7c0] sm:$0xff]
          %v1754 = vld [vmem:[#allocation11 + $0x7c8] sm:$0xff]
          %v1755 = vld [vmem:[#allocation11 + $0x7d0] sm:$0xff]
          %v1756 = vld [vmem:[#allocation11 + $0x7d8] sm:$0xff]
          %v1757 = vld [vmem:[#allocation11 + $0x7e0] sm:$0xff]
          %v1758 = vld [vmem:[#allocation11 + $0x7e8] sm:$0xff]
          %v1759 = vld [vmem:[#allocation11 + $0x7f0] sm:$0xff]
          %v1760 = vld [vmem:[#allocation11 + $0x7f8] sm:$0xff]
          %v1761 = vld [vmem:[%s9] sm:$0xf]
          %v2018 = vunpack.c.l.b16 %v1505
          %v2019 = vunpack.c.h.b16 %v1505
          %v2020 = vunpack.c.l.b16 %v1506
          %v2021 = vunpack.c.h.b16 %v1506
          %v2022 = vunpack.c.l.b16 %v1507
          %v2023 = vunpack.c.h.b16 %v1507
          %v2024 = vunpack.c.l.b16 %v1508
          %v2025 = vunpack.c.h.b16 %v1508
          %v2026 = vunpack.c.l.b16 %v1509
          %v2027 = vunpack.c.h.b16 %v1509
          %v2028 = vunpack.c.l.b16 %v1510
          %v2029 = vunpack.c.h.b16 %v1510
          %v2030 = vunpack.c.l.b16 %v1511
          %v2031 = vunpack.c.h.b16 %v1511
          %v2032 = vunpack.c.l.b16 %v1512
          %v2033 = vunpack.c.h.b16 %v1512
          %v2034 = vunpack.c.l.b16 %v1513
          %v2035 = vunpack.c.h.b16 %v1513
          %v2036 = vunpack.c.l.b16 %v1514
          %v2037 = vunpack.c.h.b16 %v1514
          %v2038 = vunpack.c.l.b16 %v1515
          %v2039 = vunpack.c.h.b16 %v1515
          %v2040 = vunpack.c.l.b16 %v1516
          %v2041 = vunpack.c.h.b16 %v1516
          %v2042 = vunpack.c.l.b16 %v1517
          %v2043 = vunpack.c.h.b16 %v1517
          %v2044 = vunpack.c.l.b16 %v1518
          %v2045 = vunpack.c.h.b16 %v1518
          %v2046 = vunpack.c.l.b16 %v1519
          %v2047 = vunpack.c.h.b16 %v1519
          %v2048 = vunpack.c.l.b16 %v1520
          %v2049 = vunpack.c.h.b16 %v1520
          %v2050 = vunpack.c.l.b16 %v1521
          %v2051 = vunpack.c.h.b16 %v1521
          %v2052 = vunpack.c.l.b16 %v1522
          %v2053 = vunpack.c.h.b16 %v1522
          %v2054 = vunpack.c.l.b16 %v1523
          %v2055 = vunpack.c.h.b16 %v1523
          %v2056 = vunpack.c.l.b16 %v1524
          %v2057 = vunpack.c.h.b16 %v1524
          %v2058 = vunpack.c.l.b16 %v1525
          %v2059 = vunpack.c.h.b16 %v1525
          %v2060 = vunpack.c.l.b16 %v1526
          %v2061 = vunpack.c.h.b16 %v1526
          %v2062 = vunpack.c.l.b16 %v1527
          %v2063 = vunpack.c.h.b16 %v1527
          %v2064 = vunpack.c.l.b16 %v1528
          %v2065 = vunpack.c.h.b16 %v1528
          %v2066 = vunpack.c.l.b16 %v1529
          %v2067 = vunpack.c.h.b16 %v1529
          %v2068 = vunpack.c.l.b16 %v1530
          %v2069 = vunpack.c.h.b16 %v1530
          %v2070 = vunpack.c.l.b16 %v1531
          %v2071 = vunpack.c.h.b16 %v1531
          %v2072 = vunpack.c.l.b16 %v1532
          %v2073 = vunpack.c.h.b16 %v1532
          %v2074 = vunpack.c.l.b16 %v1533
          %v2075 = vunpack.c.h.b16 %v1533
          %v2076 = vunpack.c.l.b16 %v1534
          %v2077 = vunpack.c.h.b16 %v1534
          %v2078 = vunpack.c.l.b16 %v1535
          %v2079 = vunpack.c.h.b16 %v1535
          %v2080 = vunpack.c.l.b16 %v1536
          %v2081 = vunpack.c.h.b16 %v1536
          %v2082 = vunpack.c.l.b16 %v1537
          %v2083 = vunpack.c.h.b16 %v1537
          %v2084 = vunpack.c.l.b16 %v1538
          %v2085 = vunpack.c.h.b16 %v1538
          %v2086 = vunpack.c.l.b16 %v1539
          %v2087 = vunpack.c.h.b16 %v1539
          %v2088 = vunpack.c.l.b16 %v1540
          %v2089 = vunpack.c.h.b16 %v1540
          %v2090 = vunpack.c.l.b16 %v1541
          %v2091 = vunpack.c.h.b16 %v1541
          %v2092 = vunpack.c.l.b16 %v1542
          %v2093 = vunpack.c.h.b16 %v1542
          %v2094 = vunpack.c.l.b16 %v1543
          %v2095 = vunpack.c.h.b16 %v1543
          %v2096 = vunpack.c.l.b16 %v1544
          %v2097 = vunpack.c.h.b16 %v1544
          %v2098 = vunpack.c.l.b16 %v1545
          %v2099 = vunpack.c.h.b16 %v1545
          %v2100 = vunpack.c.l.b16 %v1546
          %v2101 = vunpack.c.h.b16 %v1546
          %v2102 = vunpack.c.l.b16 %v1547
          %v2103 = vunpack.c.h.b16 %v1547
          %v2104 = vunpack.c.l.b16 %v1548
          %v2105 = vunpack.c.h.b16 %v1548
          %v2106 = vunpack.c.l.b16 %v1549
          %v2107 = vunpack.c.h.b16 %v1549
          %v2108 = vunpack.c.l.b16 %v1550
          %v2109 = vunpack.c.h.b16 %v1550
          %v2110 = vunpack.c.l.b16 %v1551
          %v2111 = vunpack.c.h.b16 %v1551
          %v2112 = vunpack.c.l.b16 %v1552
          %v2113 = vunpack.c.h.b16 %v1552
          %v2114 = vunpack.c.l.b16 %v1553
          %v2115 = vunpack.c.h.b16 %v1553
          %v2116 = vunpack.c.l.b16 %v1554
          %v2117 = vunpack.c.h.b16 %v1554
          %v2118 = vunpack.c.l.b16 %v1555
          %v2119 = vunpack.c.h.b16 %v1555
          %v2120 = vunpack.c.l.b16 %v1556
          %v2121 = vunpack.c.h.b16 %v1556
          %v2122 = vunpack.c.l.b16 %v1557
          %v2123 = vunpack.c.h.b16 %v1557
          %v2124 = vunpack.c.l.b16 %v1558
          %v2125 = vunpack.c.h.b16 %v1558
          %v2126 = vunpack.c.l.b16 %v1559
          %v2127 = vunpack.c.h.b16 %v1559
          %v2128 = vunpack.c.l.b16 %v1560
          %v2129 = vunpack.c.h.b16 %v1560
          %v2130 = vunpack.c.l.b16 %v1561
          %v2131 = vunpack.c.h.b16 %v1561
          %v2132 = vunpack.c.l.b16 %v1562
          %v2133 = vunpack.c.h.b16 %v1562
          %v2134 = vunpack.c.l.b16 %v1563
          %v2135 = vunpack.c.h.b16 %v1563
          %v2136 = vunpack.c.l.b16 %v1564
          %v2137 = vunpack.c.h.b16 %v1564
          %v2138 = vunpack.c.l.b16 %v1565
          %v2139 = vunpack.c.h.b16 %v1565
          %v2140 = vunpack.c.l.b16 %v1566
          %v2141 = vunpack.c.h.b16 %v1566
          %v2142 = vunpack.c.l.b16 %v1567
          %v2143 = vunpack.c.h.b16 %v1567
          %v2144 = vunpack.c.l.b16 %v1568
          %v2145 = vunpack.c.h.b16 %v1568
          %v2146 = vunpack.c.l.b16 %v1569
          %v2147 = vunpack.c.h.b16 %v1569
          %v2148 = vunpack.c.l.b16 %v1570
          %v2149 = vunpack.c.h.b16 %v1570
          %v2150 = vunpack.c.l.b16 %v1571
          %v2151 = vunpack.c.h.b16 %v1571
          %v2152 = vunpack.c.l.b16 %v1572
          %v2153 = vunpack.c.h.b16 %v1572
          %v2154 = vunpack.c.l.b16 %v1573
          %v2155 = vunpack.c.h.b16 %v1573
          %v2156 = vunpack.c.l.b16 %v1574
          %v2157 = vunpack.c.h.b16 %v1574
          %v2158 = vunpack.c.l.b16 %v1575
          %v2159 = vunpack.c.h.b16 %v1575
          %v2160 = vunpack.c.l.b16 %v1576
          %v2161 = vunpack.c.h.b16 %v1576
          %v2162 = vunpack.c.l.b16 %v1577
          %v2163 = vunpack.c.h.b16 %v1577
          %v2164 = vunpack.c.l.b16 %v1578
          %v2165 = vunpack.c.h.b16 %v1578
          %v2166 = vunpack.c.l.b16 %v1579
          %v2167 = vunpack.c.h.b16 %v1579
          %v2168 = vunpack.c.l.b16 %v1580
          %v2169 = vunpack.c.h.b16 %v1580
          %v2170 = vunpack.c.l.b16 %v1581
          %v2171 = vunpack.c.h.b16 %v1581
          %v2172 = vunpack.c.l.b16 %v1582
          %v2173 = vunpack.c.h.b16 %v1582
          %v2174 = vunpack.c.l.b16 %v1583
          %v2175 = vunpack.c.h.b16 %v1583
          %v2176 = vunpack.c.l.b16 %v1584
          %v2177 = vunpack.c.h.b16 %v1584
          %v2178 = vunpack.c.l.b16 %v1585
          %v2179 = vunpack.c.h.b16 %v1585
          %v2180 = vunpack.c.l.b16 %v1586
          %v2181 = vunpack.c.h.b16 %v1586
          %v2182 = vunpack.c.l.b16 %v1587
          %v2183 = vunpack.c.h.b16 %v1587
          %v2184 = vunpack.c.l.b16 %v1588
          %v2185 = vunpack.c.h.b16 %v1588
          %v2186 = vunpack.c.l.b16 %v1589
          %v2187 = vunpack.c.h.b16 %v1589
          %v2188 = vunpack.c.l.b16 %v1590
          %v2189 = vunpack.c.h.b16 %v1590
          %v2190 = vunpack.c.l.b16 %v1591
          %v2191 = vunpack.c.h.b16 %v1591
          %v2192 = vunpack.c.l.b16 %v1592
          %v2193 = vunpack.c.h.b16 %v1592
          %v2194 = vunpack.c.l.b16 %v1593
          %v2195 = vunpack.c.h.b16 %v1593
          %v2196 = vunpack.c.l.b16 %v1594
          %v2197 = vunpack.c.h.b16 %v1594
          %v2198 = vunpack.c.l.b16 %v1595
          %v2199 = vunpack.c.h.b16 %v1595
          %v2200 = vunpack.c.l.b16 %v1596
          %v2201 = vunpack.c.h.b16 %v1596
          %v2202 = vunpack.c.l.b16 %v1597
          %v2203 = vunpack.c.h.b16 %v1597
          %v2204 = vunpack.c.l.b16 %v1598
          %v2205 = vunpack.c.h.b16 %v1598
          %v2206 = vunpack.c.l.b16 %v1599
          %v2207 = vunpack.c.h.b16 %v1599
          %v2208 = vunpack.c.l.b16 %v1600
          %v2209 = vunpack.c.h.b16 %v1600
          %v2210 = vunpack.c.l.b16 %v1601
          %v2211 = vunpack.c.h.b16 %v1601
          %v2212 = vunpack.c.l.b16 %v1602
          %v2213 = vunpack.c.h.b16 %v1602
          %v2214 = vunpack.c.l.b16 %v1603
          %v2215 = vunpack.c.h.b16 %v1603
          %v2216 = vunpack.c.l.b16 %v1604
          %v2217 = vunpack.c.h.b16 %v1604
          %v2218 = vunpack.c.l.b16 %v1605
          %v2219 = vunpack.c.h.b16 %v1605
          %v2220 = vunpack.c.l.b16 %v1606
          %v2221 = vunpack.c.h.b16 %v1606
          %v2222 = vunpack.c.l.b16 %v1607
          %v2223 = vunpack.c.h.b16 %v1607
          %v2224 = vunpack.c.l.b16 %v1608
          %v2225 = vunpack.c.h.b16 %v1608
          %v2226 = vunpack.c.l.b16 %v1609
          %v2227 = vunpack.c.h.b16 %v1609
          %v2228 = vunpack.c.l.b16 %v1610
          %v2229 = vunpack.c.h.b16 %v1610
          %v2230 = vunpack.c.l.b16 %v1611
          %v2231 = vunpack.c.h.b16 %v1611
          %v2232 = vunpack.c.l.b16 %v1612
          %v2233 = vunpack.c.h.b16 %v1612
          %v2234 = vunpack.c.l.b16 %v1613
          %v2235 = vunpack.c.h.b16 %v1613
          %v2236 = vunpack.c.l.b16 %v1614
          %v2237 = vunpack.c.h.b16 %v1614
          %v2238 = vunpack.c.l.b16 %v1615
          %v2239 = vunpack.c.h.b16 %v1615
          %v2240 = vunpack.c.l.b16 %v1616
          %v2241 = vunpack.c.h.b16 %v1616
          %v2242 = vunpack.c.l.b16 %v1617
          %v2243 = vunpack.c.h.b16 %v1617
          %v2244 = vunpack.c.l.b16 %v1618
          %v2245 = vunpack.c.h.b16 %v1618
          %v2246 = vunpack.c.l.b16 %v1619
          %v2247 = vunpack.c.h.b16 %v1619
          %v2248 = vunpack.c.l.b16 %v1620
          %v2249 = vunpack.c.h.b16 %v1620
          %v2250 = vunpack.c.l.b16 %v1621
          %v2251 = vunpack.c.h.b16 %v1621
          %v2252 = vunpack.c.l.b16 %v1622
          %v2253 = vunpack.c.h.b16 %v1622
          %v2254 = vunpack.c.l.b16 %v1623
          %v2255 = vunpack.c.h.b16 %v1623
          %v2256 = vunpack.c.l.b16 %v1624
          %v2257 = vunpack.c.h.b16 %v1624
          %v2258 = vunpack.c.l.b16 %v1625
          %v2259 = vunpack.c.h.b16 %v1625
          %v2260 = vunpack.c.l.b16 %v1626
          %v2261 = vunpack.c.h.b16 %v1626
          %v2262 = vunpack.c.l.b16 %v1627
          %v2263 = vunpack.c.h.b16 %v1627
          %v2264 = vunpack.c.l.b16 %v1628
          %v2265 = vunpack.c.h.b16 %v1628
          %v2266 = vunpack.c.l.b16 %v1629
          %v2267 = vunpack.c.h.b16 %v1629
          %v2268 = vunpack.c.l.b16 %v1630
          %v2269 = vunpack.c.h.b16 %v1630
          %v2270 = vunpack.c.l.b16 %v1631
          %v2271 = vunpack.c.h.b16 %v1631
          %v2272 = vunpack.c.l.b16 %v1632
          %v2273 = vunpack.c.h.b16 %v1632
          %v2274 = vunpack.c.l.b16 %v1633
          %v2275 = vunpack.c.h.b16 %v1633
          %v2276 = vunpack.c.l.b16 %v1634
          %v2277 = vunpack.c.h.b16 %v1634
          %v2278 = vunpack.c.l.b16 %v1635
          %v2279 = vunpack.c.h.b16 %v1635
          %v2280 = vunpack.c.l.b16 %v1636
          %v2281 = vunpack.c.h.b16 %v1636
          %v2282 = vunpack.c.l.b16 %v1637
          %v2283 = vunpack.c.h.b16 %v1637
          %v2284 = vunpack.c.l.b16 %v1638
          %v2285 = vunpack.c.h.b16 %v1638
          %v2286 = vunpack.c.l.b16 %v1639
          %v2287 = vunpack.c.h.b16 %v1639
          %v2288 = vunpack.c.l.b16 %v1640
          %v2289 = vunpack.c.h.b16 %v1640
          %v2290 = vunpack.c.l.b16 %v1641
          %v2291 = vunpack.c.h.b16 %v1641
          %v2292 = vunpack.c.l.b16 %v1642
          %v2293 = vunpack.c.h.b16 %v1642
          %v2294 = vunpack.c.l.b16 %v1643
          %v2295 = vunpack.c.h.b16 %v1643
          %v2296 = vunpack.c.l.b16 %v1644
          %v2297 = vunpack.c.h.b16 %v1644
          %v2298 = vunpack.c.l.b16 %v1645
          %v2299 = vunpack.c.h.b16 %v1645
          %v2300 = vunpack.c.l.b16 %v1646
          %v2301 = vunpack.c.h.b16 %v1646
          %v2302 = vunpack.c.l.b16 %v1647
          %v2303 = vunpack.c.h.b16 %v1647
          %v2304 = vunpack.c.l.b16 %v1648
          %v2305 = vunpack.c.h.b16 %v1648
          %v2306 = vunpack.c.l.b16 %v1649
          %v2307 = vunpack.c.h.b16 %v1649
          %v2308 = vunpack.c.l.b16 %v1650
          %v2309 = vunpack.c.h.b16 %v1650
          %v2310 = vunpack.c.l.b16 %v1651
          %v2311 = vunpack.c.h.b16 %v1651
          %v2312 = vunpack.c.l.b16 %v1652
          %v2313 = vunpack.c.h.b16 %v1652
          %v2314 = vunpack.c.l.b16 %v1653
          %v2315 = vunpack.c.h.b16 %v1653
          %v2316 = vunpack.c.l.b16 %v1654
          %v2317 = vunpack.c.h.b16 %v1654
          %v2318 = vunpack.c.l.b16 %v1655
          %v2319 = vunpack.c.h.b16 %v1655
          %v2320 = vunpack.c.l.b16 %v1656
          %v2321 = vunpack.c.h.b16 %v1656
          %v2322 = vunpack.c.l.b16 %v1657
          %v2323 = vunpack.c.h.b16 %v1657
          %v2324 = vunpack.c.l.b16 %v1658
          %v2325 = vunpack.c.h.b16 %v1658
          %v2326 = vunpack.c.l.b16 %v1659
          %v2327 = vunpack.c.h.b16 %v1659
          %v2328 = vunpack.c.l.b16 %v1660
          %v2329 = vunpack.c.h.b16 %v1660
          %v2330 = vunpack.c.l.b16 %v1661
          %v2331 = vunpack.c.h.b16 %v1661
          %v2332 = vunpack.c.l.b16 %v1662
          %v2333 = vunpack.c.h.b16 %v1662
          %v2334 = vunpack.c.l.b16 %v1663
          %v2335 = vunpack.c.h.b16 %v1663
          %v2336 = vunpack.c.l.b16 %v1664
          %v2337 = vunpack.c.h.b16 %v1664
          %v2338 = vunpack.c.l.b16 %v1665
          %v2339 = vunpack.c.h.b16 %v1665
          %v2340 = vunpack.c.l.b16 %v1666
          %v2341 = vunpack.c.h.b16 %v1666
          %v2342 = vunpack.c.l.b16 %v1667
          %v2343 = vunpack.c.h.b16 %v1667
          %v2344 = vunpack.c.l.b16 %v1668
          %v2345 = vunpack.c.h.b16 %v1668
          %v2346 = vunpack.c.l.b16 %v1669
          %v2347 = vunpack.c.h.b16 %v1669
          %v2348 = vunpack.c.l.b16 %v1670
          %v2349 = vunpack.c.h.b16 %v1670
          %v2350 = vunpack.c.l.b16 %v1671
          %v2351 = vunpack.c.h.b16 %v1671
          %v2352 = vunpack.c.l.b16 %v1672
          %v2353 = vunpack.c.h.b16 %v1672
          %v2354 = vunpack.c.l.b16 %v1673
          %v2355 = vunpack.c.h.b16 %v1673
          %v2356 = vunpack.c.l.b16 %v1674
          %v2357 = vunpack.c.h.b16 %v1674
          %v2358 = vunpack.c.l.b16 %v1675
          %v2359 = vunpack.c.h.b16 %v1675
          %v2360 = vunpack.c.l.b16 %v1676
          %v2361 = vunpack.c.h.b16 %v1676
          %v2362 = vunpack.c.l.b16 %v1677
          %v2363 = vunpack.c.h.b16 %v1677
          %v2364 = vunpack.c.l.b16 %v1678
          %v2365 = vunpack.c.h.b16 %v1678
          %v2366 = vunpack.c.l.b16 %v1679
          %v2367 = vunpack.c.h.b16 %v1679
          %v2368 = vunpack.c.l.b16 %v1680
          %v2369 = vunpack.c.h.b16 %v1680
          %v2370 = vunpack.c.l.b16 %v1681
          %v2371 = vunpack.c.h.b16 %v1681
          %v2372 = vunpack.c.l.b16 %v1682
          %v2373 = vunpack.c.h.b16 %v1682
          %v2374 = vunpack.c.l.b16 %v1683
          %v2375 = vunpack.c.h.b16 %v1683
          %v2376 = vunpack.c.l.b16 %v1684
          %v2377 = vunpack.c.h.b16 %v1684
          %v2378 = vunpack.c.l.b16 %v1685
          %v2379 = vunpack.c.h.b16 %v1685
          %v2380 = vunpack.c.l.b16 %v1686
          %v2381 = vunpack.c.h.b16 %v1686
          %v2382 = vunpack.c.l.b16 %v1687
          %v2383 = vunpack.c.h.b16 %v1687
          %v2384 = vunpack.c.l.b16 %v1688
          %v2385 = vunpack.c.h.b16 %v1688
          %v2386 = vunpack.c.l.b16 %v1689
          %v2387 = vunpack.c.h.b16 %v1689
          %v2388 = vunpack.c.l.b16 %v1690
          %v2389 = vunpack.c.h.b16 %v1690
          %v2390 = vunpack.c.l.b16 %v1691
          %v2391 = vunpack.c.h.b16 %v1691
          %v2392 = vunpack.c.l.b16 %v1692
          %v2393 = vunpack.c.h.b16 %v1692
          %v2394 = vunpack.c.l.b16 %v1693
          %v2395 = vunpack.c.h.b16 %v1693
          %v2396 = vunpack.c.l.b16 %v1694
          %v2397 = vunpack.c.h.b16 %v1694
          %v2398 = vunpack.c.l.b16 %v1695
          %v2399 = vunpack.c.h.b16 %v1695
          %v2400 = vunpack.c.l.b16 %v1696
          %v2401 = vunpack.c.h.b16 %v1696
          %v2402 = vunpack.c.l.b16 %v1697
          %v2403 = vunpack.c.h.b16 %v1697
          %v2404 = vunpack.c.l.b16 %v1698
          %v2405 = vunpack.c.h.b16 %v1698
          %v2406 = vunpack.c.l.b16 %v1699
          %v2407 = vunpack.c.h.b16 %v1699
          %v2408 = vunpack.c.l.b16 %v1700
          %v2409 = vunpack.c.h.b16 %v1700
          %v2410 = vunpack.c.l.b16 %v1701
          %v2411 = vunpack.c.h.b16 %v1701
          %v2412 = vunpack.c.l.b16 %v1702
          %v2413 = vunpack.c.h.b16 %v1702
          %v2414 = vunpack.c.l.b16 %v1703
          %v2415 = vunpack.c.h.b16 %v1703
          %v2416 = vunpack.c.l.b16 %v1704
          %v2417 = vunpack.c.h.b16 %v1704
          %v2418 = vunpack.c.l.b16 %v1705
          %v2419 = vunpack.c.h.b16 %v1705
          %v2420 = vunpack.c.l.b16 %v1706
          %v2421 = vunpack.c.h.b16 %v1706
          %v2422 = vunpack.c.l.b16 %v1707
          %v2423 = vunpack.c.h.b16 %v1707
          %v2424 = vunpack.c.l.b16 %v1708
          %v2425 = vunpack.c.h.b16 %v1708
          %v2426 = vunpack.c.l.b16 %v1709
          %v2427 = vunpack.c.h.b16 %v1709
          %v2428 = vunpack.c.l.b16 %v1710
          %v2429 = vunpack.c.h.b16 %v1710
          %v2430 = vunpack.c.l.b16 %v1711
          %v2431 = vunpack.c.h.b16 %v1711
          %v2432 = vunpack.c.l.b16 %v1712
          %v2433 = vunpack.c.h.b16 %v1712
          %v2434 = vunpack.c.l.b16 %v1713
          %v2435 = vunpack.c.h.b16 %v1713
          %v2436 = vunpack.c.l.b16 %v1714
          %v2437 = vunpack.c.h.b16 %v1714
          %v2438 = vunpack.c.l.b16 %v1715
          %v2439 = vunpack.c.h.b16 %v1715
          %v2440 = vunpack.c.l.b16 %v1716
          %v2441 = vunpack.c.h.b16 %v1716
          %v2442 = vunpack.c.l.b16 %v1717
          %v2443 = vunpack.c.h.b16 %v1717
          %v2444 = vunpack.c.l.b16 %v1718
          %v2445 = vunpack.c.h.b16 %v1718
          %v2446 = vunpack.c.l.b16 %v1719
          %v2447 = vunpack.c.h.b16 %v1719
          %v2448 = vunpack.c.l.b16 %v1720
          %v2449 = vunpack.c.h.b16 %v1720
          %v2450 = vunpack.c.l.b16 %v1721
          %v2451 = vunpack.c.h.b16 %v1721
          %v2452 = vunpack.c.l.b16 %v1722
          %v2453 = vunpack.c.h.b16 %v1722
          %v2454 = vunpack.c.l.b16 %v1723
          %v2455 = vunpack.c.h.b16 %v1723
          %v2456 = vunpack.c.l.b16 %v1724
          %v2457 = vunpack.c.h.b16 %v1724
          %v2458 = vunpack.c.l.b16 %v1725
          %v2459 = vunpack.c.h.b16 %v1725
          %v2460 = vunpack.c.l.b16 %v1726
          %v2461 = vunpack.c.h.b16 %v1726
          %v2462 = vunpack.c.l.b16 %v1727
          %v2463 = vunpack.c.h.b16 %v1727
          %v2464 = vunpack.c.l.b16 %v1728
          %v2465 = vunpack.c.h.b16 %v1728
          %v2466 = vunpack.c.l.b16 %v1729
          %v2467 = vunpack.c.h.b16 %v1729
          %v2468 = vunpack.c.l.b16 %v1730
          %v2469 = vunpack.c.h.b16 %v1730
          %v2470 = vunpack.c.l.b16 %v1731
          %v2471 = vunpack.c.h.b16 %v1731
          %v2472 = vunpack.c.l.b16 %v1732
          %v2473 = vunpack.c.h.b16 %v1732
          %v2474 = vunpack.c.l.b16 %v1733
          %v2475 = vunpack.c.h.b16 %v1733
          %v2476 = vunpack.c.l.b16 %v1734
          %v2477 = vunpack.c.h.b16 %v1734
          %v2478 = vunpack.c.l.b16 %v1735
          %v2479 = vunpack.c.h.b16 %v1735
          %v2480 = vunpack.c.l.b16 %v1736
          %v2481 = vunpack.c.h.b16 %v1736
          %v2482 = vunpack.c.l.b16 %v1737
          %v2483 = vunpack.c.h.b16 %v1737
          %v2484 = vunpack.c.l.b16 %v1738
          %v2485 = vunpack.c.h.b16 %v1738
          %v2486 = vunpack.c.l.b16 %v1739
          %v2487 = vunpack.c.h.b16 %v1739
          %v2488 = vunpack.c.l.b16 %v1740
          %v2489 = vunpack.c.h.b16 %v1740
          %v2490 = vunpack.c.l.b16 %v1741
          %v2491 = vunpack.c.h.b16 %v1741
          %v2492 = vunpack.c.l.b16 %v1742
          %v2493 = vunpack.c.h.b16 %v1742
          %v2494 = vunpack.c.l.b16 %v1743
          %v2495 = vunpack.c.h.b16 %v1743
          %v2496 = vunpack.c.l.b16 %v1744
          %v2497 = vunpack.c.h.b16 %v1744
          %v2498 = vunpack.c.l.b16 %v1745
          %v2499 = vunpack.c.h.b16 %v1745
          %v2500 = vunpack.c.l.b16 %v1746
          %v2501 = vunpack.c.h.b16 %v1746
          %v2502 = vunpack.c.l.b16 %v1747
          %v2503 = vunpack.c.h.b16 %v1747
          %v2504 = vunpack.c.l.b16 %v1748
          %v2505 = vunpack.c.h.b16 %v1748
          %v2506 = vunpack.c.l.b16 %v1749
          %v2507 = vunpack.c.h.b16 %v1749
          %v2508 = vunpack.c.l.b16 %v1750
          %v2509 = vunpack.c.h.b16 %v1750
          %v2510 = vunpack.c.l.b16 %v1751
          %v2511 = vunpack.c.h.b16 %v1751
          %v2512 = vunpack.c.l.b16 %v1752
          %v2513 = vunpack.c.h.b16 %v1752
          %v2514 = vunpack.c.l.b16 %v1753
          %v2515 = vunpack.c.h.b16 %v1753
          %v2516 = vunpack.c.l.b16 %v1754
          %v2517 = vunpack.c.h.b16 %v1754
          %v2518 = vunpack.c.l.b16 %v1755
          %v2519 = vunpack.c.h.b16 %v1755
          %v2520 = vunpack.c.l.b16 %v1756
          %v2521 = vunpack.c.h.b16 %v1756
          %v2522 = vunpack.c.l.b16 %v1757
          %v2523 = vunpack.c.h.b16 %v1757
          %v2524 = vunpack.c.l.b16 %v1758
          %v2525 = vunpack.c.h.b16 %v1758
          %v2526 = vunpack.c.l.b16 %v1759
          %v2527 = vunpack.c.h.b16 %v1759
          %v2528 = vunpack.c.l.b16 %v1760
          %v2529 = vunpack.c.h.b16 %v1760
          %v2530 = vpack.c.b16 %v2022, %v2018
          %v2531 = vpack.c.b16 %v2023, %v2019
          %v2532 = vpack.c.b16 %v2024, %v2020
          %v2533 = vpack.c.b16 %v2025, %v2021
          %v2534 = vpack.c.b16 %v2030, %v2026
          %v2535 = vpack.c.b16 %v2031, %v2027
          %v2536 = vpack.c.b16 %v2032, %v2028
          %v2537 = vpack.c.b16 %v2033, %v2029
          %v2538 = vpack.c.b16 %v2038, %v2034
          %v2539 = vpack.c.b16 %v2039, %v2035
          %v2540 = vpack.c.b16 %v2040, %v2036
          %v2541 = vpack.c.b16 %v2041, %v2037
          %v2542 = vpack.c.b16 %v2046, %v2042
          %v2543 = vpack.c.b16 %v2047, %v2043
          %v2544 = vpack.c.b16 %v2048, %v2044
          %v2545 = vpack.c.b16 %v2049, %v2045
          %v2546 = vpack.c.b16 %v2054, %v2050
          %v2547 = vpack.c.b16 %v2055, %v2051
          %v2548 = vpack.c.b16 %v2056, %v2052
          %v2549 = vpack.c.b16 %v2057, %v2053
          %v2550 = vpack.c.b16 %v2062, %v2058
          %v2551 = vpack.c.b16 %v2063, %v2059
          %v2552 = vpack.c.b16 %v2064, %v2060
          %v2553 = vpack.c.b16 %v2065, %v2061
          %v2554 = vpack.c.b16 %v2070, %v2066
          %v2555 = vpack.c.b16 %v2071, %v2067
          %v2556 = vpack.c.b16 %v2072, %v2068
          %v2557 = vpack.c.b16 %v2073, %v2069
          %v2558 = vpack.c.b16 %v2078, %v2074
          %v2559 = vpack.c.b16 %v2079, %v2075
          %v2560 = vpack.c.b16 %v2080, %v2076
          %v2561 = vpack.c.b16 %v2081, %v2077
          %v2562 = vpack.c.b16 %v2086, %v2082
          %v2563 = vpack.c.b16 %v2087, %v2083
          %v2564 = vpack.c.b16 %v2088, %v2084
          %v2565 = vpack.c.b16 %v2089, %v2085
          %v2566 = vpack.c.b16 %v2094, %v2090
          %v2567 = vpack.c.b16 %v2095, %v2091
          %v2568 = vpack.c.b16 %v2096, %v2092
          %v2569 = vpack.c.b16 %v2097, %v2093
          %v2570 = vpack.c.b16 %v2102, %v2098
          %v2571 = vpack.c.b16 %v2103, %v2099
          %v2572 = vpack.c.b16 %v2104, %v2100
          %v2573 = vpack.c.b16 %v2105, %v2101
          %v2574 = vpack.c.b16 %v2110, %v2106
          %v2575 = vpack.c.b16 %v2111, %v2107
          %v2576 = vpack.c.b16 %v2112, %v2108
          %v2577 = vpack.c.b16 %v2113, %v2109
          %v2578 = vpack.c.b16 %v2118, %v2114
          %v2579 = vpack.c.b16 %v2119, %v2115
          %v2580 = vpack.c.b16 %v2120, %v2116
          %v2581 = vpack.c.b16 %v2121, %v2117
          %v2582 = vpack.c.b16 %v2126, %v2122
          %v2583 = vpack.c.b16 %v2127, %v2123
          %v2584 = vpack.c.b16 %v2128, %v2124
          %v2585 = vpack.c.b16 %v2129, %v2125
          %v2586 = vpack.c.b16 %v2134, %v2130
          %v2587 = vpack.c.b16 %v2135, %v2131
          %v2588 = vpack.c.b16 %v2136, %v2132
          %v2589 = vpack.c.b16 %v2137, %v2133
          %v2590 = vpack.c.b16 %v2142, %v2138
          %v2591 = vpack.c.b16 %v2143, %v2139
          %v2592 = vpack.c.b16 %v2144, %v2140
          %v2593 = vpack.c.b16 %v2145, %v2141
          %v2594 = vpack.c.b16 %v2150, %v2146
          %v2595 = vpack.c.b16 %v2151, %v2147
          %v2596 = vpack.c.b16 %v2152, %v2148
          %v2597 = vpack.c.b16 %v2153, %v2149
          %v2598 = vpack.c.b16 %v2158, %v2154
          %v2599 = vpack.c.b16 %v2159, %v2155
          %v2600 = vpack.c.b16 %v2160, %v2156
          %v2601 = vpack.c.b16 %v2161, %v2157
          %v2602 = vpack.c.b16 %v2166, %v2162
          %v2603 = vpack.c.b16 %v2167, %v2163
          %v2604 = vpack.c.b16 %v2168, %v2164
          %v2605 = vpack.c.b16 %v2169, %v2165
          %v2606 = vpack.c.b16 %v2174, %v2170
          %v2607 = vpack.c.b16 %v2175, %v2171
          %v2608 = vpack.c.b16 %v2176, %v2172
          %v2609 = vpack.c.b16 %v2177, %v2173
          %v2610 = vpack.c.b16 %v2182, %v2178
          %v2611 = vpack.c.b16 %v2183, %v2179
          %v2612 = vpack.c.b16 %v2184, %v2180
          %v2613 = vpack.c.b16 %v2185, %v2181
          %v2614 = vpack.c.b16 %v2190, %v2186
          %v2615 = vpack.c.b16 %v2191, %v2187
          %v2616 = vpack.c.b16 %v2192, %v2188
          %v2617 = vpack.c.b16 %v2193, %v2189
          %v2618 = vpack.c.b16 %v2198, %v2194
          %v2619 = vpack.c.b16 %v2199, %v2195
          %v2620 = vpack.c.b16 %v2200, %v2196
          %v2621 = vpack.c.b16 %v2201, %v2197
          %v2622 = vpack.c.b16 %v2206, %v2202
          %v2623 = vpack.c.b16 %v2207, %v2203
          %v2624 = vpack.c.b16 %v2208, %v2204
          %v2625 = vpack.c.b16 %v2209, %v2205
          %v2626 = vpack.c.b16 %v2214, %v2210
          %v2627 = vpack.c.b16 %v2215, %v2211
          %v2628 = vpack.c.b16 %v2216, %v2212
          %v2629 = vpack.c.b16 %v2217, %v2213
          %v2630 = vpack.c.b16 %v2222, %v2218
          %v2631 = vpack.c.b16 %v2223, %v2219
          %v2632 = vpack.c.b16 %v2224, %v2220
          %v2633 = vpack.c.b16 %v2225, %v2221
          %v2634 = vpack.c.b16 %v2230, %v2226
          %v2635 = vpack.c.b16 %v2231, %v2227
          %v2636 = vpack.c.b16 %v2232, %v2228
          %v2637 = vpack.c.b16 %v2233, %v2229
          %v2638 = vpack.c.b16 %v2238, %v2234
          %v2639 = vpack.c.b16 %v2239, %v2235
          %v2640 = vpack.c.b16 %v2240, %v2236
          %v2641 = vpack.c.b16 %v2241, %v2237
          %v2642 = vpack.c.b16 %v2246, %v2242
          %v2643 = vpack.c.b16 %v2247, %v2243
          %v2644 = vpack.c.b16 %v2248, %v2244
          %v2645 = vpack.c.b16 %v2249, %v2245
          %v2646 = vpack.c.b16 %v2254, %v2250
          %v2647 = vpack.c.b16 %v2255, %v2251
          %v2648 = vpack.c.b16 %v2256, %v2252
          %v2649 = vpack.c.b16 %v2257, %v2253
          %v2650 = vpack.c.b16 %v2262, %v2258
          %v2651 = vpack.c.b16 %v2263, %v2259
          %v2652 = vpack.c.b16 %v2264, %v2260
          %v2653 = vpack.c.b16 %v2265, %v2261
          %v2654 = vpack.c.b16 %v2270, %v2266
          %v2655 = vpack.c.b16 %v2271, %v2267
          %v2656 = vpack.c.b16 %v2272, %v2268
          %v2657 = vpack.c.b16 %v2273, %v2269
          %v2658 = vpack.c.b16 %v2278, %v2274
          %v2659 = vpack.c.b16 %v2279, %v2275
          %v2660 = vpack.c.b16 %v2280, %v2276
          %v2661 = vpack.c.b16 %v2281, %v2277
          %v2662 = vpack.c.b16 %v2286, %v2282
          %v2663 = vpack.c.b16 %v2287, %v2283
          %v2664 = vpack.c.b16 %v2288, %v2284
          %v2665 = vpack.c.b16 %v2289, %v2285
          %v2666 = vpack.c.b16 %v2294, %v2290
          %v2667 = vpack.c.b16 %v2295, %v2291
          %v2668 = vpack.c.b16 %v2296, %v2292
          %v2669 = vpack.c.b16 %v2297, %v2293
          %v2670 = vpack.c.b16 %v2302, %v2298
          %v2671 = vpack.c.b16 %v2303, %v2299
          %v2672 = vpack.c.b16 %v2304, %v2300
          %v2673 = vpack.c.b16 %v2305, %v2301
          %v2674 = vpack.c.b16 %v2310, %v2306
          %v2675 = vpack.c.b16 %v2311, %v2307
          %v2676 = vpack.c.b16 %v2312, %v2308
          %v2677 = vpack.c.b16 %v2313, %v2309
          %v2678 = vpack.c.b16 %v2318, %v2314
          %v2679 = vpack.c.b16 %v2319, %v2315
          %v2680 = vpack.c.b16 %v2320, %v2316
          %v2681 = vpack.c.b16 %v2321, %v2317
          %v2682 = vpack.c.b16 %v2326, %v2322
          %v2683 = vpack.c.b16 %v2327, %v2323
          %v2684 = vpack.c.b16 %v2328, %v2324
          %v2685 = vpack.c.b16 %v2329, %v2325
          %v2686 = vpack.c.b16 %v2334, %v2330
          %v2687 = vpack.c.b16 %v2335, %v2331
          %v2688 = vpack.c.b16 %v2336, %v2332
          %v2689 = vpack.c.b16 %v2337, %v2333
          %v2690 = vpack.c.b16 %v2342, %v2338
          %v2691 = vpack.c.b16 %v2343, %v2339
          %v2692 = vpack.c.b16 %v2344, %v2340
          %v2693 = vpack.c.b16 %v2345, %v2341
          %v2694 = vpack.c.b16 %v2350, %v2346
          %v2695 = vpack.c.b16 %v2351, %v2347
          %v2696 = vpack.c.b16 %v2352, %v2348
          %v2697 = vpack.c.b16 %v2353, %v2349
          %v2698 = vpack.c.b16 %v2358, %v2354
          %v2699 = vpack.c.b16 %v2359, %v2355
          %v2700 = vpack.c.b16 %v2360, %v2356
          %v2701 = vpack.c.b16 %v2361, %v2357
          %v2702 = vpack.c.b16 %v2366, %v2362
          %v2703 = vpack.c.b16 %v2367, %v2363
          %v2704 = vpack.c.b16 %v2368, %v2364
          %v2705 = vpack.c.b16 %v2369, %v2365
          %v2706 = vpack.c.b16 %v2374, %v2370
          %v2707 = vpack.c.b16 %v2375, %v2371
          %v2708 = vpack.c.b16 %v2376, %v2372
          %v2709 = vpack.c.b16 %v2377, %v2373
          %v2710 = vpack.c.b16 %v2382, %v2378
          %v2711 = vpack.c.b16 %v2383, %v2379
          %v2712 = vpack.c.b16 %v2384, %v2380
          %v2713 = vpack.c.b16 %v2385, %v2381
          %v2714 = vpack.c.b16 %v2390, %v2386
          %v2715 = vpack.c.b16 %v2391, %v2387
          %v2716 = vpack.c.b16 %v2392, %v2388
          %v2717 = vpack.c.b16 %v2393, %v2389
          %v2718 = vpack.c.b16 %v2398, %v2394
          %v2719 = vpack.c.b16 %v2399, %v2395
          %v2720 = vpack.c.b16 %v2400, %v2396
          %v2721 = vpack.c.b16 %v2401, %v2397
          %v2722 = vpack.c.b16 %v2406, %v2402
          %v2723 = vpack.c.b16 %v2407, %v2403
          %v2724 = vpack.c.b16 %v2408, %v2404
          %v2725 = vpack.c.b16 %v2409, %v2405
          %v2726 = vpack.c.b16 %v2414, %v2410
          %v2727 = vpack.c.b16 %v2415, %v2411
          %v2728 = vpack.c.b16 %v2416, %v2412
          %v2729 = vpack.c.b16 %v2417, %v2413
          %v2730 = vpack.c.b16 %v2422, %v2418
          %v2731 = vpack.c.b16 %v2423, %v2419
          %v2732 = vpack.c.b16 %v2424, %v2420
          %v2733 = vpack.c.b16 %v2425, %v2421
          %v2734 = vpack.c.b16 %v2430, %v2426
          %v2735 = vpack.c.b16 %v2431, %v2427
          %v2736 = vpack.c.b16 %v2432, %v2428
          %v2737 = vpack.c.b16 %v2433, %v2429
          %v2738 = vpack.c.b16 %v2438, %v2434
          %v2739 = vpack.c.b16 %v2439, %v2435
          %v2740 = vpack.c.b16 %v2440, %v2436
          %v2741 = vpack.c.b16 %v2441, %v2437
          %v2742 = vpack.c.b16 %v2446, %v2442
          %v2743 = vpack.c.b16 %v2447, %v2443
          %v2744 = vpack.c.b16 %v2448, %v2444
          %v2745 = vpack.c.b16 %v2449, %v2445
          %v2746 = vpack.c.b16 %v2454, %v2450
          %v2747 = vpack.c.b16 %v2455, %v2451
          %v2748 = vpack.c.b16 %v2456, %v2452
          %v2749 = vpack.c.b16 %v2457, %v2453
          %v2750 = vpack.c.b16 %v2462, %v2458
          %v2751 = vpack.c.b16 %v2463, %v2459
          %v2752 = vpack.c.b16 %v2464, %v2460
          %v2753 = vpack.c.b16 %v2465, %v2461
          %v2754 = vpack.c.b16 %v2470, %v2466
          %v2755 = vpack.c.b16 %v2471, %v2467
          %v2756 = vpack.c.b16 %v2472, %v2468
          %v2757 = vpack.c.b16 %v2473, %v2469
          %v2758 = vpack.c.b16 %v2478, %v2474
          %v2759 = vpack.c.b16 %v2479, %v2475
          %v2760 = vpack.c.b16 %v2480, %v2476
          %v2761 = vpack.c.b16 %v2481, %v2477
          %v2762 = vpack.c.b16 %v2486, %v2482
          %v2763 = vpack.c.b16 %v2487, %v2483
          %v2764 = vpack.c.b16 %v2488, %v2484
          %v2765 = vpack.c.b16 %v2489, %v2485
          %v2766 = vpack.c.b16 %v2494, %v2490
          %v2767 = vpack.c.b16 %v2495, %v2491
          %v2768 = vpack.c.b16 %v2496, %v2492
          %v2769 = vpack.c.b16 %v2497, %v2493
          %v2770 = vpack.c.b16 %v2502, %v2498
          %v2771 = vpack.c.b16 %v2503, %v2499
          %v2772 = vpack.c.b16 %v2504, %v2500
          %v2773 = vpack.c.b16 %v2505, %v2501
          %v2774 = vpack.c.b16 %v2510, %v2506
          %v2775 = vpack.c.b16 %v2511, %v2507
          %v2776 = vpack.c.b16 %v2512, %v2508
          %v2777 = vpack.c.b16 %v2513, %v2509
          %v2778 = vpack.c.b16 %v2518, %v2514
          %v2779 = vpack.c.b16 %v2519, %v2515
          %v2780 = vpack.c.b16 %v2520, %v2516
          %v2781 = vpack.c.b16 %v2521, %v2517
          %v2782 = vpack.c.b16 %v2526, %v2522
          %v2783 = vpack.c.b16 %v2527, %v2523
          %v2784 = vpack.c.b16 %v2528, %v2524
          %v2785 = vpack.c.b16 %v2529, %v2525
          %v3043 = vlaneseq
          %v3044 = vshrl.u32 %v3043, 7
          %v3045 = vsub.s32 0, %v3044
          %v3046 = vrot.slane %v1761, %v3045
          %v3047 = vlaneseq
          %v3048 = vshrl.u32 %v3047, 7
          %v3049 = vsub.s32 1, %v3048
          %v3050 = vrot.slane %v1761, %v3049
          %v3051 = vlaneseq
          %v3052 = vshrl.u32 %v3051, 7
          %v3053 = vsub.s32 2, %v3052
          %v3054 = vrot.slane %v1761, %v3053
          %v3055 = vlaneseq
          %v3056 = vshrl.u32 %v3055, 7
          %v3057 = vsub.s32 3, %v3056
          %v3058 = vrot.slane %v1761, %v3057
          %3063 = vmatprep.subr.bf16.mxu0 %v2559
          %3064 = vmatpush1.bf16.msra.mxu0 %v2558
          %3065 = vmatprep.subr.bf16.mxu0 %v2555
          %3066 = vmatpush1.bf16.msra.mxu0 %v2554
          %3067 = vmatprep.subr.bf16.mxu0 %v2551
          %3068 = vmatpush1.bf16.msra.mxu0 %v2550
          %3069 = vmatprep.subr.bf16.mxu0 %v2547
          %3070 = vmatpush1.bf16.msra.mxu0 %v2546
          %3071 = vmatprep.subr.bf16.mxu0 %v2543
          %3072 = vmatpush1.bf16.msra.mxu0 %v2542
          %3073 = vmatprep.subr.bf16.mxu0 %v2539
          %3074 = vmatpush1.bf16.msra.mxu0 %v2538
          %3075 = vmatprep.subr.bf16.mxu0 %v2535
          %3076 = vmatpush1.bf16.msra.mxu0 %v2534
          %3077 = vmatprep.subr.bf16.mxu0 %v2531
          %3078 = vmatpush1.bf16.msra.mxu0 %v2530
          %3079 = vmatprep.subr.bf16.mxu0 %v2591
          %3080 = vmatpush2.bf16.msra.mxu0 %v2590
          %3081 = vmatprep.subr.bf16.mxu0 %v2587
          %3082 = vmatpush2.bf16.msra.mxu0 %v2586
          %3083 = vmatprep.subr.bf16.mxu0 %v2583
          %3084 = vmatpush2.bf16.msra.mxu0 %v2582
          %3085 = vmatprep.subr.bf16.mxu0 %v2579
          %3086 = vmatpush2.bf16.msra.mxu0 %v2578
          %3087 = vmatprep.subr.bf16.mxu0 %v2575
          %3088 = vmatpush2.bf16.msra.mxu0 %v2574
          %3089 = vmatprep.subr.bf16.mxu0 %v2571
          %3090 = vmatpush2.bf16.msra.mxu0 %v2570
          %3091 = vmatprep.subr.bf16.mxu0 %v2567
          %3092 = vmatpush2.bf16.msra.mxu0 %v2566
          %3093 = vmatprep.subr.bf16.mxu0 %v2563
          %3094 = vmatpush2.bf16.msra.mxu0 %v2562
          %3095 = vmatprep.mubr.bf16.mxu0 %v1498
          %3096 = vmatmul.mubr.bf16.gmra.mxu0 %v1497
          %v3097 = vpop.f32.mrf.mxu0
          %v3098 = vadd.f32 %v3046, %v3097
          %v3099 = vpop.f32.mrf.mxu0
          %v3100 = vadd.f32 %v3050, %v3099
          %v3101 = vpop.f32.mrf.mxu0
          %v3102 = vpop.f32.mrf.mxu0
          %3103 = vdwg.mxu0
          %3104 = vmatprep.subr.bf16.mxu0 %v2623
          %3105 = vmatpush1.bf16.msra.mxu0 %v2622
          %3106 = vmatprep.subr.bf16.mxu0 %v2619
          %3107 = vmatpush1.bf16.msra.mxu0 %v2618
          %3108 = vmatprep.subr.bf16.mxu0 %v2615
          %3109 = vmatpush1.bf16.msra.mxu0 %v2614
          %3110 = vmatprep.subr.bf16.mxu0 %v2611
          %3111 = vmatpush1.bf16.msra.mxu0 %v2610
          %3112 = vmatprep.subr.bf16.mxu0 %v2607
          %3113 = vmatpush1.bf16.msra.mxu0 %v2606
          %3114 = vmatprep.subr.bf16.mxu0 %v2603
          %3115 = vmatpush1.bf16.msra.mxu0 %v2602
          %3116 = vmatprep.subr.bf16.mxu0 %v2599
          %3117 = vmatpush1.bf16.msra.mxu0 %v2598
          %3118 = vmatprep.subr.bf16.mxu0 %v2595
          %3119 = vmatpush1.bf16.msra.mxu0 %v2594
          %3120 = vmatprep.subr.bf16.mxu0 %v2655
          %3121 = vmatpush2.bf16.msra.mxu0 %v2654
          %3122 = vmatprep.subr.bf16.mxu0 %v2651
          %3123 = vmatpush2.bf16.msra.mxu0 %v2650
          %3124 = vmatprep.subr.bf16.mxu0 %v2647
          %3125 = vmatpush2.bf16.msra.mxu0 %v2646
          %3126 = vmatprep.subr.bf16.mxu0 %v2643
          %3127 = vmatpush2.bf16.msra.mxu0 %v2642
          %3128 = vmatprep.subr.bf16.mxu0 %v2639
          %3129 = vmatpush2.bf16.msra.mxu0 %v2638
          %3130 = vmatprep.subr.bf16.mxu0 %v2635
          %3131 = vmatpush2.bf16.msra.mxu0 %v2634
          %3132 = vmatprep.subr.bf16.mxu0 %v2631
          %3133 = vmatpush2.bf16.msra.mxu0 %v2630
          %3134 = vmatprep.subr.bf16.mxu0 %v2627
          %3135 = vmatpush2.bf16.msra.mxu0 %v2626
          %3136 = vmatprep.mubr.bf16.mxu0 %v1500
          %3137 = vmatmul.mubr.bf16.gmra.mxu0 %v1499
          %v3138 = vpop.f32.mrf.mxu0
          %v3139 = vadd.f32 %v3098, %v3138
          %v3140 = vpop.f32.mrf.mxu0
          %v3141 = vadd.f32 %v3100, %v3140
          %v3142 = vpop.f32.mrf.mxu0
          %v3143 = vpop.f32.mrf.mxu0
          %3144 = vdwg.mxu0
          %3145 = vmatprep.subr.bf16.mxu0 %v2687
          %3146 = vmatpush1.bf16.msra.mxu0 %v2686
          %3147 = vmatprep.subr.bf16.mxu0 %v2683
          %3148 = vmatpush1.bf16.msra.mxu0 %v2682
          %3149 = vmatprep.subr.bf16.mxu0 %v2679
          %3150 = vmatpush1.bf16.msra.mxu0 %v2678
          %3151 = vmatprep.subr.bf16.mxu0 %v2675
          %3152 = vmatpush1.bf16.msra.mxu0 %v2674
          %3153 = vmatprep.subr.bf16.mxu0 %v2671
          %3154 = vmatpush1.bf16.msra.mxu0 %v2670
          %3155 = vmatprep.subr.bf16.mxu0 %v2667
          %3156 = vmatpush1.bf16.msra.mxu0 %v2666
          %3157 = vmatprep.subr.bf16.mxu0 %v2663
          %3158 = vmatpush1.bf16.msra.mxu0 %v2662
          %3159 = vmatprep.subr.bf16.mxu0 %v2659
          %3160 = vmatpush1.bf16.msra.mxu0 %v2658
          %3161 = vmatprep.subr.bf16.mxu0 %v2719
          %3162 = vmatpush2.bf16.msra.mxu0 %v2718
          %3163 = vmatprep.subr.bf16.mxu0 %v2715
          %3164 = vmatpush2.bf16.msra.mxu0 %v2714
          %3165 = vmatprep.subr.bf16.mxu0 %v2711
          %3166 = vmatpush2.bf16.msra.mxu0 %v2710
          %3167 = vmatprep.subr.bf16.mxu0 %v2707
          %3168 = vmatpush2.bf16.msra.mxu0 %v2706
          %3169 = vmatprep.subr.bf16.mxu0 %v2703
          %3170 = vmatpush2.bf16.msra.mxu0 %v2702
          %3171 = vmatprep.subr.bf16.mxu0 %v2699
          %3172 = vmatpush2.bf16.msra.mxu0 %v2698
          %3173 = vmatprep.subr.bf16.mxu0 %v2695
          %3174 = vmatpush2.bf16.msra.mxu0 %v2694
          %3175 = vmatprep.subr.bf16.mxu0 %v2691
          %3176 = vmatpush2.bf16.msra.mxu0 %v2690
          %3177 = vmatprep.mubr.bf16.mxu0 %v1502
          %3178 = vmatmul.mubr.bf16.gmra.mxu0 %v1501
          %v3179 = vpop.f32.mrf.mxu0
          %v3180 = vadd.f32 %v3139, %v3179
          %v3181 = vpop.f32.mrf.mxu0
          %v3182 = vadd.f32 %v3141, %v3181
          %v3183 = vpop.f32.mrf.mxu0
          %v3184 = vpop.f32.mrf.mxu0
          %3185 = vdwg.mxu0
          %3186 = vmatprep.subr.bf16.mxu0 %v2751
          %3187 = vmatpush1.bf16.msra.mxu0 %v2750
          %3188 = vmatprep.subr.bf16.mxu0 %v2747
          %3189 = vmatpush1.bf16.msra.mxu0 %v2746
          %3190 = vmatprep.subr.bf16.mxu0 %v2743
          %3191 = vmatpush1.bf16.msra.mxu0 %v2742
          %3192 = vmatprep.subr.bf16.mxu0 %v2739
          %3193 = vmatpush1.bf16.msra.mxu0 %v2738
          %3194 = vmatprep.subr.bf16.mxu0 %v2735
          %3195 = vmatpush1.bf16.msra.mxu0 %v2734
          %3196 = vmatprep.subr.bf16.mxu0 %v2731
          %3197 = vmatpush1.bf16.msra.mxu0 %v2730
          %3198 = vmatprep.subr.bf16.mxu0 %v2727
          %3199 = vmatpush1.bf16.msra.mxu0 %v2726
          %3200 = vmatprep.subr.bf16.mxu0 %v2723
          %3201 = vmatpush1.bf16.msra.mxu0 %v2722
          %3202 = vmatprep.subr.bf16.mxu0 %v2783
          %3203 = vmatpush2.bf16.msra.mxu0 %v2782
          %3204 = vmatprep.subr.bf16.mxu0 %v2779
          %3205 = vmatpush2.bf16.msra.mxu0 %v2778
          %3206 = vmatprep.subr.bf16.mxu0 %v2775
          %3207 = vmatpush2.bf16.msra.mxu0 %v2774
          %3208 = vmatprep.subr.bf16.mxu0 %v2771
          %3209 = vmatpush2.bf16.msra.mxu0 %v2770
          %3210 = vmatprep.subr.bf16.mxu0 %v2767
          %3211 = vmatpush2.bf16.msra.mxu0 %v2766
          %3212 = vmatprep.subr.bf16.mxu0 %v2763
          %3213 = vmatpush2.bf16.msra.mxu0 %v2762
          %3214 = vmatprep.subr.bf16.mxu0 %v2759
          %3215 = vmatpush2.bf16.msra.mxu0 %v2758
          %3216 = vmatprep.subr.bf16.mxu0 %v2755
          %3217 = vmatpush2.bf16.msra.mxu0 %v2754
          %3218 = vmatprep.mubr.bf16.mxu0 %v1504
          %3219 = vmatmul.mubr.bf16.gmra.mxu0 %v1503
          %v3220 = vpop.f32.mrf.mxu0
          %v3221 = vadd.f32 %v3180, %v3220
          %v3222 = vpop.f32.mrf.mxu0
          %v3223 = vadd.f32 %v3182, %v3222
          %v3224 = vpop.f32.mrf.mxu0
          %v3225 = vpop.f32.mrf.mxu0
          %3226 = vdwg.mxu0
          %3227 = vmatprep.subr.bf16.mxu0 %v2561
          %3228 = vmatpush1.bf16.msra.mxu0 %v2560
          %3229 = vmatprep.subr.bf16.mxu0 %v2557
          %3230 = vmatpush1.bf16.msra.mxu0 %v2556
          %3231 = vmatprep.subr.bf16.mxu0 %v2553
          %3232 = vmatpush1.bf16.msra.mxu0 %v2552
          %3233 = vmatprep.subr.bf16.mxu0 %v2549
          %3234 = vmatpush1.bf16.msra.mxu0 %v2548
          %3235 = vmatprep.subr.bf16.mxu0 %v2545
          %3236 = vmatpush1.bf16.msra.mxu0 %v2544
          %3237 = vmatprep.subr.bf16.mxu0 %v2541
          %3238 = vmatpush1.bf16.msra.mxu0 %v2540
          %3239 = vmatprep.subr.bf16.mxu0 %v2537
          %3240 = vmatpush1.bf16.msra.mxu0 %v2536
          %3241 = vmatprep.subr.bf16.mxu0 %v2533
          %3242 = vmatpush1.bf16.msra.mxu0 %v2532
          %3243 = vmatprep.subr.bf16.mxu0 %v2593
          %3244 = vmatpush2.bf16.msra.mxu0 %v2592
          %3245 = vmatprep.subr.bf16.mxu0 %v2589
          %3246 = vmatpush2.bf16.msra.mxu0 %v2588
          %3247 = vmatprep.subr.bf16.mxu0 %v2585
          %3248 = vmatpush2.bf16.msra.mxu0 %v2584
          %3249 = vmatprep.subr.bf16.mxu0 %v2581
          %3250 = vmatpush2.bf16.msra.mxu0 %v2580
          %3251 = vmatprep.subr.bf16.mxu0 %v2577
          %3252 = vmatpush2.bf16.msra.mxu0 %v2576
          %3253 = vmatprep.subr.bf16.mxu0 %v2573
          %3254 = vmatpush2.bf16.msra.mxu0 %v2572
          %3255 = vmatprep.subr.bf16.mxu0 %v2569
          %3256 = vmatpush2.bf16.msra.mxu0 %v2568
          %3257 = vmatprep.subr.bf16.mxu0 %v2565
          %3258 = vmatpush2.bf16.msra.mxu0 %v2564
          %3259 = vmatprep.mubr.bf16.mxu0 %v1498
          %3260 = vmatmul.mubr.bf16.gmra.mxu0 %v1497
          %v3261 = vpop.f32.mrf.mxu0
          %v3262 = vadd.f32 %v3054, %v3261
          %v3263 = vpop.f32.mrf.mxu0
          %v3264 = vadd.f32 %v3058, %v3263
          %v3265 = vpop.f32.mrf.mxu0
          %v3266 = vpop.f32.mrf.mxu0
          %3267 = vdwg.mxu0
          %3268 = vmatprep.subr.bf16.mxu0 %v2625
          %3269 = vmatpush1.bf16.msra.mxu0 %v2624
          %3270 = vmatprep.subr.bf16.mxu0 %v2621
          %3271 = vmatpush1.bf16.msra.mxu0 %v2620
          %3272 = vmatprep.subr.bf16.mxu0 %v2617
          %3273 = vmatpush1.bf16.msra.mxu0 %v2616
          %3274 = vmatprep.subr.bf16.mxu0 %v2613
          %3275 = vmatpush1.bf16.msra.mxu0 %v2612
          %3276 = vmatprep.subr.bf16.mxu0 %v2609
          %3277 = vmatpush1.bf16.msra.mxu0 %v2608
          %3278 = vmatprep.subr.bf16.mxu0 %v2605
          %3279 = vmatpush1.bf16.msra.mxu0 %v2604
          %3280 = vmatprep.subr.bf16.mxu0 %v2601
          %3281 = vmatpush1.bf16.msra.mxu0 %v2600
          %3282 = vmatprep.subr.bf16.mxu0 %v2597
          %3283 = vmatpush1.bf16.msra.mxu0 %v2596
          %3284 = vmatprep.subr.bf16.mxu0 %v2657
          %3285 = vmatpush2.bf16.msra.mxu0 %v2656
          %3286 = vmatprep.subr.bf16.mxu0 %v2653
          %3287 = vmatpush2.bf16.msra.mxu0 %v2652
          %3288 = vmatprep.subr.bf16.mxu0 %v2649
          %3289 = vmatpush2.bf16.msra.mxu0 %v2648
          %3290 = vmatprep.subr.bf16.mxu0 %v2645
          %3291 = vmatpush2.bf16.msra.mxu0 %v2644
          %3292 = vmatprep.subr.bf16.mxu0 %v2641
          %3293 = vmatpush2.bf16.msra.mxu0 %v2640
          %3294 = vmatprep.subr.bf16.mxu0 %v2637
          %3295 = vmatpush2.bf16.msra.mxu0 %v2636
          %3296 = vmatprep.subr.bf16.mxu0 %v2633
          %3297 = vmatpush2.bf16.msra.mxu0 %v2632
          %3298 = vmatprep.subr.bf16.mxu0 %v2629
          %3299 = vmatpush2.bf16.msra.mxu0 %v2628
          %3300 = vmatprep.mubr.bf16.mxu0 %v1500
          %3301 = vmatmul.mubr.bf16.gmra.mxu0 %v1499
          %v3302 = vpop.f32.mrf.mxu0
          %v3303 = vadd.f32 %v3262, %v3302
          %v3304 = vpop.f32.mrf.mxu0
          %v3305 = vadd.f32 %v3264, %v3304
          %v3306 = vpop.f32.mrf.mxu0
          %v3307 = vpop.f32.mrf.mxu0
          %3308 = vdwg.mxu0
          %3309 = vmatprep.subr.bf16.mxu0 %v2689
          %3310 = vmatpush1.bf16.msra.mxu0 %v2688
          %3311 = vmatprep.subr.bf16.mxu0 %v2685
          %3312 = vmatpush1.bf16.msra.mxu0 %v2684
          %3313 = vmatprep.subr.bf16.mxu0 %v2681
          %3314 = vmatpush1.bf16.msra.mxu0 %v2680
          %3315 = vmatprep.subr.bf16.mxu0 %v2677
          %3316 = vmatpush1.bf16.msra.mxu0 %v2676
          %3317 = vmatprep.subr.bf16.mxu0 %v2673
          %3318 = vmatpush1.bf16.msra.mxu0 %v2672
          %3319 = vmatprep.subr.bf16.mxu0 %v2669
          %3320 = vmatpush1.bf16.msra.mxu0 %v2668
          %3321 = vmatprep.subr.bf16.mxu0 %v2665
          %3322 = vmatpush1.bf16.msra.mxu0 %v2664
          %3323 = vmatprep.subr.bf16.mxu0 %v2661
          %3324 = vmatpush1.bf16.msra.mxu0 %v2660
          %3325 = vmatprep.subr.bf16.mxu0 %v2721
          %3326 = vmatpush2.bf16.msra.mxu0 %v2720
          %3327 = vmatprep.subr.bf16.mxu0 %v2717
          %3328 = vmatpush2.bf16.msra.mxu0 %v2716
          %3329 = vmatprep.subr.bf16.mxu0 %v2713
          %3330 = vmatpush2.bf16.msra.mxu0 %v2712
          %3331 = vmatprep.subr.bf16.mxu0 %v2709
          %3332 = vmatpush2.bf16.msra.mxu0 %v2708
          %3333 = vmatprep.subr.bf16.mxu0 %v2705
          %3334 = vmatpush2.bf16.msra.mxu0 %v2704
          %3335 = vmatprep.subr.bf16.mxu0 %v2701
          %3336 = vmatpush2.bf16.msra.mxu0 %v2700
          %3337 = vmatprep.subr.bf16.mxu0 %v2697
          %3338 = vmatpush2.bf16.msra.mxu0 %v2696
          %3339 = vmatprep.subr.bf16.mxu0 %v2693
          %3340 = vmatpush2.bf16.msra.mxu0 %v2692
          %3341 = vmatprep.mubr.bf16.mxu0 %v1502
          %3342 = vmatmul.mubr.bf16.gmra.mxu0 %v1501
          %v3343 = vpop.f32.mrf.mxu0
          %v3344 = vadd.f32 %v3303, %v3343
          %v3345 = vpop.f32.mrf.mxu0
          %v3346 = vadd.f32 %v3305, %v3345
          %v3347 = vpop.f32.mrf.mxu0
          %v3348 = vpop.f32.mrf.mxu0
          %3349 = vdwg.mxu0
          %3350 = vmatprep.subr.bf16.mxu0 %v2753
          %3351 = vmatpush1.bf16.msra.mxu0 %v2752
          %3352 = vmatprep.subr.bf16.mxu0 %v2749
          %3353 = vmatpush1.bf16.msra.mxu0 %v2748
          %3354 = vmatprep.subr.bf16.mxu0 %v2745
          %3355 = vmatpush1.bf16.msra.mxu0 %v2744
          %3356 = vmatprep.subr.bf16.mxu0 %v2741
          %3357 = vmatpush1.bf16.msra.mxu0 %v2740
          %3358 = vmatprep.subr.bf16.mxu0 %v2737
          %3359 = vmatpush1.bf16.msra.mxu0 %v2736
          %3360 = vmatprep.subr.bf16.mxu0 %v2733
          %3361 = vmatpush1.bf16.msra.mxu0 %v2732
          %3362 = vmatprep.subr.bf16.mxu0 %v2729
          %3363 = vmatpush1.bf16.msra.mxu0 %v2728
          %3364 = vmatprep.subr.bf16.mxu0 %v2725
          %3365 = vmatpush1.bf16.msra.mxu0 %v2724
          %3366 = vmatprep.subr.bf16.mxu0 %v2785
          %3367 = vmatpush2.bf16.msra.mxu0 %v2784
          %3368 = vmatprep.subr.bf16.mxu0 %v2781
          %3369 = vmatpush2.bf16.msra.mxu0 %v2780
          %3370 = vmatprep.subr.bf16.mxu0 %v2777
          %3371 = vmatpush2.bf16.msra.mxu0 %v2776
          %3372 = vmatprep.subr.bf16.mxu0 %v2773
          %3373 = vmatpush2.bf16.msra.mxu0 %v2772
          %3374 = vmatprep.subr.bf16.mxu0 %v2769
          %3375 = vmatpush2.bf16.msra.mxu0 %v2768
          %3376 = vmatprep.subr.bf16.mxu0 %v2765
          %3377 = vmatpush2.bf16.msra.mxu0 %v2764
          %3378 = vmatprep.subr.bf16.mxu0 %v2761
          %3379 = vmatpush2.bf16.msra.mxu0 %v2760
          %3380 = vmatprep.subr.bf16.mxu0 %v2757
          %3381 = vmatpush2.bf16.msra.mxu0 %v2756
          %3382 = vmatprep.mubr.bf16.mxu0 %v1504
          %3383 = vmatmul.mubr.bf16.gmra.mxu0 %v1503
          %v3384 = vpop.f32.mrf.mxu0
          %v3385 = vadd.f32 %v3344, %v3384
          %v3386 = vpop.f32.mrf.mxu0
          %v3387 = vadd.f32 %v3346, %v3386
          %v3388 = vpop.f32.mrf.mxu0
          %v3389 = vpop.f32.mrf.mxu0
          %3390 = vdwg.mxu0
          %v3391 = vmax.f32 %v3221, 0.0
          %v3392 = vmax.f32 %v3223, 0.0
          %v3393 = vmax.f32 %v3385, 0.0
          %v3394 = vmax.f32 %v3387, 0.0
          %v3395 = vpack.c.bf16 %v3391, %v3391
          %v3396 = vpack.c.bf16 %v3392, %v3392
          %v3397 = vpack.c.bf16 %v3393, %v3393
          %v3398 = vpack.c.bf16 %v3394, %v3394
          %v3399 = vld [vmem:[#allocation12] sm:$0xff]
          %v3400 = vld [vmem:[#allocation12 + $0x8] sm:$0xff]
          %v3401 = vld [vmem:[#allocation12 + $0x10] sm:$0xff]
          %v3402 = vld [vmem:[#allocation12 + $0x18] sm:$0xff]
          %v3403 = vld [vmem:[#allocation12 + $0x20] sm:$0xff]
          %v3404 = vld [vmem:[#allocation12 + $0x28] sm:$0xff]
          %v3405 = vld [vmem:[#allocation12 + $0x30] sm:$0xff]
          %v3406 = vld [vmem:[#allocation12 + $0x38] sm:$0xff]
          %v3407 = vld [vmem:[#allocation12 + $0x40] sm:$0xff]
          %v3408 = vld [vmem:[#allocation12 + $0x48] sm:$0xff]
          %v3409 = vld [vmem:[#allocation12 + $0x50] sm:$0xff]
          %v3410 = vld [vmem:[#allocation12 + $0x58] sm:$0xff]
          %v3411 = vld [vmem:[#allocation12 + $0x60] sm:$0xff]
          %v3412 = vld [vmem:[#allocation12 + $0x68] sm:$0xff]
          %v3413 = vld [vmem:[#allocation12 + $0x70] sm:$0xff]
          %v3414 = vld [vmem:[#allocation12 + $0x78] sm:$0xff]
          %v3415 = vld [vmem:[#allocation12 + $0x80] sm:$0xff]
          %v3416 = vld [vmem:[#allocation12 + $0x88] sm:$0xff]
          %v3417 = vld [vmem:[#allocation12 + $0x90] sm:$0xff]
          %v3418 = vld [vmem:[#allocation12 + $0x98] sm:$0xff]
          %v3419 = vld [vmem:[#allocation12 + $0xa0] sm:$0xff]
          %v3420 = vld [vmem:[#allocation12 + $0xa8] sm:$0xff]
          %v3421 = vld [vmem:[#allocation12 + $0xb0] sm:$0xff]
          %v3422 = vld [vmem:[#allocation12 + $0xb8] sm:$0xff]
          %v3423 = vld [vmem:[#allocation12 + $0xc0] sm:$0xff]
          %v3424 = vld [vmem:[#allocation12 + $0xc8] sm:$0xff]
          %v3425 = vld [vmem:[#allocation12 + $0xd0] sm:$0xff]
          %v3426 = vld [vmem:[#allocation12 + $0xd8] sm:$0xff]
          %v3427 = vld [vmem:[#allocation12 + $0xe0] sm:$0xff]
          %v3428 = vld [vmem:[#allocation12 + $0xe8] sm:$0xff]
          %v3429 = vld [vmem:[#allocation12 + $0xf0] sm:$0xff]
          %v3430 = vld [vmem:[#allocation12 + $0xf8] sm:$0xff]
          %v3431 = vld [vmem:[#allocation12 + $0x100] sm:$0xff]
          %v3432 = vld [vmem:[#allocation12 + $0x108] sm:$0xff]
          %v3433 = vld [vmem:[#allocation12 + $0x110] sm:$0xff]
          %v3434 = vld [vmem:[#allocation12 + $0x118] sm:$0xff]
          %v3435 = vld [vmem:[#allocation12 + $0x120] sm:$0xff]
          %v3436 = vld [vmem:[#allocation12 + $0x128] sm:$0xff]
          %v3437 = vld [vmem:[#allocation12 + $0x130] sm:$0xff]
          %v3438 = vld [vmem:[#allocation12 + $0x138] sm:$0xff]
          %v3439 = vld [vmem:[#allocation12 + $0x140] sm:$0xff]
          %v3440 = vld [vmem:[#allocation12 + $0x148] sm:$0xff]
          %v3441 = vld [vmem:[#allocation12 + $0x150] sm:$0xff]
          %v3442 = vld [vmem:[#allocation12 + $0x158] sm:$0xff]
          %v3443 = vld [vmem:[#allocation12 + $0x160] sm:$0xff]
          %v3444 = vld [vmem:[#allocation12 + $0x168] sm:$0xff]
          %v3445 = vld [vmem:[#allocation12 + $0x170] sm:$0xff]
          %v3446 = vld [vmem:[#allocation12 + $0x178] sm:$0xff]
          %v3447 = vld [vmem:[#allocation12 + $0x180] sm:$0xff]
          %v3448 = vld [vmem:[#allocation12 + $0x188] sm:$0xff]
          %v3449 = vld [vmem:[#allocation12 + $0x190] sm:$0xff]
          %v3450 = vld [vmem:[#allocation12 + $0x198] sm:$0xff]
          %v3451 = vld [vmem:[#allocation12 + $0x1a0] sm:$0xff]
          %v3452 = vld [vmem:[#allocation12 + $0x1a8] sm:$0xff]
          %v3453 = vld [vmem:[#allocation12 + $0x1b0] sm:$0xff]
          %v3454 = vld [vmem:[#allocation12 + $0x1b8] sm:$0xff]
          %v3455 = vld [vmem:[#allocation12 + $0x1c0] sm:$0xff]
          %v3456 = vld [vmem:[#allocation12 + $0x1c8] sm:$0xff]
          %v3457 = vld [vmem:[#allocation12 + $0x1d0] sm:$0xff]
          %v3458 = vld [vmem:[#allocation12 + $0x1d8] sm:$0xff]
          %v3459 = vld [vmem:[#allocation12 + $0x1e0] sm:$0xff]
          %v3460 = vld [vmem:[#allocation12 + $0x1e8] sm:$0xff]
          %v3461 = vld [vmem:[#allocation12 + $0x1f0] sm:$0xff]
          %v3462 = vld [vmem:[#allocation12 + $0x1f8] sm:$0xff]
          %v3463 = vld [vmem:[%s11] sm:$0x3]
          %v3528 = vunpack.c.l.b16 %v3399
          %v3529 = vunpack.c.h.b16 %v3399
          %v3530 = vunpack.c.l.b16 %v3400
          %v3531 = vunpack.c.h.b16 %v3400
          %v3532 = vunpack.c.l.b16 %v3401
          %v3533 = vunpack.c.h.b16 %v3401
          %v3534 = vunpack.c.l.b16 %v3402
          %v3535 = vunpack.c.h.b16 %v3402
          %v3536 = vunpack.c.l.b16 %v3403
          %v3537 = vunpack.c.h.b16 %v3403
          %v3538 = vunpack.c.l.b16 %v3404
          %v3539 = vunpack.c.h.b16 %v3404
          %v3540 = vunpack.c.l.b16 %v3405
          %v3541 = vunpack.c.h.b16 %v3405
          %v3542 = vunpack.c.l.b16 %v3406
          %v3543 = vunpack.c.h.b16 %v3406
          %v3544 = vunpack.c.l.b16 %v3407
          %v3545 = vunpack.c.h.b16 %v3407
          %v3546 = vunpack.c.l.b16 %v3408
          %v3547 = vunpack.c.h.b16 %v3408
          %v3548 = vunpack.c.l.b16 %v3409
          %v3549 = vunpack.c.h.b16 %v3409
          %v3550 = vunpack.c.l.b16 %v3410
          %v3551 = vunpack.c.h.b16 %v3410
          %v3552 = vunpack.c.l.b16 %v3411
          %v3553 = vunpack.c.h.b16 %v3411
          %v3554 = vunpack.c.l.b16 %v3412
          %v3555 = vunpack.c.h.b16 %v3412
          %v3556 = vunpack.c.l.b16 %v3413
          %v3557 = vunpack.c.h.b16 %v3413
          %v3558 = vunpack.c.l.b16 %v3414
          %v3559 = vunpack.c.h.b16 %v3414
          %v3560 = vunpack.c.l.b16 %v3415
          %v3561 = vunpack.c.h.b16 %v3415
          %v3562 = vunpack.c.l.b16 %v3416
          %v3563 = vunpack.c.h.b16 %v3416
          %v3564 = vunpack.c.l.b16 %v3417
          %v3565 = vunpack.c.h.b16 %v3417
          %v3566 = vunpack.c.l.b16 %v3418
          %v3567 = vunpack.c.h.b16 %v3418
          %v3568 = vunpack.c.l.b16 %v3419
          %v3569 = vunpack.c.h.b16 %v3419
          %v3570 = vunpack.c.l.b16 %v3420
          %v3571 = vunpack.c.h.b16 %v3420
          %v3572 = vunpack.c.l.b16 %v3421
          %v3573 = vunpack.c.h.b16 %v3421
          %v3574 = vunpack.c.l.b16 %v3422
          %v3575 = vunpack.c.h.b16 %v3422
          %v3576 = vunpack.c.l.b16 %v3423
          %v3577 = vunpack.c.h.b16 %v3423
          %v3578 = vunpack.c.l.b16 %v3424
          %v3579 = vunpack.c.h.b16 %v3424
          %v3580 = vunpack.c.l.b16 %v3425
          %v3581 = vunpack.c.h.b16 %v3425
          %v3582 = vunpack.c.l.b16 %v3426
          %v3583 = vunpack.c.h.b16 %v3426
          %v3584 = vunpack.c.l.b16 %v3427
          %v3585 = vunpack.c.h.b16 %v3427
          %v3586 = vunpack.c.l.b16 %v3428
          %v3587 = vunpack.c.h.b16 %v3428
          %v3588 = vunpack.c.l.b16 %v3429
          %v3589 = vunpack.c.h.b16 %v3429
          %v3590 = vunpack.c.l.b16 %v3430
          %v3591 = vunpack.c.h.b16 %v3430
          %v3592 = vunpack.c.l.b16 %v3431
          %v3593 = vunpack.c.h.b16 %v3431
          %v3594 = vunpack.c.l.b16 %v3432
          %v3595 = vunpack.c.h.b16 %v3432
          %v3596 = vunpack.c.l.b16 %v3433
          %v3597 = vunpack.c.h.b16 %v3433
          %v3598 = vunpack.c.l.b16 %v3434
          %v3599 = vunpack.c.h.b16 %v3434
          %v3600 = vunpack.c.l.b16 %v3435
          %v3601 = vunpack.c.h.b16 %v3435
          %v3602 = vunpack.c.l.b16 %v3436
          %v3603 = vunpack.c.h.b16 %v3436
          %v3604 = vunpack.c.l.b16 %v3437
          %v3605 = vunpack.c.h.b16 %v3437
          %v3606 = vunpack.c.l.b16 %v3438
          %v3607 = vunpack.c.h.b16 %v3438
          %v3608 = vunpack.c.l.b16 %v3439
          %v3609 = vunpack.c.h.b16 %v3439
          %v3610 = vunpack.c.l.b16 %v3440
          %v3611 = vunpack.c.h.b16 %v3440
          %v3612 = vunpack.c.l.b16 %v3441
          %v3613 = vunpack.c.h.b16 %v3441
          %v3614 = vunpack.c.l.b16 %v3442
          %v3615 = vunpack.c.h.b16 %v3442
          %v3616 = vunpack.c.l.b16 %v3443
          %v3617 = vunpack.c.h.b16 %v3443
          %v3618 = vunpack.c.l.b16 %v3444
          %v3619 = vunpack.c.h.b16 %v3444
          %v3620 = vunpack.c.l.b16 %v3445
          %v3621 = vunpack.c.h.b16 %v3445
          %v3622 = vunpack.c.l.b16 %v3446
          %v3623 = vunpack.c.h.b16 %v3446
          %v3624 = vunpack.c.l.b16 %v3447
          %v3625 = vunpack.c.h.b16 %v3447
          %v3626 = vunpack.c.l.b16 %v3448
          %v3627 = vunpack.c.h.b16 %v3448
          %v3628 = vunpack.c.l.b16 %v3449
          %v3629 = vunpack.c.h.b16 %v3449
          %v3630 = vunpack.c.l.b16 %v3450
          %v3631 = vunpack.c.h.b16 %v3450
          %v3632 = vunpack.c.l.b16 %v3451
          %v3633 = vunpack.c.h.b16 %v3451
          %v3634 = vunpack.c.l.b16 %v3452
          %v3635 = vunpack.c.h.b16 %v3452
          %v3636 = vunpack.c.l.b16 %v3453
          %v3637 = vunpack.c.h.b16 %v3453
          %v3638 = vunpack.c.l.b16 %v3454
          %v3639 = vunpack.c.h.b16 %v3454
          %v3640 = vunpack.c.l.b16 %v3455
          %v3641 = vunpack.c.h.b16 %v3455
          %v3642 = vunpack.c.l.b16 %v3456
          %v3643 = vunpack.c.h.b16 %v3456
          %v3644 = vunpack.c.l.b16 %v3457
          %v3645 = vunpack.c.h.b16 %v3457
          %v3646 = vunpack.c.l.b16 %v3458
          %v3647 = vunpack.c.h.b16 %v3458
          %v3648 = vunpack.c.l.b16 %v3459
          %v3649 = vunpack.c.h.b16 %v3459
          %v3650 = vunpack.c.l.b16 %v3460
          %v3651 = vunpack.c.h.b16 %v3460
          %v3652 = vunpack.c.l.b16 %v3461
          %v3653 = vunpack.c.h.b16 %v3461
          %v3654 = vunpack.c.l.b16 %v3462
          %v3655 = vunpack.c.h.b16 %v3462
          %v3656 = vpack.c.b16 %v3530, %v3528
          %v3657 = vpack.c.b16 %v3531, %v3529
          %v3658 = vpack.c.b16 %v3534, %v3532
          %v3659 = vpack.c.b16 %v3535, %v3533
          %v3660 = vpack.c.b16 %v3538, %v3536
          %v3661 = vpack.c.b16 %v3539, %v3537
          %v3662 = vpack.c.b16 %v3542, %v3540
          %v3663 = vpack.c.b16 %v3543, %v3541
          %v3664 = vpack.c.b16 %v3546, %v3544
          %v3665 = vpack.c.b16 %v3547, %v3545
          %v3666 = vpack.c.b16 %v3550, %v3548
          %v3667 = vpack.c.b16 %v3551, %v3549
          %v3668 = vpack.c.b16 %v3554, %v3552
          %v3669 = vpack.c.b16 %v3555, %v3553
          %v3670 = vpack.c.b16 %v3558, %v3556
          %v3671 = vpack.c.b16 %v3559, %v3557
          %v3672 = vpack.c.b16 %v3562, %v3560
          %v3673 = vpack.c.b16 %v3563, %v3561
          %v3674 = vpack.c.b16 %v3566, %v3564
          %v3675 = vpack.c.b16 %v3567, %v3565
          %v3676 = vpack.c.b16 %v3570, %v3568
          %v3677 = vpack.c.b16 %v3571, %v3569
          %v3678 = vpack.c.b16 %v3574, %v3572
          %v3679 = vpack.c.b16 %v3575, %v3573
          %v3680 = vpack.c.b16 %v3578, %v3576
          %v3681 = vpack.c.b16 %v3579, %v3577
          %v3682 = vpack.c.b16 %v3582, %v3580
          %v3683 = vpack.c.b16 %v3583, %v3581
          %v3684 = vpack.c.b16 %v3586, %v3584
          %v3685 = vpack.c.b16 %v3587, %v3585
          %v3686 = vpack.c.b16 %v3590, %v3588
          %v3687 = vpack.c.b16 %v3591, %v3589
          %v3688 = vpack.c.b16 %v3594, %v3592
          %v3689 = vpack.c.b16 %v3595, %v3593
          %v3690 = vpack.c.b16 %v3598, %v3596
          %v3691 = vpack.c.b16 %v3599, %v3597
          %v3692 = vpack.c.b16 %v3602, %v3600
          %v3693 = vpack.c.b16 %v3603, %v3601
          %v3694 = vpack.c.b16 %v3606, %v3604
          %v3695 = vpack.c.b16 %v3607, %v3605
          %v3696 = vpack.c.b16 %v3610, %v3608
          %v3697 = vpack.c.b16 %v3611, %v3609
          %v3698 = vpack.c.b16 %v3614, %v3612
          %v3699 = vpack.c.b16 %v3615, %v3613
          %v3700 = vpack.c.b16 %v3618, %v3616
          %v3701 = vpack.c.b16 %v3619, %v3617
          %v3702 = vpack.c.b16 %v3622, %v3620
          %v3703 = vpack.c.b16 %v3623, %v3621
          %v3704 = vpack.c.b16 %v3626, %v3624
          %v3705 = vpack.c.b16 %v3627, %v3625
          %v3706 = vpack.c.b16 %v3630, %v3628
          %v3707 = vpack.c.b16 %v3631, %v3629
          %v3708 = vpack.c.b16 %v3634, %v3632
          %v3709 = vpack.c.b16 %v3635, %v3633
          %v3710 = vpack.c.b16 %v3638, %v3636
          %v3711 = vpack.c.b16 %v3639, %v3637
          %v3712 = vpack.c.b16 %v3642, %v3640
          %v3713 = vpack.c.b16 %v3643, %v3641
          %v3714 = vpack.c.b16 %v3646, %v3644
          %v3715 = vpack.c.b16 %v3647, %v3645
          %v3716 = vpack.c.b16 %v3650, %v3648
          %v3717 = vpack.c.b16 %v3651, %v3649
          %v3718 = vpack.c.b16 %v3654, %v3652
          %v3719 = vpack.c.b16 %v3655, %v3653
          %v3785 = vlaneseq
          %v3786 = vshrl.u32 %v3785, 7
          %v3787 = vsub.s32 0, %v3786
          %v3788 = vrot.slane %v3463, %v3787
          %v3789 = vlaneseq
          %v3790 = vshrl.u32 %v3789, 7
          %v3791 = vsub.s32 1, %v3790
          %v3792 = vrot.slane %v3463, %v3791
          %3795 = vmatprep.subr.bf16.mxu0 %v3671
          %3796 = vmatpush1.bf16.msra.mxu0 %v3670
          %3797 = vmatprep.subr.bf16.mxu0 %v3669
          %3798 = vmatpush1.bf16.msra.mxu0 %v3668
          %3799 = vmatprep.subr.bf16.mxu0 %v3667
          %3800 = vmatpush1.bf16.msra.mxu0 %v3666
          %3801 = vmatprep.subr.bf16.mxu0 %v3665
          %3802 = vmatpush1.bf16.msra.mxu0 %v3664
          %3803 = vmatprep.subr.bf16.mxu0 %v3663
          %3804 = vmatpush1.bf16.msra.mxu0 %v3662
          %3805 = vmatprep.subr.bf16.mxu0 %v3661
          %3806 = vmatpush1.bf16.msra.mxu0 %v3660
          %3807 = vmatprep.subr.bf16.mxu0 %v3659
          %3808 = vmatpush1.bf16.msra.mxu0 %v3658
          %3809 = vmatprep.subr.bf16.mxu0 %v3657
          %3810 = vmatpush1.bf16.msra.mxu0 %v3656
          %3811 = vmatprep.subr.bf16.mxu0 %v3687
          %3812 = vmatpush2.bf16.msra.mxu0 %v3686
          %3813 = vmatprep.subr.bf16.mxu0 %v3685
          %3814 = vmatpush2.bf16.msra.mxu0 %v3684
          %3815 = vmatprep.subr.bf16.mxu0 %v3683
          %3816 = vmatpush2.bf16.msra.mxu0 %v3682
          %3817 = vmatprep.subr.bf16.mxu0 %v3681
          %3818 = vmatpush2.bf16.msra.mxu0 %v3680
          %3819 = vmatprep.subr.bf16.mxu0 %v3679
          %3820 = vmatpush2.bf16.msra.mxu0 %v3678
          %3821 = vmatprep.subr.bf16.mxu0 %v3677
          %3822 = vmatpush2.bf16.msra.mxu0 %v3676
          %3823 = vmatprep.subr.bf16.mxu0 %v3675
          %3824 = vmatpush2.bf16.msra.mxu0 %v3674
          %3825 = vmatprep.subr.bf16.mxu0 %v3673
          %3826 = vmatpush2.bf16.msra.mxu0 %v3672
          %3827 = vmatprep.mubr.bf16.mxu0 %v3396
          %3828 = vmatmul.mubr.bf16.gmra.mxu0 %v3395
          %v3829 = vpop.f32.mrf.mxu0
          %v3830 = vadd.f32 %v3788, %v3829
          %v3831 = vpop.f32.mrf.mxu0
          %v3832 = vadd.f32 %v3792, %v3831
          %v3833 = vpop.f32.mrf.mxu0
          %v3834 = vpop.f32.mrf.mxu0
          %3835 = vdwg.mxu0
          %3836 = vmatprep.subr.bf16.mxu0 %v3703
          %3837 = vmatpush1.bf16.msra.mxu0 %v3702
          %3838 = vmatprep.subr.bf16.mxu0 %v3701
          %3839 = vmatpush1.bf16.msra.mxu0 %v3700
          %3840 = vmatprep.subr.bf16.mxu0 %v3699
          %3841 = vmatpush1.bf16.msra.mxu0 %v3698
          %3842 = vmatprep.subr.bf16.mxu0 %v3697
          %3843 = vmatpush1.bf16.msra.mxu0 %v3696
          %3844 = vmatprep.subr.bf16.mxu0 %v3695
          %3845 = vmatpush1.bf16.msra.mxu0 %v3694
          %3846 = vmatprep.subr.bf16.mxu0 %v3693
          %3847 = vmatpush1.bf16.msra.mxu0 %v3692
          %3848 = vmatprep.subr.bf16.mxu0 %v3691
          %3849 = vmatpush1.bf16.msra.mxu0 %v3690
          %3850 = vmatprep.subr.bf16.mxu0 %v3689
          %3851 = vmatpush1.bf16.msra.mxu0 %v3688
          %3852 = vmatprep.subr.bf16.mxu0 %v3719
          %3853 = vmatpush2.bf16.msra.mxu0 %v3718
          %3854 = vmatprep.subr.bf16.mxu0 %v3717
          %3855 = vmatpush2.bf16.msra.mxu0 %v3716
          %3856 = vmatprep.subr.bf16.mxu0 %v3715
          %3857 = vmatpush2.bf16.msra.mxu0 %v3714
          %3858 = vmatprep.subr.bf16.mxu0 %v3713
          %3859 = vmatpush2.bf16.msra.mxu0 %v3712
          %3860 = vmatprep.subr.bf16.mxu0 %v3711
          %3861 = vmatpush2.bf16.msra.mxu0 %v3710
          %3862 = vmatprep.subr.bf16.mxu0 %v3709
          %3863 = vmatpush2.bf16.msra.mxu0 %v3708
          %3864 = vmatprep.subr.bf16.mxu0 %v3707
          %3865 = vmatpush2.bf16.msra.mxu0 %v3706
          %3866 = vmatprep.subr.bf16.mxu0 %v3705
          %3867 = vmatpush2.bf16.msra.mxu0 %v3704
          %3868 = vmatprep.mubr.bf16.mxu0 %v3398
          %3869 = vmatmul.mubr.bf16.gmra.mxu0 %v3397
          %v3870 = vpop.f32.mrf.mxu0
          %v3871 = vadd.f32 %v3830, %v3870
          %v3872 = vpop.f32.mrf.mxu0
          %v3873 = vadd.f32 %v3832, %v3872
          %v3874 = vpop.f32.mrf.mxu0
          %v3875 = vpop.f32.mrf.mxu0
          %3876 = vdwg.mxu0
          %v3877 = vmax.f32 %v3871, 0.0
          %v3878 = vmax.f32 %v3873, 0.0
          %v3879 = vpack.c.bf16 %v3877, %v3877
          %v3880 = vpack.c.bf16 %v3878, %v3878
          %v3881 = vld [vmem:[#allocation14] sm:$0xf]
          %v3882 = vld [vmem:[#allocation14 + $0x4] sm:$0xf]
          %v3883 = vld [vmem:[#allocation14 + $0x8] sm:$0xf]
          %v3884 = vld [vmem:[#allocation14 + $0xc] sm:$0xf]
          %v3885 = vld [vmem:[#allocation14 + $0x10] sm:$0xf]
          %v3886 = vld [vmem:[#allocation14 + $0x14] sm:$0xf]
          %v3887 = vld [vmem:[#allocation14 + $0x18] sm:$0xf]
          %v3888 = vld [vmem:[#allocation14 + $0x1c] sm:$0xf]
          %v3889 = vld [vmem:[#allocation14 + $0x20] sm:$0xf]
          %v3890 = vld [vmem:[#allocation14 + $0x24] sm:$0xf]
          %v3891 = vld [vmem:[#allocation14 + $0x28] sm:$0xf]
          %v3892 = vld [vmem:[#allocation14 + $0x2c] sm:$0xf]
          %v3893 = vld [vmem:[#allocation14 + $0x30] sm:$0xf]
          %v3894 = vld [vmem:[#allocation14 + $0x34] sm:$0xf]
          %v3895 = vld [vmem:[#allocation14 + $0x38] sm:$0xf]
          %v3896 = vld [vmem:[#allocation14 + $0x3c] sm:$0xf]
          %v3897 = vld [vmem:[#allocation14 + $0x40] sm:$0xf]
          %v3898 = vld [vmem:[#allocation14 + $0x44] sm:$0xf]
          %v3899 = vld [vmem:[#allocation14 + $0x48] sm:$0xf]
          %v3900 = vld [vmem:[#allocation14 + $0x4c] sm:$0xf]
          %v3901 = vld [vmem:[#allocation14 + $0x50] sm:$0xf]
          %v3902 = vld [vmem:[#allocation14 + $0x54] sm:$0xf]
          %v3903 = vld [vmem:[#allocation14 + $0x58] sm:$0xf]
          %v3904 = vld [vmem:[#allocation14 + $0x5c] sm:$0xf]
          %v3905 = vld [vmem:[#allocation14 + $0x60] sm:$0xf]
          %v3906 = vld [vmem:[#allocation14 + $0x64] sm:$0xf]
          %v3907 = vld [vmem:[#allocation14 + $0x68] sm:$0xf]
          %v3908 = vld [vmem:[#allocation14 + $0x6c] sm:$0xf]
          %v3909 = vld [vmem:[#allocation14 + $0x70] sm:$0xf]
          %v3910 = vld [vmem:[#allocation14 + $0x74] sm:$0xf]
          %v3911 = vld [vmem:[#allocation14 + $0x78] sm:$0xf]
          %v3912 = vld [vmem:[#allocation14 + $0x7c] sm:$0xf]
          %v3913 = vld [vmem:[%s13] sm:$0x1]
          %v3946 = vunpack.c.l.b16 %v3881
          %v3947 = vunpack.c.l.b16 %v3882
          %v3948 = vunpack.c.l.b16 %v3883
          %v3949 = vunpack.c.l.b16 %v3884
          %v3950 = vunpack.c.l.b16 %v3885
          %v3951 = vunpack.c.l.b16 %v3886
          %v3952 = vunpack.c.l.b16 %v3887
          %v3953 = vunpack.c.l.b16 %v3888
          %v3954 = vunpack.c.l.b16 %v3889
          %v3955 = vunpack.c.l.b16 %v3890
          %v3956 = vunpack.c.l.b16 %v3891
          %v3957 = vunpack.c.l.b16 %v3892
          %v3958 = vunpack.c.l.b16 %v3893
          %v3959 = vunpack.c.l.b16 %v3894
          %v3960 = vunpack.c.l.b16 %v3895
          %v3961 = vunpack.c.l.b16 %v3896
          %v3962 = vunpack.c.l.b16 %v3897
          %v3963 = vunpack.c.l.b16 %v3898
          %v3964 = vunpack.c.l.b16 %v3899
          %v3965 = vunpack.c.l.b16 %v3900
          %v3966 = vunpack.c.l.b16 %v3901
          %v3967 = vunpack.c.l.b16 %v3902
          %v3968 = vunpack.c.l.b16 %v3903
          %v3969 = vunpack.c.l.b16 %v3904
          %v3970 = vunpack.c.l.b16 %v3905
          %v3971 = vunpack.c.l.b16 %v3906
          %v3972 = vunpack.c.l.b16 %v3907
          %v3973 = vunpack.c.l.b16 %v3908
          %v3974 = vunpack.c.l.b16 %v3909
          %v3975 = vunpack.c.l.b16 %v3910
          %v3976 = vunpack.c.l.b16 %v3911
          %v3977 = vunpack.c.l.b16 %v3912
          %v3978 = vpack.c.b16 %v3947, %v3946
          %v3979 = vpack.c.b16 %v3949, %v3948
          %v3980 = vpack.c.b16 %v3951, %v3950
          %v3981 = vpack.c.b16 %v3953, %v3952
          %v3982 = vpack.c.b16 %v3955, %v3954
          %v3983 = vpack.c.b16 %v3957, %v3956
          %v3984 = vpack.c.b16 %v3959, %v3958
          %v3985 = vpack.c.b16 %v3961, %v3960
          %v3986 = vpack.c.b16 %v3963, %v3962
          %v3987 = vpack.c.b16 %v3965, %v3964
          %v3988 = vpack.c.b16 %v3967, %v3966
          %v3989 = vpack.c.b16 %v3969, %v3968
          %v3990 = vpack.c.b16 %v3971, %v3970
          %v3991 = vpack.c.b16 %v3973, %v3972
          %v3992 = vpack.c.b16 %v3975, %v3974
          %v3993 = vpack.c.b16 %v3977, %v3976
          %4010 = vmatprep.subr.bf16.mxu0 0
          %4011 = vmatpush1.bf16.msra.mxu0 %v3985
          %4012 = vmatprep.subr.bf16.mxu0 0
          %4013 = vmatpush1.bf16.msra.mxu0 %v3984
          %4014 = vmatprep.subr.bf16.mxu0 0
          %4015 = vmatpush1.bf16.msra.mxu0 %v3983
          %4016 = vmatprep.subr.bf16.mxu0 0
          %4017 = vmatpush1.bf16.msra.mxu0 %v3982
          %4018 = vmatprep.subr.bf16.mxu0 0
          %4019 = vmatpush1.bf16.msra.mxu0 %v3981
          %4020 = vmatprep.subr.bf16.mxu0 0
          %4021 = vmatpush1.bf16.msra.mxu0 %v3980
          %4022 = vmatprep.subr.bf16.mxu0 0
          %4023 = vmatpush1.bf16.msra.mxu0 %v3979
          %4024 = vmatprep.subr.bf16.mxu0 0
          %4025 = vmatpush1.bf16.msra.mxu0 %v3978
          %4026 = vmatprep.subr.bf16.mxu0 0
          %4027 = vmatpush2.bf16.msra.mxu0 %v3993
          %4028 = vmatprep.subr.bf16.mxu0 0
          %4029 = vmatpush2.bf16.msra.mxu0 %v3992
          %4030 = vmatprep.subr.bf16.mxu0 0
          %4031 = vmatpush2.bf16.msra.mxu0 %v3991
          %4032 = vmatprep.subr.bf16.mxu0 0
          %4033 = vmatpush2.bf16.msra.mxu0 %v3990
          %4034 = vmatprep.subr.bf16.mxu0 0
          %4035 = vmatpush2.bf16.msra.mxu0 %v3989
          %4036 = vmatprep.subr.bf16.mxu0 0
          %4037 = vmatpush2.bf16.msra.mxu0 %v3988
          %4038 = vmatprep.subr.bf16.mxu0 0
          %4039 = vmatpush2.bf16.msra.mxu0 %v3987
          %4040 = vmatprep.subr.bf16.mxu0 0
          %4041 = vmatpush2.bf16.msra.mxu0 %v3986
          %4042 = vmatprep.mubr.bf16.mxu0 %v3880
          %4043 = vmatmul.mubr.bf16.gmra.mxu0 %v3879
          %v4044 = vpop.f32.mrf.mxu0
          %v4045 = vadd.f32 %v3913, %v4044
          %v4046 = vpop.f32.mrf.mxu0
          %v4047 = vpop.f32.mrf.mxu0
          %v4048 = vpop.f32.mrf.mxu0
          %4049 = vdwg.mxu0
          %4050 = vst [vmem:[%s578] sm:$0x1] %v4045
        $region112: #{tpu_custom_call.1} parent=75 // pred_fallthru
          _
        %s4051 = sand.u32 %s353, 1
        %s4052 = scalar_lea.sflag [#allocation5], %s4051
        %s4053 = sand.u32 %s353, 1
        %s4054 = scalar_lea.vmem [#allocation15], %s4053
        // Predicated region
        $region113: #{tpu_custom_call.1} parent=75 // pred_check
          %p4055 = pneg %p363
        $region114: #{tpu_custom_call.1} parent=75 // pred_check_branch
          %4057 = sbr.rel (%p4055) target = $region116
        $region115: #{tpu_custom_call.1} parent=75 // pred_region
          %s4059 = ssub.s32 16, 16
          %4060 = vsyncadd %s4052, %s4059
          %s4061 = smul.addr %s36, 16
          %s4062 = scalar_lea.hbm %s14, %s4061
          %s4064 = sshll.u32 %s4054, 4
          %s4065 = int_to_ptr.vmem [resolvable:$true] %s4064
          %4067 = dma.vmem_to_hbm [thread:$0]  %s4065, 16, %s4062, %s4052
        $region116: #{tpu_custom_call.1} parent=75 // pred_fallthru
          _
      $region76: #{tpu_custom_call.1} parent=5 // pred_fallthru
        _
      %p4068 = scmp.le.s32.totalorder 2, %s27
      // Predicated region
      $region117: #{tpu_custom_call.1} parent=5 // pred_check
        %p4069 = pneg %p4068
      $region118: #{tpu_custom_call.1} parent=5 // pred_check_branch
        %4071 = sbr.rel (%p4069) target = $region120
      $region119: #{tpu_custom_call.1} parent=5 // pred_region
        %s4072 = ssub.s32 %s27, 2
        // Predicated region
        $region121: #{tpu_custom_call.1} parent=119 // pred_check
          %p4073 = pneg %p369
        $region122: #{tpu_custom_call.1} parent=119 // pred_check_branch
          %4075 = sbr.rel (%p4073) target = $region124
        $region123: #{tpu_custom_call.1} parent=119 // pred_region
          %s4076 = sand.u32 %s354, 1
          %s4077 = scalar_lea.sflag [#allocation5], %s4076
          %s4078 = sand.u32 %s354, 1
          %s4079 = scalar_lea.vmem [#allocation15], %s4078
          %4080 = dma.done %s4077, 16
        $region124: #{tpu_custom_call.1} parent=119 // pred_fallthru
          _
      $region120: #{tpu_custom_call.1} parent=5 // pred_fallthru
        _
    $region6: #{tpu_custom_call.1} parent=1 // loop_footer
      %s31 = sadd.s32 1, %s27
    $region7: #{tpu_custom_call.1} parent=1 // loop_footer_branch
      %26 = sbr.rel target = $region3
    $region8: #{tpu_custom_call.1} parent=1 // loop_exit
      _
    %4081 = vsyncpa [#allocation4], 1
    %s4082 = scalar_lea.sflag [#allocation4], 1
    %4083 = vsyncpa %s4082, 1
    %4084 = vsyncpa [#allocation7], 1
    %4085 = vsyncpa [#allocation10], 1
    %4086 = vsyncpa [#allocation13], 1
    %4087 = vsyncpa [#allocation5], 1
    %s4088 = scalar_lea.sflag [#allocation5], 1
    %4089 = vsyncpa %s4088, 1

</llo_original>
